<compile_context>
chip_gen: v6e
topology: v6e:2x2x1
jax: 0.10.0
libtpu: 0.0.40
codegen_flags: <defaults>
</compile_context>

<pallas_src>
import functools

import jax
import jax.numpy as jnp
from jax.experimental import pallas as pl
from jax.experimental.pallas import tpu as pltpu

EPS = 1e-8  # matches `eps` in the PyTorch module


def _fast_recip(x):
    # EUP approximate reciprocal + one Newton step: moves the divide off the
    # VALU slot while keeping ~f32 accuracy.
    r = pl.reciprocal(x, approx=True)
    return r * (2.0 - x * r)


# ----------------------------------------------------------------------------
# Kernel 1: fused endpoint gather + per-edge MLP.
#   concat([f1, f2, v]) @ W1 == f1 @ W1[:F] + f2 @ W1[F:2F] + v * W1[2F]
#   A = X @ W1[:F], B = X @ W1[F:2F] are tiny [N, H] bf16 tables; endpoint rows
#   are gathered with chunked one-hot bf16 MXU matmuls (VMEM-bounded).
# ----------------------------------------------------------------------------
def mlp_kernel(row_ref, col_ref, val_ref, a_ref, b_ref, w1v_ref, b1_ref,
               w2_ref, b2_ref, w3_ref, b3_ref, z_ref, *, node_chunk):
    te = row_ref.shape[0]
    npad, hdim = a_ref.shape
    nchunks = npad // node_chunk

    row = row_ref[...]                                   # (te, 1) int32
    col = col_ref[...]

    # TODO(synk): for very large graphs replace the chunked one-hot matmul with
    # a real row gather (jnp.take on the VMEM table / manual DMA gather) to
    # drop the remaining O(E*N) MAC factor.
    def gather_chunk(c, acc):
        base = pl.multiple_of(c * node_chunk, node_chunk)
        iota = jax.lax.broadcasted_iota(jnp.int32, (te, node_chunk), 1) + base
        oh_r = (iota == row).astype(jnp.bfloat16)        # exact in bf16
        oh_c = (iota == col).astype(jnp.bfloat16)
        a_blk = a_ref[pl.ds(base, node_chunk), :]        # (chunk, H) bf16
        b_blk = b_ref[pl.ds(base, node_chunk), :]
        acc = acc + jnp.dot(oh_r, a_blk, preferred_element_type=jnp.float32)
        acc = acc + jnp.dot(oh_c, b_blk, preferred_element_type=jnp.float32)
        return acc

    h = jax.lax.fori_loop(0, nchunks, gather_chunk,
                          jnp.zeros((te, hdim), jnp.float32))

    h = h + val_ref[...] * w1v_ref[...] + b1_ref[...]
    h = jnp.maximum(h, 0.0)                              # ReLU
    h = jnp.dot(h.astype(jnp.bfloat16), w2_ref[...],
                preferred_element_type=jnp.float32) + b2_ref[...]
    h = jnp.maximum(h, 0.0)
    # last Linear has a single output column: VPU multiply + lane reduce.
    z = jnp.sum(h * w3_ref[...], axis=-1, keepdims=True) + b3_ref[...]
    # TODO(synk): emit z lane-dense ((te//128, 128) blocks) once kernel 1 is
    # store-bound; today the chunked gather matmul dominates.
    z_ref[...] = z


def edge_mlp(rowp, colp, valp, a_pad, b_pad, w1v, b1, w2, b2, w3row, b3,
             *, te, node_chunk):
    ep = rowp.shape[0]
    npad, h = a_pad.shape
    ngrid = ep // te
    kern = functools.partial(mlp_kernel, node_chunk=node_chunk)
    # TODO(synk): mark the grid-invariant blocks (a_pad, b_pad, weights) with
    # pipeline_mode=pl.Buffered(1) to drop their double-buffer VMEM copy once
    # single-buffering of constant operands is verified on the target jax.
    z = pl.pallas_call(
        kern,
        out_shape=jax.ShapeDtypeStruct((ep, 1), jnp.float32),
        grid_spec=pltpu.PrefetchScalarGridSpec(
            num_scalar_prefetch=0, grid=(ngrid,),
            in_specs=[pl.BlockSpec((te, 1), lambda i: (i, 0)),      # row
                      pl.BlockSpec((te, 1), lambda i: (i, 0)),      # col
                      pl.BlockSpec((te, 1), lambda i: (i, 0)),      # value
                      pl.BlockSpec((npad, h), lambda i: (0, 0)),    # A = X@W1a (bf16)
                      pl.BlockSpec((npad, h), lambda i: (0, 0)),    # B = X@W1b (bf16)
                      pl.BlockSpec((1, h), lambda i: (0, 0)),       # W1 value row
                      pl.BlockSpec((1, h), lambda i: (0, 0)),       # b1
                      pl.BlockSpec((h, h), lambda i: (0, 0)),       # W2 (bf16)
                      pl.BlockSpec((1, h), lambda i: (0, 0)),       # b2
                      pl.BlockSpec((1, h), lambda i: (0, 0)),       # W3 (as row)
                      pl.BlockSpec((1, 1), lambda i: (0, 0))],      # b3
            out_specs=pl.BlockSpec((te, 1), lambda i: (i, 0))),
        compiler_params=pltpu.CompilerParams(
            dimension_semantics=("parallel",),
            vmem_limit_bytes=48 * 1024 * 1024),   # fits v7x's 64 MiB/TC
    )(rowp, colp, valp, a_pad, b_pad, w1v, b1, w2, b2, w3row, b3)
    return z[:, 0]


# ----------------------------------------------------------------------------
# Kernel 2: per-row sparse softmax -> hard-concrete -> softmax -> top-k mask.
# ----------------------------------------------------------------------------
def row_topk_kernel(sc_ref, z_ref, cnt_ref, out_ref, *, k_frac):
    inv_temp = sc_ref[0]
    inv_norm = sc_ref[1]
    tn, dp = z_ref.shape
    neg = jnp.float32(-1e30)

    z = z_ref[...] * inv_norm                       # fused F.normalize(z, dim=0)
    cnt = cnt_ref[...]                              # (tn, 1) float counts
    lane = jax.lax.broadcasted_iota(jnp.int32, (tn, dp), 1)
    valid = lane < cnt.astype(jnp.int32)            # mask derived from counts

    # sparse softmax #1 over each row's specified entries  (pi)
    zm = jnp.where(valid, z, neg)
    mx = jnp.max(zm, axis=-1, keepdims=True)
    e = jnp.where(valid, jnp.exp(zm - mx), 0.0)
    s = jnp.sum(e, axis=-1, keepdims=True)
    pi = e * _fast_recip(jnp.where(s > 0.0, s, 1.0))

    # hard_concrete_sample, eval path (no noise); clamp(sigmoid) is identity
    hard = jnp.clip(jax.nn.sigmoid(jnp.log(pi + EPS) * inv_temp), 0.0, 1.0)

    # sparse softmax #2 over each row  (y)
    hm = jnp.where(valid, hard, neg)
    mx2 = jnp.max(hm, axis=-1, keepdims=True)
    e2 = jnp.where(valid, jnp.exp(hm - mx2), 0.0)
    s2 = jnp.sum(e2, axis=-1, keepdims=True)
    y = e2 * _fast_recip(jnp.where(s2 > 0.0, s2, 1.0))

    # Exact per-row k-th-largest threshold via a 31-step bit-wise binary search
    # on the f32 bit pattern (y >= 0, so int32 bit order == numeric order).
    # Keeps all ties at the threshold, matching the sort/BinaryStep reference,
    # at O(dp*31) per row instead of the previous O(dp^2) rank counting.
    k_row = jnp.maximum(jnp.round(cnt * k_frac), 1.0)          # (tn, 1)
    ybits = pltpu.bitcast(jnp.where(valid, y, 0.0), jnp.int32)

    def refine(_, carry):
        thr, bit = carry
        cand = thr | bit
        ge = jnp.where(valid & (ybits >= cand), 1.0, 0.0)
        n_ge = jnp.sum(ge, axis=-1, keepdims=True)
        thr = jnp.where(n_ge >= k_row, cand, thr)
        return thr, jnp.right_shift(bit, 1)

    thr, _ = jax.lax.fori_loop(
        0, 31, refine,
        (jnp.zeros((tn, 1), jnp.int32), jnp.int32(1 << 30)))

    keep = valid & (ybits >= thr)
    out_ref[...] = jnp.where(keep, y, 0.0)


def _pick_tn(dp, n_nodes):
    # ~12 live f32 (tn, dp) temporaries; keep them ~<16 MiB so the kernel stays
    # well inside v7x's 64 MiB/TC VMEM (48 MiB scoped limit), while DMA tiles
    # are still 256-512 rows on v5e/v6e.
    tn = (16 * 1024 * 1024) // (12 * dp * 4)
    tn = max(8, min(512, (tn // 8) * 8))
    tn = min(tn, ((n_nodes + 7) // 8) * 8)   # don't tile far past the node count
    return int(max(8, tn))


def row_topk(z_dense, cnt_dense, scalars, *, k_frac, tn):
    np_, dp = z_dense.shape
    kern = functools.partial(row_topk_kernel, k_frac=float(k_frac))
    return pl.pallas_call(
        kern,
        out_shape=jax.ShapeDtypeStruct((np_, dp), jnp.float32),
        grid_spec=pltpu.PrefetchScalarGridSpec(
            num_scalar_prefetch=0, grid=(np_ // tn,),
            in_specs=[pl.BlockSpec(memory_space=pltpu.MemorySpace.SMEM),  # [1/T, 1/||z||]
                      pl.BlockSpec((tn, dp), lambda i: (i, 0)),
                      pl.BlockSpec((tn, 1), lambda i: (i, 0))],
            out_specs=pl.BlockSpec((tn, dp), lambda i: (i, 0))),
        compiler_params=pltpu.CompilerParams(
            dimension_semantics=("parallel",),
            vmem_limit_bytes=48 * 1024 * 1024),
    )(scalars, z_dense, cnt_dense)


# ----------------------------------------------------------------------------
# SpLearner.forward — glue fused under one jit, hot paths in the two kernels.
# ----------------------------------------------------------------------------
@functools.partial(jax.jit, static_argnames=("n_nodes", "k_frac", "dp"))
def _splearner_core(params, features, indices, values, temperature,
                    *, n_nodes, k_frac, dp):
    w1, b1, w2, b2, w3, b3 = params
    row = indices[0].astype(jnp.int32)
    col = indices[1].astype(jnp.int32)
    num_edges = row.shape[0]
    f = features.shape[1]
    h = w1.shape[1]

    # algebraic split of the first Linear (tiny [N,H] precompute, stays fused):
    #   concat([f1,f2,v]) @ W1 == f1 @ W1[:F] + f2 @ W1[F:2F] + v * W1[2F]
    feats = features.astype(jnp.float32)
    a = (feats @ w1[:f]).astype(jnp.bfloat16)          # bf16 node tables (MXU rate,
    b = (feats @ w1[f:2 * f]).astype(jnp.bfloat16)     # half the VMEM residency)
    w1v = w1[2 * f:2 * f + 1]

    te = 512
    ep = max(te, ((num_edges + te - 1) // te) * te)
    node_chunk = 512
    npad = ((n_nodes + 127) // 128) * 128
    if npad <= node_chunk:
        node_chunk = npad
    else:
        npad = ((npad + node_chunk - 1) // node_chunk) * node_chunk

    rowp = jnp.pad(row, (0, ep - num_edges))[:, None]
    colp = jnp.pad(col, (0, ep - num_edges))[:, None]
    valp = jnp.pad(values.astype(jnp.float32), (0, ep - num_edges))[:, None]
    a_pad = jnp.pad(a, ((0, npad - n_nodes), (0, 0)))
    b_pad = jnp.pad(b, ((0, npad - n_nodes), (0, 0)))

    z = edge_mlp(rowp, colp, valp, a_pad, b_pad, w1v, b1,
                 w2.astype(jnp.bfloat16), b2, w3.reshape(1, h), b3,
                 te=te, node_chunk=node_chunk)[:num_edges]

    # F.normalize(z, dim=0): the divide is fused into kernel 2 (SMEM scalar).
    inv_norm = 1.0 / jnp.maximum(jnp.sqrt(jnp.sum(z * z)), 1e-12)

    # CSR row pointers from the (coalesced => sorted) row index: no scatter.
    starts = jnp.searchsorted(row, jnp.arange(n_nodes + 1, dtype=jnp.int32))
    row_start = starts[:-1].astype(jnp.int32)
    counts = (starts[1:] - starts[:-1]).astype(jnp.int32)

    tn = _pick_tn(dp, n_nodes)
    np_ = ((n_nodes + tn - 1) // tn) * tn

    # Pack CSR rows into the dense (np_, dp) slab with a windowed GATHER: row r
    # is z_flat[row_start[r] : row_start[r]+dp]; lanes >= counts[r] hold the
    # next rows' scores and are masked inside kernel 2.
    # TODO(synk): replace this gather + the final unpack gather with a Pallas
    # pack/unpack kernel driven by scalar-prefetched row_start offsets.
    z_flat = jnp.concatenate([z, jnp.zeros((dp,), jnp.float32)])
    rs_pad = jnp.pad(row_start, (0, np_ - n_nodes))
    zd = z_flat[rs_pad[:, None] + jnp.arange(dp, dtype=jnp.int32)[None, :]]
    cd = jnp.pad(counts.astype(jnp.float32), (0, np_ - n_nodes))[:, None]

    scalars = jnp.stack([1.0 / temperature, inv_norm]).astype(jnp.float32)
    out_dense = row_topk(zd, cd, scalars, k_frac=k_frac, tn=tn)

    # unpack back to the original (coalesced) edge order == torch masked_scores
    pos = jnp.arange(num_edges, dtype=jnp.int32) - row_start[row]
    return out_dense.reshape(-1)[row * dp + pos]

    # TODO(synk): training-mode logistic noise (sample_uniform_noise) is not
    # implemented; this reproduces the training=None (eval) path.


def splearner_forward(params, features, indices, values, n_nodes, temperature,
                      k_frac):
    # dmax is data-dependent (sets the padded dense width) -> computed eagerly;
    # dp is bucketed to the next power of two so similar graphs reuse the same
    # compiled kernel.  Everything else runs under one jit.
    row = jnp.asarray(indices[0])
    starts = jnp.searchsorted(row, jnp.arange(n_nodes + 1, dtype=row.dtype))
    dmax = int(jnp.max(starts[1:] - starts[:-1]))
    dp = 128
    while dp < dmax:
        dp *= 2
    return _splearner_core(params, features, indices, values,
                           jnp.float32(temperature),
                           n_nodes=int(n_nodes), k_frac=float(k_frac), dp=dp)


# ----------------------------------------------------------------------------
def xavier_uniform(key, shape):
    fan_in, fan_out = shape
    a = (6.0 / (fan_in + fan_out)) ** 0.5
    return jax.random.uniform(key, shape, jnp.float32, -a, a)


if __name__ == "__main__":
    key = jax.random.PRNGKey(0)
    kf, kv, k1, k2, k3, k4, k5, k6 = jax.random.split(key, 8)

    # small, deterministic graph: N nodes, row-major (coalesced) edge list
    N, F = 16, 15
    rows_l, cols_l = [], []
    for i in range(N):
        deg = 2 + (i % 5)
        nbrs = sorted({(i + 1 + j) % N for j in range(deg)} | {i})
        for c in nbrs:
            rows_l.append(i)
            cols_l.append(c)
    indices = jnp.asarray([rows_l, cols_l], dtype=jnp.int32)     # [2, E]
    E = indices.shape[1]

    features = jax.random.normal(kf, (N, F), jnp.float32)        # [N, F]
    values = jax.random.uniform(kv, (E,), jnp.float32)           # [E]

    # SpLearner(nlayers=3, in_dim=2F+1, hidden=32, activation=ReLU, k=0.5)
    hidden = 32
    in_dim = 2 * F + 1
    params = (
        xavier_uniform(k1, (in_dim, hidden)),
        jax.random.uniform(k2, (1, hidden), jnp.float32, -0.1, 0.1),
        xavier_uniform(k3, (hidden, hidden)),
        jax.random.uniform(k4, (1, hidden), jnp.float32, -0.1, 0.1),
        xavier_uniform(k5, (hidden, 1)),
        jax.random.uniform(k6, (1, 1), jnp.float32, -0.1, 0.1),
    )

    masked_scores = splearner_forward(
        params, features, indices, values, N, temperature=0.5, k_frac=0.5)
    masked_scores = jax.block_until_ready(masked_scores)

    assert masked_scores.shape == (E,)
    assert bool(jnp.all(jnp.isfinite(masked_scores)))
    assert bool(jnp.any(masked_scores > 0)) and bool(jnp.any(masked_scores == 0))
    print("KERNEL_OK")
</pallas_src>

<mosaic_0001>
module attributes {stable_mosaic.version = 11 : i64} {
  func.func @mlp_kernel(%arg0: i32, %arg1: memref<512x1xi32, #tpu.memory_space<vmem>>, %arg2: memref<512x1xi32, #tpu.memory_space<vmem>>, %arg3: memref<512x1xf32, #tpu.memory_space<vmem>>, %arg4: memref<128x32xbf16, #tpu.memory_space<vmem>>, %arg5: memref<128x32xbf16, #tpu.memory_space<vmem>>, %arg6: memref<1x32xf32, #tpu.memory_space<vmem>>, %arg7: memref<1x32xf32, #tpu.memory_space<vmem>>, %arg8: memref<32x32xbf16, #tpu.memory_space<vmem>>, %arg9: memref<1x32xf32, #tpu.memory_space<vmem>>, %arg10: memref<1x32xf32, #tpu.memory_space<vmem>>, %arg11: memref<1x1xf32, #tpu.memory_space<vmem>>, %arg12: memref<512x1xf32, #tpu.memory_space<vmem>>) attributes {dimension_semantics = [#tpu.dimension_semantics<parallel>], iteration_bounds = array<i64: 1>, scalar_prefetch = 0 : i64, scratch_operands = 0 : i64, tpu.core_type = #tpu.core_type<tc>, window_params = [{transform_indices = @transform_0, window_bounds = array<i64: 512, 1>}, {transform_indices = @transform_1, window_bounds = array<i64: 512, 1>}, {transform_indices = @transform_2, window_bounds = array<i64: 512, 1>}, {pipeline_mode = #tpu.pipeline_mode<synchronous>, transform_indices = @transform_3, window_bounds = array<i64: 128, 32>}, {pipeline_mode = #tpu.pipeline_mode<synchronous>, transform_indices = @transform_4, window_bounds = array<i64: 128, 32>}, {pipeline_mode = #tpu.pipeline_mode<synchronous>, transform_indices = @transform_5, window_bounds = array<i64: 1, 32>}, {pipeline_mode = #tpu.pipeline_mode<synchronous>, transform_indices = @transform_6, window_bounds = array<i64: 1, 32>}, {pipeline_mode = #tpu.pipeline_mode<synchronous>, transform_indices = @transform_7, window_bounds = array<i64: 32, 32>}, {pipeline_mode = #tpu.pipeline_mode<synchronous>, transform_indices = @transform_8, window_bounds = array<i64: 1, 32>}, {pipeline_mode = #tpu.pipeline_mode<synchronous>, transform_indices = @transform_9, window_bounds = array<i64: 1, 32>}, {pipeline_mode = #tpu.pipeline_mode<synchronous>, transform_indices = @transform_10, window_bounds = array<i64: 1, 1>}, {transform_indices = @transform_11, window_bounds = array<i64: 512, 1>}]} {
    %c0 = arith.constant 0 : index
    %c0_0 = arith.constant 0 : index
    %0 = vector.load %arg1[%c0, %c0_0] : memref<512x1xi32, #tpu.memory_space<vmem>>, vector<512x1xi32>
    %c0_1 = arith.constant 0 : index
    %c0_2 = arith.constant 0 : index
    %1 = vector.load %arg2[%c0_1, %c0_2] : memref<512x1xi32, #tpu.memory_space<vmem>>, vector<512x1xi32>
    %cst = arith.constant 0.000000e+00 : f32
    %2 = vector.broadcast %cst : f32 to vector<512x32xf32>
    %c0_i32 = arith.constant 0 : i32
    %c128_i32 = arith.constant 128 : i32
    %3 = arith.muli %c0_i32, %c128_i32 : i32
    %4 = tpu.assume_multiple %3, 128 : i32
    %5 = tpu.iota {dimensions = array<i32: 1>} : vector<512x128xi32>
    %6 = vector.broadcast %4 : i32 to vector<512x128xi32>
    %7 = arith.addi %5, %6 : vector<512x128xi32>
    %8 = vector.broadcast %0 : vector<512x1xi32> to vector<512x128xi32>
    %9 = arith.cmpi eq, %7, %8 : vector<512x128xi32>
    %10 = arith.extui %9 : vector<512x128xi1> to vector<512x128xi32>
    %11 = arith.sitofp %10 : vector<512x128xi32> to vector<512x128xf32>
    %12 = arith.truncf %11 : vector<512x128xf32> to vector<512x128xbf16>
    %13 = vector.broadcast %1 : vector<512x1xi32> to vector<512x128xi32>
    %14 = arith.cmpi eq, %7, %13 : vector<512x128xi32>
    %15 = arith.extui %14 : vector<512x128xi1> to vector<512x128xi32>
    %16 = arith.sitofp %15 : vector<512x128xi32> to vector<512x128xf32>
    %17 = arith.truncf %16 : vector<512x128xf32> to vector<512x128xbf16>
    %18 = arith.index_cast %4 : i32 to index
    %c0_3 = arith.constant 0 : index
    %19 = vector.load %arg4[%18, %c0_3] : memref<128x32xbf16, #tpu.memory_space<vmem>>, vector<128x32xbf16>
    %20 = arith.index_cast %4 : i32 to index
    %c0_4 = arith.constant 0 : index
    %21 = vector.load %arg5[%20, %c0_4] : memref<128x32xbf16, #tpu.memory_space<vmem>>, vector<128x32xbf16>
    %cst_5 = arith.constant dense<0.000000e+00> : vector<512x32xf32>
    %22 = tpu.matmul %12, %19, %cst_5 {dimension_numbers = #tpu.dot_dimension_numbers<[1], [0], [0], [1], [0, 0, 1, 1], [], []>} : vector<512x128xbf16>, vector<128x32xbf16>, vector<512x32xf32> -> vector<512x32xf32>
    %23 = arith.addf %2, %22 : vector<512x32xf32>
    %cst_6 = arith.constant dense<0.000000e+00> : vector<512x32xf32>
    %24 = tpu.matmul %17, %21, %cst_6 {dimension_numbers = #tpu.dot_dimension_numbers<[1], [0], [0], [1], [0, 0, 1, 1], [], []>} : vector<512x128xbf16>, vector<128x32xbf16>, vector<512x32xf32> -> vector<512x32xf32>
    %25 = arith.addf %23, %24 : vector<512x32xf32>
    %c1_i32 = arith.constant 1 : i32
    %c0_7 = arith.constant 0 : index
    %c0_8 = arith.constant 0 : index
    %26 = vector.load %arg3[%c0_7, %c0_8] : memref<512x1xf32, #tpu.memory_space<vmem>>, vector<512x1xf32>
    %c0_9 = arith.constant 0 : index
    %c0_10 = arith.constant 0 : index
    %27 = vector.load %arg6[%c0_9, %c0_10] : memref<1x32xf32, #tpu.memory_space<vmem>>, vector<1x32xf32>
    %28 = vector.broadcast %26 : vector<512x1xf32> to vector<512x32xf32>
    %29 = vector.broadcast %27 : vector<1x32xf32> to vector<512x32xf32>
    %30 = arith.mulf %28, %29 : vector<512x32xf32>
    %31 = arith.addf %25, %30 : vector<512x32xf32>
    %c0_11 = arith.constant 0 : index
    %c0_12 = arith.constant 0 : index
    %32 = vector.load %arg7[%c0_11, %c0_12] : memref<1x32xf32, #tpu.memory_space<vmem>>, vector<1x32xf32>
    %33 = vector.broadcast %32 : vector<1x32xf32> to vector<512x32xf32>
    %34 = arith.addf %31, %33 : vector<512x32xf32>
    %cst_13 = arith.constant 0.000000e+00 : f32
    %35 = vector.broadcast %cst_13 : f32 to vector<512x32xf32>
    %36 = arith.maximumf %34, %35 : vector<512x32xf32>
    %37 = arith.truncf %36 : vector<512x32xf32> to vector<512x32xbf16>
    %c0_14 = arith.constant 0 : index
    %c0_15 = arith.constant 0 : index
    %38 = vector.load %arg8[%c0_14, %c0_15] : memref<32x32xbf16, #tpu.memory_space<vmem>>, vector<32x32xbf16>
    %cst_16 = arith.constant dense<0.000000e+00> : vector<512x32xf32>
    %39 = tpu.matmul %37, %38, %cst_16 {dimension_numbers = #tpu.dot_dimension_numbers<[1], [0], [0], [1], [0, 0, 1, 1], [], []>} : vector<512x32xbf16>, vector<32x32xbf16>, vector<512x32xf32> -> vector<512x32xf32>
    %c0_17 = arith.constant 0 : index
    %c0_18 = arith.constant 0 : index
    %40 = vector.load %arg9[%c0_17, %c0_18] : memref<1x32xf32, #tpu.memory_space<vmem>>, vector<1x32xf32>
    %41 = vector.broadcast %40 : vector<1x32xf32> to vector<512x32xf32>
    %42 = arith.addf %39, %41 : vector<512x32xf32>
    %cst_19 = arith.constant 0.000000e+00 : f32
    %43 = vector.broadcast %cst_19 : f32 to vector<512x32xf32>
    %44 = arith.maximumf %42, %43 : vector<512x32xf32>
    %c0_20 = arith.constant 0 : index
    %c0_21 = arith.constant 0 : index
    %45 = vector.load %arg10[%c0_20, %c0_21] : memref<1x32xf32, #tpu.memory_space<vmem>>, vector<1x32xf32>
    %46 = vector.broadcast %45 : vector<1x32xf32> to vector<512x32xf32>
    %47 = arith.mulf %44, %46 : vector<512x32xf32>
    %cst_22 = arith.constant dense<0.000000e+00> : vector<512xf32>
    %48 = vector.multi_reduction <add>, %47, %cst_22 [1] : vector<512x32xf32> to vector<512xf32>
    %49 = vector.shape_cast %48 : vector<512xf32> to vector<512x1xf32>
    %c0_23 = arith.constant 0 : index
    %c0_24 = arith.constant 0 : index
    %50 = vector.load %arg11[%c0_23, %c0_24] : memref<1x1xf32, #tpu.memory_space<vmem>>, vector<1x1xf32>
    %51 = vector.broadcast %50 : vector<1x1xf32> to vector<512x1xf32>
    %52 = arith.addf %49, %51 : vector<512x1xf32>
    %c0_25 = arith.constant 0 : index
    %c0_26 = arith.constant 0 : index
    %53 = vector.load %arg12[%c0_25, %c0_26] : memref<512x1xf32, #tpu.memory_space<vmem>>, vector<512x1xf32>
    tpu.vector_store %arg12[%c0_25, %c0_26], %52 {strides = array<i32>} : memref<512x1xf32, #tpu.memory_space<vmem>>, vector<512x1xf32>,
    return
  }
  func.func @transform_0(%arg0: i32) -> (i32, i32) {
    %c0_i32 = arith.constant 0 : i32
    %c0_i32_0 = arith.constant 0 : i32
    return %arg0, %c0_i32 : i32, i32
  }
  func.func @transform_1(%arg0: i32) -> (i32, i32) {
    %c0_i32 = arith.constant 0 : i32
    %c0_i32_0 = arith.constant 0 : i32
    return %arg0, %c0_i32 : i32, i32
  }
  func.func @transform_2(%arg0: i32) -> (i32, i32) {
    %c0_i32 = arith.constant 0 : i32
    %c0_i32_0 = arith.constant 0 : i32
    return %arg0, %c0_i32 : i32, i32
  }
  func.func @transform_3(%arg0: i32) -> (i32, i32) {
    %c0_i32 = arith.constant 0 : i32
    %c0_i32_0 = arith.constant 0 : i32
    %c0_i32_1 = arith.constant 0 : i32
    return %c0_i32, %c0_i32_0 : i32, i32
  }
  func.func @transform_4(%arg0: i32) -> (i32, i32) {
    %c0_i32 = arith.constant 0 : i32
    %c0_i32_0 = arith.constant 0 : i32
    %c0_i32_1 = arith.constant 0 : i32
    return %c0_i32, %c0_i32_0 : i32, i32
  }
  func.func @transform_5(%arg0: i32) -> (i32, i32) {
    %c0_i32 = arith.constant 0 : i32
    %c0_i32_0 = arith.constant 0 : i32
    %c0_i32_1 = arith.constant 0 : i32
    return %c0_i32, %c0_i32_0 : i32, i32
  }
  func.func @transform_6(%arg0: i32) -> (i32, i32) {
    %c0_i32 = arith.constant 0 : i32
    %c0_i32_0 = arith.constant 0 : i32
    %c0_i32_1 = arith.constant 0 : i32
    return %c0_i32, %c0_i32_0 : i32, i32
  }
  func.func @transform_7(%arg0: i32) -> (i32, i32) {
    %c0_i32 = arith.constant 0 : i32
    %c0_i32_0 = arith.constant 0 : i32
    %c0_i32_1 = arith.constant 0 : i32
    return %c0_i32, %c0_i32_0 : i32, i32
  }
  func.func @transform_8(%arg0: i32) -> (i32, i32) {
    %c0_i32 = arith.constant 0 : i32
    %c0_i32_0 = arith.constant 0 : i32
    %c0_i32_1 = arith.constant 0 : i32
    return %c0_i32, %c0_i32_0 : i32, i32
  }
  func.func @transform_9(%arg0: i32) -> (i32, i32) {
    %c0_i32 = arith.constant 0 : i32
    %c0_i32_0 = arith.constant 0 : i32
    %c0_i32_1 = arith.constant 0 : i32
    return %c0_i32, %c0_i32_0 : i32, i32
  }
  func.func @transform_10(%arg0: i32) -> (i32, i32) {
    %c0_i32 = arith.constant 0 : i32
    %c0_i32_0 = arith.constant 0 : i32
    %c0_i32_1 = arith.constant 0 : i32
    return %c0_i32, %c0_i32_0 : i32, i32
  }
  func.func @transform_11(%arg0: i32) -> (i32, i32) {
    %c0_i32 = arith.constant 0 : i32
    %c0_i32_0 = arith.constant 0 : i32
    return %arg0, %c0_i32 : i32, i32
  }
}

module attributes {stable_mosaic.version = 11 : i64} {
  func.func @row_topk_kernel(%arg0: i32, %arg1: memref<2xf32, #tpu.memory_space<smem>>, %arg2: memref<16x128xf32, #tpu.memory_space<vmem>>, %arg3: memref<16x1xf32, #tpu.memory_space<vmem>>, %arg4: memref<16x128xf32, #tpu.memory_space<vmem>>) attributes {dimension_semantics = [#tpu.dimension_semantics<parallel>], iteration_bounds = array<i64: 1>, scalar_prefetch = 0 : i64, scratch_operands = 0 : i64, tpu.core_type = #tpu.core_type<tc>, window_params = [{transform_indices = @transform_0, window_bounds = array<i64: 2>}, {transform_indices = @transform_1, window_bounds = array<i64: 16, 128>}, {transform_indices = @transform_2, window_bounds = array<i64: 16, 1>}, {transform_indices = @transform_3, window_bounds = array<i64: 16, 128>}]} {
    %c0 = arith.constant 0 : index
    %0 = memref.load %arg1[%c0] : memref<2xf32, #tpu.memory_space<smem>>
    %c1 = arith.constant 1 : index
    %1 = memref.load %arg1[%c1] : memref<2xf32, #tpu.memory_space<smem>>
    %c0_0 = arith.constant 0 : index
    %c0_1 = arith.constant 0 : index
    %2 = vector.load %arg2[%c0_0, %c0_1] : memref<16x128xf32, #tpu.memory_space<vmem>>, vector<16x128xf32>
    %3 = vector.broadcast %1 : f32 to vector<16x128xf32>
    %4 = arith.mulf %2, %3 : vector<16x128xf32>
    %c0_2 = arith.constant 0 : index
    %c0_3 = arith.constant 0 : index
    %5 = vector.load %arg3[%c0_2, %c0_3] : memref<16x1xf32, #tpu.memory_space<vmem>>, vector<16x1xf32>
    %6 = tpu.iota {dimensions = array<i32: 1>} : vector<16x128xi32>
    %7 = arith.fptosi %5 : vector<16x1xf32> to vector<16x1xi32>
    %8 = vector.broadcast %7 : vector<16x1xi32> to vector<16x128xi32>
    %9 = arith.cmpi slt, %6, %8 : vector<16x128xi32>
    %cst = arith.constant -1.000000e+30 : f32
    %10 = vector.broadcast %cst : f32 to vector<16x128xf32>
    %11 = arith.select %9, %4, %10 : vector<16x128xi1>, vector<16x128xf32>
    %cst_4 = arith.constant dense<0xFF800000> : vector<16xf32>
    %12 = vector.multi_reduction <maximumf>, %11, %cst_4 [1] : vector<16x128xf32> to vector<16xf32>
    %13 = vector.shape_cast %12 : vector<16xf32> to vector<16x1xf32>
    %14 = vector.broadcast %13 : vector<16x1xf32> to vector<16x128xf32>
    %15 = arith.subf %11, %14 : vector<16x128xf32>
    %16 = math.exp %15 : vector<16x128xf32>
    %cst_5 = arith.constant 0.000000e+00 : f32
    %17 = vector.broadcast %cst_5 : f32 to vector<16x128xf32>
    %18 = arith.select %9, %16, %17 : vector<16x128xi1>, vector<16x128xf32>
    %cst_6 = arith.constant dense<0.000000e+00> : vector<16xf32>
    %19 = vector.multi_reduction <add>, %18, %cst_6 [1] : vector<16x128xf32> to vector<16xf32>
    %20 = vector.shape_cast %19 : vector<16xf32> to vector<16x1xf32>
    %cst_7 = arith.constant 0.000000e+00 : f32
    %21 = vector.broadcast %cst_7 : f32 to vector<16x1xf32>
    %22 = arith.cmpf ogt, %20, %21 : vector<16x1xf32>
    %cst_8 = arith.constant 1.000000e+00 : f32
    %23 = vector.broadcast %cst_8 : f32 to vector<16x1xf32>
    %24 = arith.select %22, %20, %23 : vector<16x1xi1>, vector<16x1xf32>
    %25 = tpu.reciprocal %24 {approx = true} : vector<16x1xf32> -> vector<16x1xf32>
    %26 = arith.mulf %24, %25 : vector<16x1xf32>
    %cst_9 = arith.constant 2.000000e+00 : f32
    %27 = vector.broadcast %cst_9 : f32 to vector<16x1xf32>
    %28 = arith.subf %27, %26 : vector<16x1xf32>
    %29 = arith.mulf %25, %28 : vector<16x1xf32>
    %30 = vector.broadcast %29 : vector<16x1xf32> to vector<16x128xf32>
    %31 = arith.mulf %18, %30 : vector<16x128xf32>
    %cst_10 = arith.constant 9.99999993E-9 : f32
    %32 = vector.broadcast %cst_10 : f32 to vector<16x128xf32>
    %33 = arith.addf %31, %32 : vector<16x128xf32>
    %34 = math.log %33 : vector<16x128xf32>
    %35 = vector.broadcast %0 : f32 to vector<16x128xf32>
    %36 = arith.mulf %34, %35 : vector<16x128xf32>
    %37 = arith.negf %36 : vector<16x128xf32>
    %38 = math.exp %37 : vector<16x128xf32>
    %cst_11 = arith.constant 1.000000e+00 : f32
    %39 = vector.broadcast %cst_11 : f32 to vector<16x128xf32>
    %40 = arith.addf %39, %38 : vector<16x128xf32>
    %41 = arith.divf %39, %40 : vector<16x128xf32>
    %cst_12 = arith.constant 0.000000e+00 : f32
    %cst_13 = arith.constant 1.000000e+00 : f32
    %42 = vector.broadcast %cst_12 : f32 to vector<16x128xf32>
    %43 = arith.maximumf %42, %41 : vector<16x128xf32>
    %44 = vector.broadcast %cst_13 : f32 to vector<16x128xf32>
    %45 = arith.minimumf %44, %43 : vector<16x128xf32>
    %cst_14 = arith.constant -1.000000e+30 : f32
    %46 = vector.broadcast %cst_14 : f32 to vector<16x128xf32>
    %47 = arith.select %9, %45, %46 : vector<16x128xi1>, vector<16x128xf32>
    %cst_15 = arith.constant dense<0xFF800000> : vector<16xf32>
    %48 = vector.multi_reduction <maximumf>, %47, %cst_15 [1] : vector<16x128xf32> to vector<16xf32>
    %49 = vector.shape_cast %48 : vector<16xf32> to vector<16x1xf32>
    %50 = vector.broadcast %49 : vector<16x1xf32> to vector<16x128xf32>
    %51 = arith.subf %47, %50 : vector<16x128xf32>
    %52 = math.exp %51 : vector<16x128xf32>
    %cst_16 = arith.constant 0.000000e+00 : f32
    %53 = vector.broadcast %cst_16 : f32 to vector<16x128xf32>
    %54 = arith.select %9, %52, %53 : vector<16x128xi1>, vector<16x128xf32>
    %cst_17 = arith.constant dense<0.000000e+00> : vector<16xf32>
    %55 = vector.multi_reduction <add>, %54, %cst_17 [1] : vector<16x128xf32> to vector<16xf32>
    %56 = vector.shape_cast %55 : vector<16xf32> to vector<16x1xf32>
    %cst_18 = arith.constant 0.000000e+00 : f32
    %57 = vector.broadcast %cst_18 : f32 to vector<16x1xf32>
    %58 = arith.cmpf ogt, %56, %57 : vector<16x1xf32>
    %cst_19 = arith.constant 1.000000e+00 : f32
    %59 = vector.broadcast %cst_19 : f32 to vector<16x1xf32>
    %60 = arith.select %58, %56, %59 : vector<16x1xi1>, vector<16x1xf32>
    %61 = tpu.reciprocal %60 {approx = true} : vector<16x1xf32> -> vector<16x1xf32>
    %62 = arith.mulf %60, %61 : vector<16x1xf32>
    %cst_20 = arith.constant 2.000000e+00 : f32
    %63 = vector.broadcast %cst_20 : f32 to vector<16x1xf32>
    %64 = arith.subf %63, %62 : vector<16x1xf32>
    %65 = arith.mulf %61, %64 : vector<16x1xf32>
    %66 = vector.broadcast %65 : vector<16x1xf32> to vector<16x128xf32>
    %67 = arith.mulf %54, %66 : vector<16x128xf32>
    %cst_21 = arith.constant 5.000000e-01 : f32
    %68 = vector.broadcast %cst_21 : f32 to vector<16x1xf32>
    %69 = arith.mulf %5, %68 : vector<16x1xf32>
    %70 = math.roundeven %69 : vector<16x1xf32>
    %cst_22 = arith.constant 1.000000e+00 : f32
    %71 = vector.broadcast %cst_22 : f32 to vector<16x1xf32>
    %72 = arith.maximumf %70, %71 : vector<16x1xf32>
    %cst_23 = arith.constant 0.000000e+00 : f32
    %73 = vector.broadcast %cst_23 : f32 to vector<16x128xf32>
    %74 = arith.select %9, %67, %73 : vector<16x128xi1>, vector<16x128xf32>
    %75 = tpu.bitcast %74 : vector<16x128xf32> -> vector<16x128xi32>
    %c0_i32 = arith.constant 0 : i32
    %76 = vector.broadcast %c0_i32 : i32 to vector<16x1xi32>
    %c1073741824_i32 = arith.constant 1073741824 : i32
    %c0_i32_24 = arith.constant 0 : i32
    %c31_i32 = arith.constant 31 : i32
    %77 = arith.addi %c0_i32_24, %c31_i32 : i32
    %c1_i32 = arith.constant 1 : i32
    %78:2 = scf.for %arg5 = %c0_i32_24 to %77 step %c1_i32 iter_args(%arg6 = %76, %arg7 = %c1073741824_i32) -> (vector<16x1xi32>, i32)  : i32 {
      %85 = vector.broadcast %arg7 : i32 to vector<16x1xi32>
      %86 = arith.ori %arg6, %85 : vector<16x1xi32>
      %87 = vector.broadcast %86 : vector<16x1xi32> to vector<16x128xi32>
      %88 = arith.cmpi sge, %75, %87 : vector<16x128xi32>
      %89 = arith.andi %9, %88 : vector<16x128xi1>
      %cst_28 = arith.constant 1.000000e+00 : f32
      %cst_29 = arith.constant 0.000000e+00 : f32
      %90 = vector.broadcast %cst_28 : f32 to vector<16x128xf32>
      %91 = vector.broadcast %cst_29 : f32 to vector<16x128xf32>
      %92 = arith.select %89, %90, %91 : vector<16x128xi1>, vector<16x128xf32>
      %cst_30 = arith.constant dense<0.000000e+00> : vector<16xf32>
      %93 = vector.multi_reduction <add>, %92, %cst_30 [1] : vector<16x128xf32> to vector<16xf32>
      %94 = vector.shape_cast %93 : vector<16xf32> to vector<16x1xf32>
      %95 = arith.cmpf oge, %94, %72 : vector<16x1xf32>
      %96 = arith.select %95, %86, %arg6 : vector<16x1xi1>, vector<16x1xi32>
      %c1_i32_31 = arith.constant 1 : i32
      %97 = arith.shrsi %arg7, %c1_i32_31 : i32
      scf.yield %96, %97 : vector<16x1xi32>, i32
    }
    %79 = vector.broadcast %78#0 : vector<16x1xi32> to vector<16x128xi32>
    %80 = arith.cmpi sge, %75, %79 : vector<16x128xi32>
    %81 = arith.andi %9, %80 : vector<16x128xi1>
    %cst_25 = arith.constant 0.000000e+00 : f32
    %82 = vector.broadcast %cst_25 : f32 to vector<16x128xf32>
    %83 = arith.select %81, %67, %82 : vector<16x128xi1>, vector<16x128xf32>
    %c0_26 = arith.constant 0 : index
    %c0_27 = arith.constant 0 : index
    %84 = vector.load %arg4[%c0_26, %c0_27] : memref<16x128xf32, #tpu.memory_space<vmem>>, vector<16x128xf32>
    tpu.vector_store %arg4[%c0_26, %c0_27], %83 {strides = array<i32>} : memref<16x128xf32, #tpu.memory_space<vmem>>, vector<16x128xf32>,
    return
  }
  func.func @transform_0(%arg0: i32) -> i32 {
    %c0_i32 = arith.constant 0 : i32
    %c0_i32_0 = arith.constant 0 : i32
    return %c0_i32 : i32
  }
  func.func @transform_1(%arg0: i32) -> (i32, i32) {
    %c0_i32 = arith.constant 0 : i32
    %c0_i32_0 = arith.constant 0 : i32
    return %arg0, %c0_i32 : i32, i32
  }
  func.func @transform_2(%arg0: i32) -> (i32, i32) {
    %c0_i32 = arith.constant 0 : i32
    %c0_i32_0 = arith.constant 0 : i32
    return %arg0, %c0_i32 : i32, i32
  }
  func.func @transform_3(%arg0: i32) -> (i32, i32) {
    %c0_i32 = arith.constant 0 : i32
    %c0_i32_0 = arith.constant 0 : i32
    return %arg0, %c0_i32 : i32, i32
  }
}

</mosaic_0001>

<llo_original>
// kernel: custom-call
$region0: #{custom-call}
  %s0 = inlined_call_operand.vmem [shape: u32[17], index: 0, kind: output, shape index: {}]

// kernel: _splearner_core.3
$region0: #{_splearner_core.3}
  #allocation0 [shape = 'u32[]', space=smem, size = 0x4, offset = 0x4, fixed_abs, tag = 'smem constant byte address 0x4 - core index']
  #allocation1 [shape = 'u32[144,128]{1,0:T(1,128)}', space=vmem, size = 0x12000, scoped, tag = 'internal scratch']
  %s0 = inlined_call_operand.vmem [shape: f32[2], index: 0, kind: input, shape index: {}]
  %s1 = inlined_call_operand.vmem [shape: f32[16,128], index: 1, kind: input, shape index: {}]
  %s2 = inlined_call_operand.vmem [shape: f32[16,1], index: 2, kind: input, shape index: {}]
  %s3 = inlined_call_operand.vmem [shape: f32[16,128], index: 3, kind: output, shape index: {}]
  %s4 = sld [smem:[#allocation0]]
  $region33: #{_splearner_core.3} parent=0
    _
  %s6 = ssub.s32 1, %s4
  %s7 = scalar_select 0, %s6, %s4
  $region1: #{_splearner_core.3} parent=0
    #allocation2 [shape = 'u8[512]{0}', space=smem, size = 0x200, scoped, tag = 'input window, operand 0, single buffered']
    #allocation3 [shape = 's32[1]{0}', space=sflag, size = 0x4, scoped, tag = 'scoped memory for _splearner_core.3']
    %8 = vsyncpa [#allocation3], 0
    // Predicated region
    $region2: #{_splearner_core.3} parent=1 // pred_check
      _
    $region3: #{_splearner_core.3} parent=1 // pred_check_branch
      %10 = sbr.rel (0) target = $region5
    $region4: #{_splearner_core.3} parent=1 // pred_region
      %s12 = ssub.s32 16, 16
      %13 = vsyncadd [#allocation3], %s12
      %s15 = sshll.u32 %s0, 4
      %s16 = int_to_ptr.vmem [resolvable:$true] %s15
      %18 = dma.vmem_to_smem %s16, 16, [#allocation2], [#allocation3]
    $region5: #{_splearner_core.3} parent=1 // pred_fallthru
      _
    // Predicated region
    $region6: #{_splearner_core.3} parent=1 // pred_check
      _
    $region7: #{_splearner_core.3} parent=1 // pred_check_branch
      %20 = sbr.rel (0) target = $region9
    $region8: #{_splearner_core.3} parent=1 // pred_region
      _
    $region9: #{_splearner_core.3} parent=1 // pred_fallthru
      _
    // Predicated region
    $region10: #{_splearner_core.3} parent=1 // pred_check
      _
    $region11: #{_splearner_core.3} parent=1 // pred_check_branch
      %22 = sbr.rel (0) target = $region13
    $region12: #{_splearner_core.3} parent=1 // pred_region
      _
    $region13: #{_splearner_core.3} parent=1 // pred_fallthru
      _
    // Predicated region
    $region14: #{_splearner_core.3} parent=1 // pred_check
      _
    $region15: #{_splearner_core.3} parent=1 // pred_check_branch
      %24 = sbr.rel (0) target = $region17
    $region16: #{_splearner_core.3} parent=1 // pred_region
      %25 = dma.done [#allocation3], 16
    $region17: #{_splearner_core.3} parent=1 // pred_fallthru
      _
    %26 = sfence
    %s27 = sld [smem:[#allocation2]]
    %s28 = sld [smem:[#allocation2 + $0x1]]
    %v29 = vld [vmem:[%s1] sm:$0xff]
    %v30 = vld [vmem:[%s1 + $0x8] sm:$0xff]
    %v31 = vstv %s28
    %v32 = vmul.f32 %v29, %v31
    %v33 = vmul.f32 %v30, %v31
    %v34 = vld [vmem:[%s2] sm:$0xff]
    %v35 = vld [vmem:[%s2 + $0x8] sm:$0xff]
    %v36 = vlaneseq
    %v37 = vand.u32 %v36, 127
    %v38 = vcvt.f32.s32.to.zero.pseudo %v34
    %v39 = vcvt.f32.s32.to.zero.pseudo %v35
    %40 = vset.pattern.permute.xlu0 0
    %41 = vperm.xlu0 %40, %v38
    %v42 = vpop.permute.xlu0 %41
    %43 = vset.pattern.permute.xlu0 0
    %44 = vperm.xlu0 %43, %v39
    %v45 = vpop.permute.xlu0 %44
    %vm46 = vcmp.lt.s32.totalorder %v37, %v42
    %vm47 = vcmp.lt.s32.totalorder %v37, %v45
    %v48 = vsel %vm46, %v32, -1e+30
    %v49 = vsel %vm47, %v33, -1e+30
    %50 = vmax.xlane.f32.xlu0 %v48
    %v51 = vpop.xlane.xlu0 %50
    %52 = vmax.xlane.f32.xlu0 %v49
    %v53 = vpop.xlane.xlu0 %52
    %v54 = vsub.f32 %v48, %v51
    %v55 = vsub.f32 %v49, %v53
    %v56 = vmul.f32 %v54, 1.442695
    %v57 = vpow.pop %v56
    %v58 = vmul.f32 %v55, 1.442695
    %v59 = vpow.pop %v58
    %v60 = vsel %vm46, %v57, 0.0
    %v61 = vsel %vm47, %v59, 0.0
    %62 = vadd.xlane.f32.xlu0 %v60
    %v63 = vpop.xlane.xlu0 %62
    %64 = vadd.xlane.f32.xlu0 %v61
    %v65 = vpop.xlane.xlu0 %64
    %vm66 = vcmp.gt.f32.partialorder %v63, 0.0
    %vm67 = vcmp.gt.f32.partialorder %v65, 0.0
    %v68 = vsel %vm66, %v63, 1.0
    %v69 = vsel %vm67, %v65, 1.0
    %v70 = vrcp.pop %v68
    %v71 = vrcp.pop %v69
    %v72 = vmul.f32 %v68, %v70
    %v73 = vmul.f32 %v69, %v71
    %v74 = vsub.f32 2.0, %v72
    %v75 = vsub.f32 2.0, %v73
    %v76 = vmul.f32 %v70, %v74
    %v77 = vmul.f32 %v71, %v75
    %v78 = vmul.f32 %v60, %v76
    %v79 = vmul.f32 %v61, %v77
    %v80 = vadd.f32 %v78, 1e-08
    %v81 = vadd.f32 %v79, 1e-08
    %v82 = vlog2.pop %v80
    %v83 = vmul.f32 %v82, 0.6931472
    %v84 = vlog2.pop %v81
    %v85 = vmul.f32 %v84, 0.6931472
    %v86 = vstv %s27
    %v87 = vmul.f32 %v83, %v86
    %v88 = vmul.f32 %v85, %v86
    %v89 = vxor.u32 %v87, 2147483648
    %v90 = vxor.u32 %v88, 2147483648
    %v91 = vmul.f32 %v89, 1.442695
    %v92 = vpow.pop %v91
    %v93 = vmul.f32 %v90, 1.442695
    %v94 = vpow.pop %v93
    %v95 = vadd.f32 %v92, 1.0
    %v96 = vadd.f32 %v94, 1.0
    %v97 = vrcp.pop %v95
    %v98 = vmul.f32 1.0, %v97
    %v99 = vrcp.pop %v96
    %v100 = vmul.f32 1.0, %v99
    %v101 = vmax.f32 %v98, 0.0
    %v102 = vmax.f32 %v100, 0.0
    %v103 = vmin.f32 %v101, 1.0
    %v104 = vmin.f32 %v102, 1.0
    %v105 = vsel %vm46, %v103, -1e+30
    %v106 = vsel %vm47, %v104, -1e+30
    %107 = vmax.xlane.f32.xlu0 %v105
    %v108 = vpop.xlane.xlu0 %107
    %109 = vmax.xlane.f32.xlu0 %v106
    %v110 = vpop.xlane.xlu0 %109
    %v111 = vsub.f32 %v105, %v108
    %v112 = vsub.f32 %v106, %v110
    %v113 = vmul.f32 %v111, 1.442695
    %v114 = vpow.pop %v113
    %v115 = vmul.f32 %v112, 1.442695
    %v116 = vpow.pop %v115
    %v117 = vsel %vm46, %v114, 0.0
    %v118 = vsel %vm47, %v116, 0.0
    %119 = vadd.xlane.f32.xlu0 %v117
    %v120 = vpop.xlane.xlu0 %119
    %121 = vadd.xlane.f32.xlu0 %v118
    %v122 = vpop.xlane.xlu0 %121
    %vm123 = vcmp.gt.f32.partialorder %v120, 0.0
    %vm124 = vcmp.gt.f32.partialorder %v122, 0.0
    %v125 = vsel %vm123, %v120, 1.0
    %v126 = vsel %vm124, %v122, 1.0
    %v127 = vrcp.pop %v125
    %v128 = vrcp.pop %v126
    %v129 = vmul.f32 %v125, %v127
    %v130 = vmul.f32 %v126, %v128
    %v131 = vsub.f32 2.0, %v129
    %v132 = vsub.f32 2.0, %v130
    %v133 = vmul.f32 %v127, %v131
    %v134 = vmul.f32 %v128, %v132
    %v135 = vmul.f32 %v117, %v133
    %v136 = vmul.f32 %v118, %v134
    %v137 = vmul.f32 %v34, 0.5
    %v138 = vmul.f32 %v35, 0.5
    %v139 = vround.ne.pseudo %v137
    %v140 = vround.ne.pseudo %v138
    %v141 = vmax.f32 %v139, 1.0
    %v142 = vmax.f32 %v140, 1.0
    %v143 = vsel %vm46, %v135, 0.0
    %v144 = vsel %vm47, %v136, 0.0
    loop: start=0, step=1, limit=31
    $region18: #{_splearner_core.3} parent=1 // loop_pre_header
      _
    $region19: #{_splearner_core.3} parent=1 // loop_header
      %s148 = sphi 0, %s152
      %p149 = scmp.ge.s32.totalorder %s148, 31
      %v153 = vphi 0, %v177
      %v154 = vphi 0, %v178
      %s155 = sphi 1073741824, %s179
    $region20: #{_splearner_core.3} parent=1 // loop_header_branch
      %151 = sbr.rel (%p149) target = $region24
    $region21: #{_splearner_core.3} parent=1 // loop_body
      %v156 = vstv %s155
      %v157 = vor.u32 %v153, %v156
      %v158 = vor.u32 %v154, %v156
      %159 = vset.pattern.permute.xlu0 0
      %160 = vperm.xlu0 %159, %v157
      %v161 = vpop.permute.xlu0 %160
      %162 = vset.pattern.permute.xlu0 0
      %163 = vperm.xlu0 %162, %v158
      %v164 = vpop.permute.xlu0 %163
      %vm165 = vcmp.ge.s32.totalorder %v143, %v161
      %vm166 = vcmp.ge.s32.totalorder %v144, %v164
      %vm167 = vmand %vm46, %vm165
      %vm168 = vmand %vm47, %vm166
      %v169 = vsel %vm167, 1.0, 0.0
      %v170 = vsel %vm168, 1.0, 0.0
      %171 = vadd.xlane.f32.xlu0 %v169
      %v172 = vpop.xlane.xlu0 %171
      %173 = vadd.xlane.f32.xlu0 %v170
      %v174 = vpop.xlane.xlu0 %173
      %vm175 = vcmp.ge.f32.partialorder %v172, %v141
      %vm176 = vcmp.ge.f32.partialorder %v174, %v142
      %v177 = vsel %vm175, %v157, %v153
      %v178 = vsel %vm176, %v158, %v154
      %s179 = sshra.s32 %s155, 1
    $region22: #{_splearner_core.3} parent=1 // loop_footer
      %s152 = sadd.s32 1, %s148
    $region23: #{_splearner_core.3} parent=1 // loop_footer_branch
      %147 = sbr.rel target = $region19
    $region24: #{_splearner_core.3} parent=1 // loop_exit
      _
    %180 = vset.pattern.permute.xlu0 0
    %181 = vperm.xlu0 %180, %v153
    %v182 = vpop.permute.xlu0 %181
    %183 = vset.pattern.permute.xlu0 0
    %184 = vperm.xlu0 %183, %v154
    %v185 = vpop.permute.xlu0 %184
    %vm186 = vcmp.ge.s32.totalorder %v143, %v182
    %vm187 = vcmp.ge.s32.totalorder %v144, %v185
    %vm188 = vmand %vm46, %vm186
    %vm189 = vmand %vm47, %vm187
    %v190 = vsel %vm188, %v135, 0.0
    %v191 = vsel %vm189, %v136, 0.0
    %192 = vst [vmem:[%s3] sm:$0xff] %v190
    %193 = vst [vmem:[%s3 + $0x8] sm:$0xff] %v191
    // Predicated region
    $region25: #{_splearner_core.3} parent=1 // pred_check
      _
    $region26: #{_splearner_core.3} parent=1 // pred_check_branch
      %195 = sbr.rel (0) target = $region28
    $region27: #{_splearner_core.3} parent=1 // pred_region
      _
    $region28: #{_splearner_core.3} parent=1 // pred_fallthru
      _
    // Predicated region
    $region29: #{_splearner_core.3} parent=1 // pred_check
      _
    $region30: #{_splearner_core.3} parent=1 // pred_check_branch
      %197 = sbr.rel (0) target = $region32
    $region31: #{_splearner_core.3} parent=1 // pred_region
      _
    $region32: #{_splearner_core.3} parent=1 // pred_fallthru
      _
    %198 = vsyncpa [#allocation3], 1

// kernel: _splearner_core.2
$region0: #{_splearner_core.2}
  #allocation0 [shape = 'u32[]', space=smem, size = 0x4, offset = 0x4, fixed_abs, tag = 'smem constant byte address 0x4 - core index']
  #allocation1 [shape = 'u32[144,128]{1,0:T(1,128)}', space=vmem, size = 0x12000, scoped, tag = 'internal scratch']
  #allocation2 [shape = 'f32[1,1]{1,0:T(1,128)S(1)}', space=vmem, size = 0x200, scoped, tag = 'scoped memory for _splearner_core.2']
  %s0 = inlined_call_operand.vmem [shape: s32[512,1], index: 0, kind: input, shape index: {}]
  %s1 = inlined_call_operand.vmem [shape: s32[512,1], index: 1, kind: input, shape index: {}]
  %s2 = inlined_call_operand.vmem [shape: f32[512,1], index: 2, kind: input, shape index: {}]
  %s3 = inlined_call_operand.vmem [shape: bf16[128,32], index: 3, kind: input, shape index: {}]
  %s4 = inlined_call_operand.vmem [shape: bf16[128,32], index: 4, kind: input, shape index: {}]
  %s5 = inlined_call_operand.vmem [shape: f32[1,32], index: 5, kind: input, shape index: {}]
  %s6 = inlined_call_operand.vmem [shape: f32[1,32], index: 6, kind: input, shape index: {}]
  %s7 = inlined_call_operand.vmem [shape: bf16[32,32], index: 7, kind: input, shape index: {}]
  %s8 = inlined_call_operand.vmem [shape: f32[1,32], index: 8, kind: input, shape index: {}]
  %s9 = inlined_call_operand.vmem [shape: f32[1,32], index: 9, kind: input, shape index: {}]
  %s10 = inlined_call_operand.<no memory space> [shape: f32[1,1], index: 10, kind: input, shape index: {}]
  %s11 = inlined_call_operand.vmem [shape: f32[512,1], index: 11, kind: output, shape index: {}]
  %s12 = sld [smem:[#allocation0]]
  $region54: #{_splearner_core.2} parent=0
    _
  %s14 = ssub.s32 1, %s12
  %s15 = scalar_select 0, %s14, %s12
  %v16 = vstv %s10
  %17 = vst [vmem:[#allocation2] sm:$0x1] %v16
  // Predicated region
  $region2: #{_splearner_core.2} parent=0 // pred_check
    _
  $region3: #{_splearner_core.2} parent=0 // pred_check_branch
    %19 = sbr.rel (0) target = $region5
  $region4: #{_splearner_core.2} parent=0 // pred_region
    _
  $region5: #{_splearner_core.2} parent=0 // pred_fallthru
    _
  // Predicated region
  $region6: #{_splearner_core.2} parent=0 // pred_check
    _
  $region7: #{_splearner_core.2} parent=0 // pred_check_branch
    %21 = sbr.rel (0) target = $region9
  $region8: #{_splearner_core.2} parent=0 // pred_region
    _
  $region9: #{_splearner_core.2} parent=0 // pred_fallthru
    _
  // Predicated region
  $region10: #{_splearner_core.2} parent=0 // pred_check
    _
  $region11: #{_splearner_core.2} parent=0 // pred_check_branch
    %23 = sbr.rel (0) target = $region13
  $region12: #{_splearner_core.2} parent=0 // pred_region
    _
  $region13: #{_splearner_core.2} parent=0 // pred_fallthru
    _
  // Predicated region
  $region14: #{_splearner_core.2} parent=0 // pred_check
    _
  $region15: #{_splearner_core.2} parent=0 // pred_check_branch
    %25 = sbr.rel (0) target = $region17
  $region16: #{_splearner_core.2} parent=0 // pred_region
    _
  $region17: #{_splearner_core.2} parent=0 // pred_fallthru
    _
  // Predicated region
  $region18: #{_splearner_core.2} parent=0 // pred_check
    _
  $region19: #{_splearner_core.2} parent=0 // pred_check_branch
    %27 = sbr.rel (0) target = $region21
  $region20: #{_splearner_core.2} parent=0 // pred_region
    _
  $region21: #{_splearner_core.2} parent=0 // pred_fallthru
    _
  // Predicated region
  $region22: #{_splearner_core.2} parent=0 // pred_check
    _
  $region23: #{_splearner_core.2} parent=0 // pred_check_branch
    %29 = sbr.rel (0) target = $region25
  $region24: #{_splearner_core.2} parent=0 // pred_region
    _
  $region25: #{_splearner_core.2} parent=0 // pred_fallthru
    _
  // Predicated region
  $region26: #{_splearner_core.2} parent=0 // pred_check
    _
  $region27: #{_splearner_core.2} parent=0 // pred_check_branch
    %31 = sbr.rel (0) target = $region29
  $region28: #{_splearner_core.2} parent=0 // pred_region
    _
  $region29: #{_splearner_core.2} parent=0 // pred_fallthru
    _
  // Predicated region
  $region30: #{_splearner_core.2} parent=0 // pred_check
    _
  $region31: #{_splearner_core.2} parent=0 // pred_check_branch
    %33 = sbr.rel (0) target = $region33
  $region32: #{_splearner_core.2} parent=0 // pred_region
    _
  $region33: #{_splearner_core.2} parent=0 // pred_fallthru
    _
  // Predicated region
  $region34: #{_splearner_core.2} parent=0 // pred_check
    _
  $region35: #{_splearner_core.2} parent=0 // pred_check_branch
    %35 = sbr.rel (0) target = $region37
  $region36: #{_splearner_core.2} parent=0 // pred_region
    _
  $region37: #{_splearner_core.2} parent=0 // pred_fallthru
    _
  // Predicated region
  $region38: #{_splearner_core.2} parent=0 // pred_check
    _
  $region39: #{_splearner_core.2} parent=0 // pred_check_branch
    %37 = sbr.rel (0) target = $region41
  $region40: #{_splearner_core.2} parent=0 // pred_region
    _
  $region41: #{_splearner_core.2} parent=0 // pred_fallthru
    _
  // Predicated region
  $region42: #{_splearner_core.2} parent=0 // pred_check
    _
  $region43: #{_splearner_core.2} parent=0 // pred_check_branch
    %39 = sbr.rel (0) target = $region45
  $region44: #{_splearner_core.2} parent=0 // pred_region
    _
  $region45: #{_splearner_core.2} parent=0 // pred_fallthru
    _
  %v41 = vld [vmem:[%s0] sm:$0xff]
  %v42 = vld [vmem:[%s0 + $0x8] sm:$0xff]
  %v43 = vld [vmem:[%s0 + $0x10] sm:$0xff]
  %v44 = vld [vmem:[%s0 + $0x18] sm:$0xff]
  %v45 = vld [vmem:[%s0 + $0x20] sm:$0xff]
  %v46 = vld [vmem:[%s0 + $0x28] sm:$0xff]
  %v47 = vld [vmem:[%s0 + $0x30] sm:$0xff]
  %v48 = vld [vmem:[%s0 + $0x38] sm:$0xff]
  %v49 = vld [vmem:[%s0 + $0x40] sm:$0xff]
  %v50 = vld [vmem:[%s0 + $0x48] sm:$0xff]
  %v51 = vld [vmem:[%s0 + $0x50] sm:$0xff]
  %v52 = vld [vmem:[%s0 + $0x58] sm:$0xff]
  %v53 = vld [vmem:[%s0 + $0x60] sm:$0xff]
  %v54 = vld [vmem:[%s0 + $0x68] sm:$0xff]
  %v55 = vld [vmem:[%s0 + $0x70] sm:$0xff]
  %v56 = vld [vmem:[%s0 + $0x78] sm:$0xff]
  %v57 = vld [vmem:[%s0 + $0x80] sm:$0xff]
  %v58 = vld [vmem:[%s0 + $0x88] sm:$0xff]
  %v59 = vld [vmem:[%s0 + $0x90] sm:$0xff]
  %v60 = vld [vmem:[%s0 + $0x98] sm:$0xff]
  %v61 = vld [vmem:[%s0 + $0xa0] sm:$0xff]
  %v62 = vld [vmem:[%s0 + $0xa8] sm:$0xff]
  %v63 = vld [vmem:[%s0 + $0xb0] sm:$0xff]
  %v64 = vld [vmem:[%s0 + $0xb8] sm:$0xff]
  %v65 = vld [vmem:[%s0 + $0xc0] sm:$0xff]
  %v66 = vld [vmem:[%s0 + $0xc8] sm:$0xff]
  %v67 = vld [vmem:[%s0 + $0xd0] sm:$0xff]
  %v68 = vld [vmem:[%s0 + $0xd8] sm:$0xff]
  %v69 = vld [vmem:[%s0 + $0xe0] sm:$0xff]
  %v70 = vld [vmem:[%s0 + $0xe8] sm:$0xff]
  %v71 = vld [vmem:[%s0 + $0xf0] sm:$0xff]
  %v72 = vld [vmem:[%s0 + $0xf8] sm:$0xff]
  %v73 = vld [vmem:[%s0 + $0x100] sm:$0xff]
  %v74 = vld [vmem:[%s0 + $0x108] sm:$0xff]
  %v75 = vld [vmem:[%s0 + $0x110] sm:$0xff]
  %v76 = vld [vmem:[%s0 + $0x118] sm:$0xff]
  %v77 = vld [vmem:[%s0 + $0x120] sm:$0xff]
  %v78 = vld [vmem:[%s0 + $0x128] sm:$0xff]
  %v79 = vld [vmem:[%s0 + $0x130] sm:$0xff]
  %v80 = vld [vmem:[%s0 + $0x138] sm:$0xff]
  %v81 = vld [vmem:[%s0 + $0x140] sm:$0xff]
  %v82 = vld [vmem:[%s0 + $0x148] sm:$0xff]
  %v83 = vld [vmem:[%s0 + $0x150] sm:$0xff]
  %v84 = vld [vmem:[%s0 + $0x158] sm:$0xff]
  %v85 = vld [vmem:[%s0 + $0x160] sm:$0xff]
  %v86 = vld [vmem:[%s0 + $0x168] sm:$0xff]
  %v87 = vld [vmem:[%s0 + $0x170] sm:$0xff]
  %v88 = vld [vmem:[%s0 + $0x178] sm:$0xff]
  %v89 = vld [vmem:[%s0 + $0x180] sm:$0xff]
  %v90 = vld [vmem:[%s0 + $0x188] sm:$0xff]
  %v91 = vld [vmem:[%s0 + $0x190] sm:$0xff]
  %v92 = vld [vmem:[%s0 + $0x198] sm:$0xff]
  %v93 = vld [vmem:[%s0 + $0x1a0] sm:$0xff]
  %v94 = vld [vmem:[%s0 + $0x1a8] sm:$0xff]
  %v95 = vld [vmem:[%s0 + $0x1b0] sm:$0xff]
  %v96 = vld [vmem:[%s0 + $0x1b8] sm:$0xff]
  %v97 = vld [vmem:[%s0 + $0x1c0] sm:$0xff]
  %v98 = vld [vmem:[%s0 + $0x1c8] sm:$0xff]
  %v99 = vld [vmem:[%s0 + $0x1d0] sm:$0xff]
  %v100 = vld [vmem:[%s0 + $0x1d8] sm:$0xff]
  %v101 = vld [vmem:[%s0 + $0x1e0] sm:$0xff]
  %v102 = vld [vmem:[%s0 + $0x1e8] sm:$0xff]
  %v103 = vld [vmem:[%s0 + $0x1f0] sm:$0xff]
  %v104 = vld [vmem:[%s0 + $0x1f8] sm:$0xff]
  %v105 = vld [vmem:[%s1] sm:$0xff]
  %v106 = vld [vmem:[%s1 + $0x8] sm:$0xff]
  %v107 = vld [vmem:[%s1 + $0x10] sm:$0xff]
  %v108 = vld [vmem:[%s1 + $0x18] sm:$0xff]
  %v109 = vld [vmem:[%s1 + $0x20] sm:$0xff]
  %v110 = vld [vmem:[%s1 + $0x28] sm:$0xff]
  %v111 = vld [vmem:[%s1 + $0x30] sm:$0xff]
  %v112 = vld [vmem:[%s1 + $0x38] sm:$0xff]
  %v113 = vld [vmem:[%s1 + $0x40] sm:$0xff]
  %v114 = vld [vmem:[%s1 + $0x48] sm:$0xff]
  %v115 = vld [vmem:[%s1 + $0x50] sm:$0xff]
  %v116 = vld [vmem:[%s1 + $0x58] sm:$0xff]
  %v117 = vld [vmem:[%s1 + $0x60] sm:$0xff]
  %v118 = vld [vmem:[%s1 + $0x68] sm:$0xff]
  %v119 = vld [vmem:[%s1 + $0x70] sm:$0xff]
  %v120 = vld [vmem:[%s1 + $0x78] sm:$0xff]
  %v121 = vld [vmem:[%s1 + $0x80] sm:$0xff]
  %v122 = vld [vmem:[%s1 + $0x88] sm:$0xff]
  %v123 = vld [vmem:[%s1 + $0x90] sm:$0xff]
  %v124 = vld [vmem:[%s1 + $0x98] sm:$0xff]
  %v125 = vld [vmem:[%s1 + $0xa0] sm:$0xff]
  %v126 = vld [vmem:[%s1 + $0xa8] sm:$0xff]
  %v127 = vld [vmem:[%s1 + $0xb0] sm:$0xff]
  %v128 = vld [vmem:[%s1 + $0xb8] sm:$0xff]
  %v129 = vld [vmem:[%s1 + $0xc0] sm:$0xff]
  %v130 = vld [vmem:[%s1 + $0xc8] sm:$0xff]
  %v131 = vld [vmem:[%s1 + $0xd0] sm:$0xff]
  %v132 = vld [vmem:[%s1 + $0xd8] sm:$0xff]
  %v133 = vld [vmem:[%s1 + $0xe0] sm:$0xff]
  %v134 = vld [vmem:[%s1 + $0xe8] sm:$0xff]
  %v135 = vld [vmem:[%s1 + $0xf0] sm:$0xff]
  %v136 = vld [vmem:[%s1 + $0xf8] sm:$0xff]
  %v137 = vld [vmem:[%s1 + $0x100] sm:$0xff]
  %v138 = vld [vmem:[%s1 + $0x108] sm:$0xff]
  %v139 = vld [vmem:[%s1 + $0x110] sm:$0xff]
  %v140 = vld [vmem:[%s1 + $0x118] sm:$0xff]
  %v141 = vld [vmem:[%s1 + $0x120] sm:$0xff]
  %v142 = vld [vmem:[%s1 + $0x128] sm:$0xff]
  %v143 = vld [vmem:[%s1 + $0x130] sm:$0xff]
  %v144 = vld [vmem:[%s1 + $0x138] sm:$0xff]
  %v145 = vld [vmem:[%s1 + $0x140] sm:$0xff]
  %v146 = vld [vmem:[%s1 + $0x148] sm:$0xff]
  %v147 = vld [vmem:[%s1 + $0x150] sm:$0xff]
  %v148 = vld [vmem:[%s1 + $0x158] sm:$0xff]
  %v149 = vld [vmem:[%s1 + $0x160] sm:$0xff]
  %v150 = vld [vmem:[%s1 + $0x168] sm:$0xff]
  %v151 = vld [vmem:[%s1 + $0x170] sm:$0xff]
  %v152 = vld [vmem:[%s1 + $0x178] sm:$0xff]
  %v153 = vld [vmem:[%s1 + $0x180] sm:$0xff]
  %v154 = vld [vmem:[%s1 + $0x188] sm:$0xff]
  %v155 = vld [vmem:[%s1 + $0x190] sm:$0xff]
  %v156 = vld [vmem:[%s1 + $0x198] sm:$0xff]
  %v157 = vld [vmem:[%s1 + $0x1a0] sm:$0xff]
  %v158 = vld [vmem:[%s1 + $0x1a8] sm:$0xff]
  %v159 = vld [vmem:[%s1 + $0x1b0] sm:$0xff]
  %v160 = vld [vmem:[%s1 + $0x1b8] sm:$0xff]
  %v161 = vld [vmem:[%s1 + $0x1c0] sm:$0xff]
  %v162 = vld [vmem:[%s1 + $0x1c8] sm:$0xff]
  %v163 = vld [vmem:[%s1 + $0x1d0] sm:$0xff]
  %v164 = vld [vmem:[%s1 + $0x1d8] sm:$0xff]
  %v165 = vld [vmem:[%s1 + $0x1e0] sm:$0xff]
  %v166 = vld [vmem:[%s1 + $0x1e8] sm:$0xff]
  %v167 = vld [vmem:[%s1 + $0x1f0] sm:$0xff]
  %v168 = vld [vmem:[%s1 + $0x1f8] sm:$0xff]
  %v169 = vlaneseq
  %v170 = vand.u32 %v169, 127
  %v171 = vstv 0
  %v172 = vadd.s32 %v170, %v171
  %173 = vset.pattern.permute.xlu0 0
  %174 = vperm.xlu0 %173, %v41
  %v175 = vpop.permute.xlu0 %174
  %176 = vset.pattern.permute.xlu0 0
  %177 = vperm.xlu0 %176, %v42
  %v178 = vpop.permute.xlu0 %177
  %179 = vset.pattern.permute.xlu0 0
  %180 = vperm.xlu0 %179, %v43
  %v181 = vpop.permute.xlu0 %180
  %182 = vset.pattern.permute.xlu0 0
  %183 = vperm.xlu0 %182, %v44
  %v184 = vpop.permute.xlu0 %183
  %185 = vset.pattern.permute.xlu0 0
  %186 = vperm.xlu0 %185, %v45
  %v187 = vpop.permute.xlu0 %186
  %188 = vset.pattern.permute.xlu0 0
  %189 = vperm.xlu0 %188, %v46
  %v190 = vpop.permute.xlu0 %189
  %191 = vset.pattern.permute.xlu0 0
  %192 = vperm.xlu0 %191, %v47
  %v193 = vpop.permute.xlu0 %192
  %194 = vset.pattern.permute.xlu0 0
  %195 = vperm.xlu0 %194, %v48
  %v196 = vpop.permute.xlu0 %195
  %197 = vset.pattern.permute.xlu0 0
  %198 = vperm.xlu0 %197, %v49
  %v199 = vpop.permute.xlu0 %198
  %200 = vset.pattern.permute.xlu0 0
  %201 = vperm.xlu0 %200, %v50
  %v202 = vpop.permute.xlu0 %201
  %203 = vset.pattern.permute.xlu0 0
  %204 = vperm.xlu0 %203, %v51
  %v205 = vpop.permute.xlu0 %204
  %206 = vset.pattern.permute.xlu0 0
  %207 = vperm.xlu0 %206, %v52
  %v208 = vpop.permute.xlu0 %207
  %209 = vset.pattern.permute.xlu0 0
  %210 = vperm.xlu0 %209, %v53
  %v211 = vpop.permute.xlu0 %210
  %212 = vset.pattern.permute.xlu0 0
  %213 = vperm.xlu0 %212, %v54
  %v214 = vpop.permute.xlu0 %213
  %215 = vset.pattern.permute.xlu0 0
  %216 = vperm.xlu0 %215, %v55
  %v217 = vpop.permute.xlu0 %216
  %218 = vset.pattern.permute.xlu0 0
  %219 = vperm.xlu0 %218, %v56
  %v220 = vpop.permute.xlu0 %219
  %221 = vset.pattern.permute.xlu0 0
  %222 = vperm.xlu0 %221, %v57
  %v223 = vpop.permute.xlu0 %222
  %224 = vset.pattern.permute.xlu0 0
  %225 = vperm.xlu0 %224, %v58
  %v226 = vpop.permute.xlu0 %225
  %227 = vset.pattern.permute.xlu0 0
  %228 = vperm.xlu0 %227, %v59
  %v229 = vpop.permute.xlu0 %228
  %230 = vset.pattern.permute.xlu0 0
  %231 = vperm.xlu0 %230, %v60
  %v232 = vpop.permute.xlu0 %231
  %233 = vset.pattern.permute.xlu0 0
  %234 = vperm.xlu0 %233, %v61
  %v235 = vpop.permute.xlu0 %234
  %236 = vset.pattern.permute.xlu0 0
  %237 = vperm.xlu0 %236, %v62
  %v238 = vpop.permute.xlu0 %237
  %239 = vset.pattern.permute.xlu0 0
  %240 = vperm.xlu0 %239, %v63
  %v241 = vpop.permute.xlu0 %240
  %242 = vset.pattern.permute.xlu0 0
  %243 = vperm.xlu0 %242, %v64
  %v244 = vpop.permute.xlu0 %243
  %245 = vset.pattern.permute.xlu0 0
  %246 = vperm.xlu0 %245, %v65
  %v247 = vpop.permute.xlu0 %246
  %248 = vset.pattern.permute.xlu0 0
  %249 = vperm.xlu0 %248, %v66
  %v250 = vpop.permute.xlu0 %249
  %251 = vset.pattern.permute.xlu0 0
  %252 = vperm.xlu0 %251, %v67
  %v253 = vpop.permute.xlu0 %252
  %254 = vset.pattern.permute.xlu0 0
  %255 = vperm.xlu0 %254, %v68
  %v256 = vpop.permute.xlu0 %255
  %257 = vset.pattern.permute.xlu0 0
  %258 = vperm.xlu0 %257, %v69
  %v259 = vpop.permute.xlu0 %258
  %260 = vset.pattern.permute.xlu0 0
  %261 = vperm.xlu0 %260, %v70
  %v262 = vpop.permute.xlu0 %261
  %263 = vset.pattern.permute.xlu0 0
  %264 = vperm.xlu0 %263, %v71
  %v265 = vpop.permute.xlu0 %264
  %266 = vset.pattern.permute.xlu0 0
  %267 = vperm.xlu0 %266, %v72
  %v268 = vpop.permute.xlu0 %267
  %269 = vset.pattern.permute.xlu0 0
  %270 = vperm.xlu0 %269, %v73
  %v271 = vpop.permute.xlu0 %270
  %272 = vset.pattern.permute.xlu0 0
  %273 = vperm.xlu0 %272, %v74
  %v274 = vpop.permute.xlu0 %273
  %275 = vset.pattern.permute.xlu0 0
  %276 = vperm.xlu0 %275, %v75
  %v277 = vpop.permute.xlu0 %276
  %278 = vset.pattern.permute.xlu0 0
  %279 = vperm.xlu0 %278, %v76
  %v280 = vpop.permute.xlu0 %279
  %281 = vset.pattern.permute.xlu0 0
  %282 = vperm.xlu0 %281, %v77
  %v283 = vpop.permute.xlu0 %282
  %284 = vset.pattern.permute.xlu0 0
  %285 = vperm.xlu0 %284, %v78
  %v286 = vpop.permute.xlu0 %285
  %287 = vset.pattern.permute.xlu0 0
  %288 = vperm.xlu0 %287, %v79
  %v289 = vpop.permute.xlu0 %288
  %290 = vset.pattern.permute.xlu0 0
  %291 = vperm.xlu0 %290, %v80
  %v292 = vpop.permute.xlu0 %291
  %293 = vset.pattern.permute.xlu0 0
  %294 = vperm.xlu0 %293, %v81
  %v295 = vpop.permute.xlu0 %294
  %296 = vset.pattern.permute.xlu0 0
  %297 = vperm.xlu0 %296, %v82
  %v298 = vpop.permute.xlu0 %297
  %299 = vset.pattern.permute.xlu0 0
  %300 = vperm.xlu0 %299, %v83
  %v301 = vpop.permute.xlu0 %300
  %302 = vset.pattern.permute.xlu0 0
  %303 = vperm.xlu0 %302, %v84
  %v304 = vpop.permute.xlu0 %303
  %305 = vset.pattern.permute.xlu0 0
  %306 = vperm.xlu0 %305, %v85
  %v307 = vpop.permute.xlu0 %306
  %308 = vset.pattern.permute.xlu0 0
  %309 = vperm.xlu0 %308, %v86
  %v310 = vpop.permute.xlu0 %309
  %311 = vset.pattern.permute.xlu0 0
  %312 = vperm.xlu0 %311, %v87
  %v313 = vpop.permute.xlu0 %312
  %314 = vset.pattern.permute.xlu0 0
  %315 = vperm.xlu0 %314, %v88
  %v316 = vpop.permute.xlu0 %315
  %317 = vset.pattern.permute.xlu0 0
  %318 = vperm.xlu0 %317, %v89
  %v319 = vpop.permute.xlu0 %318
  %320 = vset.pattern.permute.xlu0 0
  %321 = vperm.xlu0 %320, %v90
  %v322 = vpop.permute.xlu0 %321
  %323 = vset.pattern.permute.xlu0 0
  %324 = vperm.xlu0 %323, %v91
  %v325 = vpop.permute.xlu0 %324
  %326 = vset.pattern.permute.xlu0 0
  %327 = vperm.xlu0 %326, %v92
  %v328 = vpop.permute.xlu0 %327
  %329 = vset.pattern.permute.xlu0 0
  %330 = vperm.xlu0 %329, %v93
  %v331 = vpop.permute.xlu0 %330
  %332 = vset.pattern.permute.xlu0 0
  %333 = vperm.xlu0 %332, %v94
  %v334 = vpop.permute.xlu0 %333
  %335 = vset.pattern.permute.xlu0 0
  %336 = vperm.xlu0 %335, %v95
  %v337 = vpop.permute.xlu0 %336
  %338 = vset.pattern.permute.xlu0 0
  %339 = vperm.xlu0 %338, %v96
  %v340 = vpop.permute.xlu0 %339
  %341 = vset.pattern.permute.xlu0 0
  %342 = vperm.xlu0 %341, %v97
  %v343 = vpop.permute.xlu0 %342
  %344 = vset.pattern.permute.xlu0 0
  %345 = vperm.xlu0 %344, %v98
  %v346 = vpop.permute.xlu0 %345
  %347 = vset.pattern.permute.xlu0 0
  %348 = vperm.xlu0 %347, %v99
  %v349 = vpop.permute.xlu0 %348
  %350 = vset.pattern.permute.xlu0 0
  %351 = vperm.xlu0 %350, %v100
  %v352 = vpop.permute.xlu0 %351
  %353 = vset.pattern.permute.xlu0 0
  %354 = vperm.xlu0 %353, %v101
  %v355 = vpop.permute.xlu0 %354
  %356 = vset.pattern.permute.xlu0 0
  %357 = vperm.xlu0 %356, %v102
  %v358 = vpop.permute.xlu0 %357
  %359 = vset.pattern.permute.xlu0 0
  %360 = vperm.xlu0 %359, %v103
  %v361 = vpop.permute.xlu0 %360
  %362 = vset.pattern.permute.xlu0 0
  %363 = vperm.xlu0 %362, %v104
  %v364 = vpop.permute.xlu0 %363
  %vm365 = vcmp.eq.s32.totalorder %v172, %v175
  %vm366 = vcmp.eq.s32.totalorder %v172, %v178
  %vm367 = vcmp.eq.s32.totalorder %v172, %v181
  %vm368 = vcmp.eq.s32.totalorder %v172, %v184
  %vm369 = vcmp.eq.s32.totalorder %v172, %v187
  %vm370 = vcmp.eq.s32.totalorder %v172, %v190
  %vm371 = vcmp.eq.s32.totalorder %v172, %v193
  %vm372 = vcmp.eq.s32.totalorder %v172, %v196
  %vm373 = vcmp.eq.s32.totalorder %v172, %v199
  %vm374 = vcmp.eq.s32.totalorder %v172, %v202
  %vm375 = vcmp.eq.s32.totalorder %v172, %v205
  %vm376 = vcmp.eq.s32.totalorder %v172, %v208
  %vm377 = vcmp.eq.s32.totalorder %v172, %v211
  %vm378 = vcmp.eq.s32.totalorder %v172, %v214
  %vm379 = vcmp.eq.s32.totalorder %v172, %v217
  %vm380 = vcmp.eq.s32.totalorder %v172, %v220
  %vm381 = vcmp.eq.s32.totalorder %v172, %v223
  %vm382 = vcmp.eq.s32.totalorder %v172, %v226
  %vm383 = vcmp.eq.s32.totalorder %v172, %v229
  %vm384 = vcmp.eq.s32.totalorder %v172, %v232
  %vm385 = vcmp.eq.s32.totalorder %v172, %v235
  %vm386 = vcmp.eq.s32.totalorder %v172, %v238
  %vm387 = vcmp.eq.s32.totalorder %v172, %v241
  %vm388 = vcmp.eq.s32.totalorder %v172, %v244
  %vm389 = vcmp.eq.s32.totalorder %v172, %v247
  %vm390 = vcmp.eq.s32.totalorder %v172, %v250
  %vm391 = vcmp.eq.s32.totalorder %v172, %v253
  %vm392 = vcmp.eq.s32.totalorder %v172, %v256
  %vm393 = vcmp.eq.s32.totalorder %v172, %v259
  %vm394 = vcmp.eq.s32.totalorder %v172, %v262
  %vm395 = vcmp.eq.s32.totalorder %v172, %v265
  %vm396 = vcmp.eq.s32.totalorder %v172, %v268
  %vm397 = vcmp.eq.s32.totalorder %v172, %v271
  %vm398 = vcmp.eq.s32.totalorder %v172, %v274
  %vm399 = vcmp.eq.s32.totalorder %v172, %v277
  %vm400 = vcmp.eq.s32.totalorder %v172, %v280
  %vm401 = vcmp.eq.s32.totalorder %v172, %v283
  %vm402 = vcmp.eq.s32.totalorder %v172, %v286
  %vm403 = vcmp.eq.s32.totalorder %v172, %v289
  %vm404 = vcmp.eq.s32.totalorder %v172, %v292
  %vm405 = vcmp.eq.s32.totalorder %v172, %v295
  %vm406 = vcmp.eq.s32.totalorder %v172, %v298
  %vm407 = vcmp.eq.s32.totalorder %v172, %v301
  %vm408 = vcmp.eq.s32.totalorder %v172, %v304
  %vm409 = vcmp.eq.s32.totalorder %v172, %v307
  %vm410 = vcmp.eq.s32.totalorder %v172, %v310
  %vm411 = vcmp.eq.s32.totalorder %v172, %v313
  %vm412 = vcmp.eq.s32.totalorder %v172, %v316
  %vm413 = vcmp.eq.s32.totalorder %v172, %v319
  %vm414 = vcmp.eq.s32.totalorder %v172, %v322
  %vm415 = vcmp.eq.s32.totalorder %v172, %v325
  %vm416 = vcmp.eq.s32.totalorder %v172, %v328
  %vm417 = vcmp.eq.s32.totalorder %v172, %v331
  %vm418 = vcmp.eq.s32.totalorder %v172, %v334
  %vm419 = vcmp.eq.s32.totalorder %v172, %v337
  %vm420 = vcmp.eq.s32.totalorder %v172, %v340
  %vm421 = vcmp.eq.s32.totalorder %v172, %v343
  %vm422 = vcmp.eq.s32.totalorder %v172, %v346
  %vm423 = vcmp.eq.s32.totalorder %v172, %v349
  %vm424 = vcmp.eq.s32.totalorder %v172, %v352
  %vm425 = vcmp.eq.s32.totalorder %v172, %v355
  %vm426 = vcmp.eq.s32.totalorder %v172, %v358
  %vm427 = vcmp.eq.s32.totalorder %v172, %v361
  %vm428 = vcmp.eq.s32.totalorder %v172, %v364
  %v429 = vsel %vm365, 1, 0
  %v430 = vsel %vm366, 1, 0
  %v431 = vsel %vm367, 1, 0
  %v432 = vsel %vm368, 1, 0
  %v433 = vsel %vm369, 1, 0
  %v434 = vsel %vm370, 1, 0
  %v435 = vsel %vm371, 1, 0
  %v436 = vsel %vm372, 1, 0
  %v437 = vsel %vm373, 1, 0
  %v438 = vsel %vm374, 1, 0
  %v439 = vsel %vm375, 1, 0
  %v440 = vsel %vm376, 1, 0
  %v441 = vsel %vm377, 1, 0
  %v442 = vsel %vm378, 1, 0
  %v443 = vsel %vm379, 1, 0
  %v444 = vsel %vm380, 1, 0
  %v445 = vsel %vm381, 1, 0
  %v446 = vsel %vm382, 1, 0
  %v447 = vsel %vm383, 1, 0
  %v448 = vsel %vm384, 1, 0
  %v449 = vsel %vm385, 1, 0
  %v450 = vsel %vm386, 1, 0
  %v451 = vsel %vm387, 1, 0
  %v452 = vsel %vm388, 1, 0
  %v453 = vsel %vm389, 1, 0
  %v454 = vsel %vm390, 1, 0
  %v455 = vsel %vm391, 1, 0
  %v456 = vsel %vm392, 1, 0
  %v457 = vsel %vm393, 1, 0
  %v458 = vsel %vm394, 1, 0
  %v459 = vsel %vm395, 1, 0
  %v460 = vsel %vm396, 1, 0
  %v461 = vsel %vm397, 1, 0
  %v462 = vsel %vm398, 1, 0
  %v463 = vsel %vm399, 1, 0
  %v464 = vsel %vm400, 1, 0
  %v465 = vsel %vm401, 1, 0
  %v466 = vsel %vm402, 1, 0
  %v467 = vsel %vm403, 1, 0
  %v468 = vsel %vm404, 1, 0
  %v469 = vsel %vm405, 1, 0
  %v470 = vsel %vm406, 1, 0
  %v471 = vsel %vm407, 1, 0
  %v472 = vsel %vm408, 1, 0
  %v473 = vsel %vm409, 1, 0
  %v474 = vsel %vm410, 1, 0
  %v475 = vsel %vm411, 1, 0
  %v476 = vsel %vm412, 1, 0
  %v477 = vsel %vm413, 1, 0
  %v478 = vsel %vm414, 1, 0
  %v479 = vsel %vm415, 1, 0
  %v480 = vsel %vm416, 1, 0
  %v481 = vsel %vm417, 1, 0
  %v482 = vsel %vm418, 1, 0
  %v483 = vsel %vm419, 1, 0
  %v484 = vsel %vm420, 1, 0
  %v485 = vsel %vm421, 1, 0
  %v486 = vsel %vm422, 1, 0
  %v487 = vsel %vm423, 1, 0
  %v488 = vsel %vm424, 1, 0
  %v489 = vsel %vm425, 1, 0
  %v490 = vsel %vm426, 1, 0
  %v491 = vsel %vm427, 1, 0
  %v492 = vsel %vm428, 1, 0
  %v493 = vcvt.s32.f32 %v429
  %v494 = vcvt.s32.f32 %v430
  %v495 = vcvt.s32.f32 %v431
  %v496 = vcvt.s32.f32 %v432
  %v497 = vcvt.s32.f32 %v433
  %v498 = vcvt.s32.f32 %v434
  %v499 = vcvt.s32.f32 %v435
  %v500 = vcvt.s32.f32 %v436
  %v501 = vcvt.s32.f32 %v437
  %v502 = vcvt.s32.f32 %v438
  %v503 = vcvt.s32.f32 %v439
  %v504 = vcvt.s32.f32 %v440
  %v505 = vcvt.s32.f32 %v441
  %v506 = vcvt.s32.f32 %v442
  %v507 = vcvt.s32.f32 %v443
  %v508 = vcvt.s32.f32 %v444
  %v509 = vcvt.s32.f32 %v445
  %v510 = vcvt.s32.f32 %v446
  %v511 = vcvt.s32.f32 %v447
  %v512 = vcvt.s32.f32 %v448
  %v513 = vcvt.s32.f32 %v449
  %v514 = vcvt.s32.f32 %v450
  %v515 = vcvt.s32.f32 %v451
  %v516 = vcvt.s32.f32 %v452
  %v517 = vcvt.s32.f32 %v453
  %v518 = vcvt.s32.f32 %v454
  %v519 = vcvt.s32.f32 %v455
  %v520 = vcvt.s32.f32 %v456
  %v521 = vcvt.s32.f32 %v457
  %v522 = vcvt.s32.f32 %v458
  %v523 = vcvt.s32.f32 %v459
  %v524 = vcvt.s32.f32 %v460
  %v525 = vcvt.s32.f32 %v461
  %v526 = vcvt.s32.f32 %v462
  %v527 = vcvt.s32.f32 %v463
  %v528 = vcvt.s32.f32 %v464
  %v529 = vcvt.s32.f32 %v465
  %v530 = vcvt.s32.f32 %v466
  %v531 = vcvt.s32.f32 %v467
  %v532 = vcvt.s32.f32 %v468
  %v533 = vcvt.s32.f32 %v469
  %v534 = vcvt.s32.f32 %v470
  %v535 = vcvt.s32.f32 %v471
  %v536 = vcvt.s32.f32 %v472
  %v537 = vcvt.s32.f32 %v473
  %v538 = vcvt.s32.f32 %v474
  %v539 = vcvt.s32.f32 %v475
  %v540 = vcvt.s32.f32 %v476
  %v541 = vcvt.s32.f32 %v477
  %v542 = vcvt.s32.f32 %v478
  %v543 = vcvt.s32.f32 %v479
  %v544 = vcvt.s32.f32 %v480
  %v545 = vcvt.s32.f32 %v481
  %v546 = vcvt.s32.f32 %v482
  %v547 = vcvt.s32.f32 %v483
  %v548 = vcvt.s32.f32 %v484
  %v549 = vcvt.s32.f32 %v485
  %v550 = vcvt.s32.f32 %v486
  %v551 = vcvt.s32.f32 %v487
  %v552 = vcvt.s32.f32 %v488
  %v553 = vcvt.s32.f32 %v489
  %v554 = vcvt.s32.f32 %v490
  %v555 = vcvt.s32.f32 %v491
  %v556 = vcvt.s32.f32 %v492
  %v557 = vpack.c.bf16 %v494, %v493
  %v558 = vpack.c.bf16 %v496, %v495
  %v559 = vpack.c.bf16 %v498, %v497
  %v560 = vpack.c.bf16 %v500, %v499
  %v561 = vpack.c.bf16 %v502, %v501
  %v562 = vpack.c.bf16 %v504, %v503
  %v563 = vpack.c.bf16 %v506, %v505
  %v564 = vpack.c.bf16 %v508, %v507
  %v565 = vpack.c.bf16 %v510, %v509
  %v566 = vpack.c.bf16 %v512, %v511
  %v567 = vpack.c.bf16 %v514, %v513
  %v568 = vpack.c.bf16 %v516, %v515
  %v569 = vpack.c.bf16 %v518, %v517
  %v570 = vpack.c.bf16 %v520, %v519
  %v571 = vpack.c.bf16 %v522, %v521
  %v572 = vpack.c.bf16 %v524, %v523
  %v573 = vpack.c.bf16 %v526, %v525
  %v574 = vpack.c.bf16 %v528, %v527
  %v575 = vpack.c.bf16 %v530, %v529
  %v576 = vpack.c.bf16 %v532, %v531
  %v577 = vpack.c.bf16 %v534, %v533
  %v578 = vpack.c.bf16 %v536, %v535
  %v579 = vpack.c.bf16 %v538, %v537
  %v580 = vpack.c.bf16 %v540, %v539
  %v581 = vpack.c.bf16 %v542, %v541
  %v582 = vpack.c.bf16 %v544, %v543
  %v583 = vpack.c.bf16 %v546, %v545
  %v584 = vpack.c.bf16 %v548, %v547
  %v585 = vpack.c.bf16 %v550, %v549
  %v586 = vpack.c.bf16 %v552, %v551
  %v587 = vpack.c.bf16 %v554, %v553
  %v588 = vpack.c.bf16 %v556, %v555
  %589 = vset.pattern.permute.xlu0 0
  %590 = vperm.xlu0 %589, %v105
  %v591 = vpop.permute.xlu0 %590
  %592 = vset.pattern.permute.xlu0 0
  %593 = vperm.xlu0 %592, %v106
  %v594 = vpop.permute.xlu0 %593
  %595 = vset.pattern.permute.xlu0 0
  %596 = vperm.xlu0 %595, %v107
  %v597 = vpop.permute.xlu0 %596
  %598 = vset.pattern.permute.xlu0 0
  %599 = vperm.xlu0 %598, %v108
  %v600 = vpop.permute.xlu0 %599
  %601 = vset.pattern.permute.xlu0 0
  %602 = vperm.xlu0 %601, %v109
  %v603 = vpop.permute.xlu0 %602
  %604 = vset.pattern.permute.xlu0 0
  %605 = vperm.xlu0 %604, %v110
  %v606 = vpop.permute.xlu0 %605
  %607 = vset.pattern.permute.xlu0 0
  %608 = vperm.xlu0 %607, %v111
  %v609 = vpop.permute.xlu0 %608
  %610 = vset.pattern.permute.xlu0 0
  %611 = vperm.xlu0 %610, %v112
  %v612 = vpop.permute.xlu0 %611
  %613 = vset.pattern.permute.xlu0 0
  %614 = vperm.xlu0 %613, %v113
  %v615 = vpop.permute.xlu0 %614
  %616 = vset.pattern.permute.xlu0 0
  %617 = vperm.xlu0 %616, %v114
  %v618 = vpop.permute.xlu0 %617
  %619 = vset.pattern.permute.xlu0 0
  %620 = vperm.xlu0 %619, %v115
  %v621 = vpop.permute.xlu0 %620
  %622 = vset.pattern.permute.xlu0 0
  %623 = vperm.xlu0 %622, %v116
  %v624 = vpop.permute.xlu0 %623
  %625 = vset.pattern.permute.xlu0 0
  %626 = vperm.xlu0 %625, %v117
  %v627 = vpop.permute.xlu0 %626
  %628 = vset.pattern.permute.xlu0 0
  %629 = vperm.xlu0 %628, %v118
  %v630 = vpop.permute.xlu0 %629
  %631 = vset.pattern.permute.xlu0 0
  %632 = vperm.xlu0 %631, %v119
  %v633 = vpop.permute.xlu0 %632
  %634 = vset.pattern.permute.xlu0 0
  %635 = vperm.xlu0 %634, %v120
  %v636 = vpop.permute.xlu0 %635
  %637 = vset.pattern.permute.xlu0 0
  %638 = vperm.xlu0 %637, %v121
  %v639 = vpop.permute.xlu0 %638
  %640 = vset.pattern.permute.xlu0 0
  %641 = vperm.xlu0 %640, %v122
  %v642 = vpop.permute.xlu0 %641
  %643 = vset.pattern.permute.xlu0 0
  %644 = vperm.xlu0 %643, %v123
  %v645 = vpop.permute.xlu0 %644
  %646 = vset.pattern.permute.xlu0 0
  %647 = vperm.xlu0 %646, %v124
  %v648 = vpop.permute.xlu0 %647
  %649 = vset.pattern.permute.xlu0 0
  %650 = vperm.xlu0 %649, %v125
  %v651 = vpop.permute.xlu0 %650
  %652 = vset.pattern.permute.xlu0 0
  %653 = vperm.xlu0 %652, %v126
  %v654 = vpop.permute.xlu0 %653
  %655 = vset.pattern.permute.xlu0 0
  %656 = vperm.xlu0 %655, %v127
  %v657 = vpop.permute.xlu0 %656
  %658 = vset.pattern.permute.xlu0 0
  %659 = vperm.xlu0 %658, %v128
  %v660 = vpop.permute.xlu0 %659
  %661 = vset.pattern.permute.xlu0 0
  %662 = vperm.xlu0 %661, %v129
  %v663 = vpop.permute.xlu0 %662
  %664 = vset.pattern.permute.xlu0 0
  %665 = vperm.xlu0 %664, %v130
  %v666 = vpop.permute.xlu0 %665
  %667 = vset.pattern.permute.xlu0 0
  %668 = vperm.xlu0 %667, %v131
  %v669 = vpop.permute.xlu0 %668
  %670 = vset.pattern.permute.xlu0 0
  %671 = vperm.xlu0 %670, %v132
  %v672 = vpop.permute.xlu0 %671
  %673 = vset.pattern.permute.xlu0 0
  %674 = vperm.xlu0 %673, %v133
  %v675 = vpop.permute.xlu0 %674
  %676 = vset.pattern.permute.xlu0 0
  %677 = vperm.xlu0 %676, %v134
  %v678 = vpop.permute.xlu0 %677
  %679 = vset.pattern.permute.xlu0 0
  %680 = vperm.xlu0 %679, %v135
  %v681 = vpop.permute.xlu0 %680
  %682 = vset.pattern.permute.xlu0 0
  %683 = vperm.xlu0 %682, %v136
  %v684 = vpop.permute.xlu0 %683
  %685 = vset.pattern.permute.xlu0 0
  %686 = vperm.xlu0 %685, %v137
  %v687 = vpop.permute.xlu0 %686
  %688 = vset.pattern.permute.xlu0 0
  %689 = vperm.xlu0 %688, %v138
  %v690 = vpop.permute.xlu0 %689
  %691 = vset.pattern.permute.xlu0 0
  %692 = vperm.xlu0 %691, %v139
  %v693 = vpop.permute.xlu0 %692
  %694 = vset.pattern.permute.xlu0 0
  %695 = vperm.xlu0 %694, %v140
  %v696 = vpop.permute.xlu0 %695
  %697 = vset.pattern.permute.xlu0 0
  %698 = vperm.xlu0 %697, %v141
  %v699 = vpop.permute.xlu0 %698
  %700 = vset.pattern.permute.xlu0 0
  %701 = vperm.xlu0 %700, %v142
  %v702 = vpop.permute.xlu0 %701
  %703 = vset.pattern.permute.xlu0 0
  %704 = vperm.xlu0 %703, %v143
  %v705 = vpop.permute.xlu0 %704
  %706 = vset.pattern.permute.xlu0 0
  %707 = vperm.xlu0 %706, %v144
  %v708 = vpop.permute.xlu0 %707
  %709 = vset.pattern.permute.xlu0 0
  %710 = vperm.xlu0 %709, %v145
  %v711 = vpop.permute.xlu0 %710
  %712 = vset.pattern.permute.xlu0 0
  %713 = vperm.xlu0 %712, %v146
  %v714 = vpop.permute.xlu0 %713
  %715 = vset.pattern.permute.xlu0 0
  %716 = vperm.xlu0 %715, %v147
  %v717 = vpop.permute.xlu0 %716
  %718 = vset.pattern.permute.xlu0 0
  %719 = vperm.xlu0 %718, %v148
  %v720 = vpop.permute.xlu0 %719
  %721 = vset.pattern.permute.xlu0 0
  %722 = vperm.xlu0 %721, %v149
  %v723 = vpop.permute.xlu0 %722
  %724 = vset.pattern.permute.xlu0 0
  %725 = vperm.xlu0 %724, %v150
  %v726 = vpop.permute.xlu0 %725
  %727 = vset.pattern.permute.xlu0 0
  %728 = vperm.xlu0 %727, %v151
  %v729 = vpop.permute.xlu0 %728
  %730 = vset.pattern.permute.xlu0 0
  %731 = vperm.xlu0 %730, %v152
  %v732 = vpop.permute.xlu0 %731
  %733 = vset.pattern.permute.xlu0 0
  %734 = vperm.xlu0 %733, %v153
  %v735 = vpop.permute.xlu0 %734
  %736 = vset.pattern.permute.xlu0 0
  %737 = vperm.xlu0 %736, %v154
  %v738 = vpop.permute.xlu0 %737
  %739 = vset.pattern.permute.xlu0 0
  %740 = vperm.xlu0 %739, %v155
  %v741 = vpop.permute.xlu0 %740
  %742 = vset.pattern.permute.xlu0 0
  %743 = vperm.xlu0 %742, %v156
  %v744 = vpop.permute.xlu0 %743
  %745 = vset.pattern.permute.xlu0 0
  %746 = vperm.xlu0 %745, %v157
  %v747 = vpop.permute.xlu0 %746
  %748 = vset.pattern.permute.xlu0 0
  %749 = vperm.xlu0 %748, %v158
  %v750 = vpop.permute.xlu0 %749
  %751 = vset.pattern.permute.xlu0 0
  %752 = vperm.xlu0 %751, %v159
  %v753 = vpop.permute.xlu0 %752
  %754 = vset.pattern.permute.xlu0 0
  %755 = vperm.xlu0 %754, %v160
  %v756 = vpop.permute.xlu0 %755
  %757 = vset.pattern.permute.xlu0 0
  %758 = vperm.xlu0 %757, %v161
  %v759 = vpop.permute.xlu0 %758
  %760 = vset.pattern.permute.xlu0 0
  %761 = vperm.xlu0 %760, %v162
  %v762 = vpop.permute.xlu0 %761
  %763 = vset.pattern.permute.xlu0 0
  %764 = vperm.xlu0 %763, %v163
  %v765 = vpop.permute.xlu0 %764
  %766 = vset.pattern.permute.xlu0 0
  %767 = vperm.xlu0 %766, %v164
  %v768 = vpop.permute.xlu0 %767
  %769 = vset.pattern.permute.xlu0 0
  %770 = vperm.xlu0 %769, %v165
  %v771 = vpop.permute.xlu0 %770
  %772 = vset.pattern.permute.xlu0 0
  %773 = vperm.xlu0 %772, %v166
  %v774 = vpop.permute.xlu0 %773
  %775 = vset.pattern.permute.xlu0 0
  %776 = vperm.xlu0 %775, %v167
  %v777 = vpop.permute.xlu0 %776
  %778 = vset.pattern.permute.xlu0 0
  %779 = vperm.xlu0 %778, %v168
  %v780 = vpop.permute.xlu0 %779
  %vm781 = vcmp.eq.s32.totalorder %v172, %v591
  %vm782 = vcmp.eq.s32.totalorder %v172, %v594
  %vm783 = vcmp.eq.s32.totalorder %v172, %v597
  %vm784 = vcmp.eq.s32.totalorder %v172, %v600
  %vm785 = vcmp.eq.s32.totalorder %v172, %v603
  %vm786 = vcmp.eq.s32.totalorder %v172, %v606
  %vm787 = vcmp.eq.s32.totalorder %v172, %v609
  %vm788 = vcmp.eq.s32.totalorder %v172, %v612
  %vm789 = vcmp.eq.s32.totalorder %v172, %v615
  %vm790 = vcmp.eq.s32.totalorder %v172, %v618
  %vm791 = vcmp.eq.s32.totalorder %v172, %v621
  %vm792 = vcmp.eq.s32.totalorder %v172, %v624
  %vm793 = vcmp.eq.s32.totalorder %v172, %v627
  %vm794 = vcmp.eq.s32.totalorder %v172, %v630
  %vm795 = vcmp.eq.s32.totalorder %v172, %v633
  %vm796 = vcmp.eq.s32.totalorder %v172, %v636
  %vm797 = vcmp.eq.s32.totalorder %v172, %v639
  %vm798 = vcmp.eq.s32.totalorder %v172, %v642
  %vm799 = vcmp.eq.s32.totalorder %v172, %v645
  %vm800 = vcmp.eq.s32.totalorder %v172, %v648
  %vm801 = vcmp.eq.s32.totalorder %v172, %v651
  %vm802 = vcmp.eq.s32.totalorder %v172, %v654
  %vm803 = vcmp.eq.s32.totalorder %v172, %v657
  %vm804 = vcmp.eq.s32.totalorder %v172, %v660
  %vm805 = vcmp.eq.s32.totalorder %v172, %v663
  %vm806 = vcmp.eq.s32.totalorder %v172, %v666
  %vm807 = vcmp.eq.s32.totalorder %v172, %v669
  %vm808 = vcmp.eq.s32.totalorder %v172, %v672
  %vm809 = vcmp.eq.s32.totalorder %v172, %v675
  %vm810 = vcmp.eq.s32.totalorder %v172, %v678
  %vm811 = vcmp.eq.s32.totalorder %v172, %v681
  %vm812 = vcmp.eq.s32.totalorder %v172, %v684
  %vm813 = vcmp.eq.s32.totalorder %v172, %v687
  %vm814 = vcmp.eq.s32.totalorder %v172, %v690
  %vm815 = vcmp.eq.s32.totalorder %v172, %v693
  %vm816 = vcmp.eq.s32.totalorder %v172, %v696
  %vm817 = vcmp.eq.s32.totalorder %v172, %v699
  %vm818 = vcmp.eq.s32.totalorder %v172, %v702
  %vm819 = vcmp.eq.s32.totalorder %v172, %v705
  %vm820 = vcmp.eq.s32.totalorder %v172, %v708
  %vm821 = vcmp.eq.s32.totalorder %v172, %v711
  %vm822 = vcmp.eq.s32.totalorder %v172, %v714
  %vm823 = vcmp.eq.s32.totalorder %v172, %v717
  %vm824 = vcmp.eq.s32.totalorder %v172, %v720
  %vm825 = vcmp.eq.s32.totalorder %v172, %v723
  %vm826 = vcmp.eq.s32.totalorder %v172, %v726
  %vm827 = vcmp.eq.s32.totalorder %v172, %v729
  %vm828 = vcmp.eq.s32.totalorder %v172, %v732
  %vm829 = vcmp.eq.s32.totalorder %v172, %v735
  %vm830 = vcmp.eq.s32.totalorder %v172, %v738
  %vm831 = vcmp.eq.s32.totalorder %v172, %v741
  %vm832 = vcmp.eq.s32.totalorder %v172, %v744
  %vm833 = vcmp.eq.s32.totalorder %v172, %v747
  %vm834 = vcmp.eq.s32.totalorder %v172, %v750
  %vm835 = vcmp.eq.s32.totalorder %v172, %v753
  %vm836 = vcmp.eq.s32.totalorder %v172, %v756
  %vm837 = vcmp.eq.s32.totalorder %v172, %v759
  %vm838 = vcmp.eq.s32.totalorder %v172, %v762
  %vm839 = vcmp.eq.s32.totalorder %v172, %v765
  %vm840 = vcmp.eq.s32.totalorder %v172, %v768
  %vm841 = vcmp.eq.s32.totalorder %v172, %v771
  %vm842 = vcmp.eq.s32.totalorder %v172, %v774
  %vm843 = vcmp.eq.s32.totalorder %v172, %v777
  %vm844 = vcmp.eq.s32.totalorder %v172, %v780
  %v845 = vsel %vm781, 1, 0
  %v846 = vsel %vm782, 1, 0
  %v847 = vsel %vm783, 1, 0
  %v848 = vsel %vm784, 1, 0
  %v849 = vsel %vm785, 1, 0
  %v850 = vsel %vm786, 1, 0
  %v851 = vsel %vm787, 1, 0
  %v852 = vsel %vm788, 1, 0
  %v853 = vsel %vm789, 1, 0
  %v854 = vsel %vm790, 1, 0
  %v855 = vsel %vm791, 1, 0
  %v856 = vsel %vm792, 1, 0
  %v857 = vsel %vm793, 1, 0
  %v858 = vsel %vm794, 1, 0
  %v859 = vsel %vm795, 1, 0
  %v860 = vsel %vm796, 1, 0
  %v861 = vsel %vm797, 1, 0
  %v862 = vsel %vm798, 1, 0
  %v863 = vsel %vm799, 1, 0
  %v864 = vsel %vm800, 1, 0
  %v865 = vsel %vm801, 1, 0
  %v866 = vsel %vm802, 1, 0
  %v867 = vsel %vm803, 1, 0
  %v868 = vsel %vm804, 1, 0
  %v869 = vsel %vm805, 1, 0
  %v870 = vsel %vm806, 1, 0
  %v871 = vsel %vm807, 1, 0
  %v872 = vsel %vm808, 1, 0
  %v873 = vsel %vm809, 1, 0
  %v874 = vsel %vm810, 1, 0
  %v875 = vsel %vm811, 1, 0
  %v876 = vsel %vm812, 1, 0
  %v877 = vsel %vm813, 1, 0
  %v878 = vsel %vm814, 1, 0
  %v879 = vsel %vm815, 1, 0
  %v880 = vsel %vm816, 1, 0
  %v881 = vsel %vm817, 1, 0
  %v882 = vsel %vm818, 1, 0
  %v883 = vsel %vm819, 1, 0
  %v884 = vsel %vm820, 1, 0
  %v885 = vsel %vm821, 1, 0
  %v886 = vsel %vm822, 1, 0
  %v887 = vsel %vm823, 1, 0
  %v888 = vsel %vm824, 1, 0
  %v889 = vsel %vm825, 1, 0
  %v890 = vsel %vm826, 1, 0
  %v891 = vsel %vm827, 1, 0
  %v892 = vsel %vm828, 1, 0
  %v893 = vsel %vm829, 1, 0
  %v894 = vsel %vm830, 1, 0
  %v895 = vsel %vm831, 1, 0
  %v896 = vsel %vm832, 1, 0
  %v897 = vsel %vm833, 1, 0
  %v898 = vsel %vm834, 1, 0
  %v899 = vsel %vm835, 1, 0
  %v900 = vsel %vm836, 1, 0
  %v901 = vsel %vm837, 1, 0
  %v902 = vsel %vm838, 1, 0
  %v903 = vsel %vm839, 1, 0
  %v904 = vsel %vm840, 1, 0
  %v905 = vsel %vm841, 1, 0
  %v906 = vsel %vm842, 1, 0
  %v907 = vsel %vm843, 1, 0
  %v908 = vsel %vm844, 1, 0
  %v909 = vcvt.s32.f32 %v845
  %v910 = vcvt.s32.f32 %v846
  %v911 = vcvt.s32.f32 %v847
  %v912 = vcvt.s32.f32 %v848
  %v913 = vcvt.s32.f32 %v849
  %v914 = vcvt.s32.f32 %v850
  %v915 = vcvt.s32.f32 %v851
  %v916 = vcvt.s32.f32 %v852
  %v917 = vcvt.s32.f32 %v853
  %v918 = vcvt.s32.f32 %v854
  %v919 = vcvt.s32.f32 %v855
  %v920 = vcvt.s32.f32 %v856
  %v921 = vcvt.s32.f32 %v857
  %v922 = vcvt.s32.f32 %v858
  %v923 = vcvt.s32.f32 %v859
  %v924 = vcvt.s32.f32 %v860
  %v925 = vcvt.s32.f32 %v861
  %v926 = vcvt.s32.f32 %v862
  %v927 = vcvt.s32.f32 %v863
  %v928 = vcvt.s32.f32 %v864
  %v929 = vcvt.s32.f32 %v865
  %v930 = vcvt.s32.f32 %v866
  %v931 = vcvt.s32.f32 %v867
  %v932 = vcvt.s32.f32 %v868
  %v933 = vcvt.s32.f32 %v869
  %v934 = vcvt.s32.f32 %v870
  %v935 = vcvt.s32.f32 %v871
  %v936 = vcvt.s32.f32 %v872
  %v937 = vcvt.s32.f32 %v873
  %v938 = vcvt.s32.f32 %v874
  %v939 = vcvt.s32.f32 %v875
  %v940 = vcvt.s32.f32 %v876
  %v941 = vcvt.s32.f32 %v877
  %v942 = vcvt.s32.f32 %v878
  %v943 = vcvt.s32.f32 %v879
  %v944 = vcvt.s32.f32 %v880
  %v945 = vcvt.s32.f32 %v881
  %v946 = vcvt.s32.f32 %v882
  %v947 = vcvt.s32.f32 %v883
  %v948 = vcvt.s32.f32 %v884
  %v949 = vcvt.s32.f32 %v885
  %v950 = vcvt.s32.f32 %v886
  %v951 = vcvt.s32.f32 %v887
  %v952 = vcvt.s32.f32 %v888
  %v953 = vcvt.s32.f32 %v889
  %v954 = vcvt.s32.f32 %v890
  %v955 = vcvt.s32.f32 %v891
  %v956 = vcvt.s32.f32 %v892
  %v957 = vcvt.s32.f32 %v893
  %v958 = vcvt.s32.f32 %v894
  %v959 = vcvt.s32.f32 %v895
  %v960 = vcvt.s32.f32 %v896
  %v961 = vcvt.s32.f32 %v897
  %v962 = vcvt.s32.f32 %v898
  %v963 = vcvt.s32.f32 %v899
  %v964 = vcvt.s32.f32 %v900
  %v965 = vcvt.s32.f32 %v901
  %v966 = vcvt.s32.f32 %v902
  %v967 = vcvt.s32.f32 %v903
  %v968 = vcvt.s32.f32 %v904
  %v969 = vcvt.s32.f32 %v905
  %v970 = vcvt.s32.f32 %v906
  %v971 = vcvt.s32.f32 %v907
  %v972 = vcvt.s32.f32 %v908
  %v973 = vpack.c.bf16 %v910, %v909
  %v974 = vpack.c.bf16 %v912, %v911
  %v975 = vpack.c.bf16 %v914, %v913
  %v976 = vpack.c.bf16 %v916, %v915
  %v977 = vpack.c.bf16 %v918, %v917
  %v978 = vpack.c.bf16 %v920, %v919
  %v979 = vpack.c.bf16 %v922, %v921
  %v980 = vpack.c.bf16 %v924, %v923
  %v981 = vpack.c.bf16 %v926, %v925
  %v982 = vpack.c.bf16 %v928, %v927
  %v983 = vpack.c.bf16 %v930, %v929
  %v984 = vpack.c.bf16 %v932, %v931
  %v985 = vpack.c.bf16 %v934, %v933
  %v986 = vpack.c.bf16 %v936, %v935
  %v987 = vpack.c.bf16 %v938, %v937
  %v988 = vpack.c.bf16 %v940, %v939
  %v989 = vpack.c.bf16 %v942, %v941
  %v990 = vpack.c.bf16 %v944, %v943
  %v991 = vpack.c.bf16 %v946, %v945
  %v992 = vpack.c.bf16 %v948, %v947
  %v993 = vpack.c.bf16 %v950, %v949
  %v994 = vpack.c.bf16 %v952, %v951
  %v995 = vpack.c.bf16 %v954, %v953
  %v996 = vpack.c.bf16 %v956, %v955
  %v997 = vpack.c.bf16 %v958, %v957
  %v998 = vpack.c.bf16 %v960, %v959
  %v999 = vpack.c.bf16 %v962, %v961
  %v1000 = vpack.c.bf16 %v964, %v963
  %v1001 = vpack.c.bf16 %v966, %v965
  %v1002 = vpack.c.bf16 %v968, %v967
  %v1003 = vpack.c.bf16 %v970, %v969
  %v1004 = vpack.c.bf16 %v972, %v971
  %v1005 = vld [vmem:[%s3] sm:$0xf]
  %v1006 = vld [vmem:[%s3 + $0x4] sm:$0xf]
  %v1007 = vld [vmem:[%s3 + $0x8] sm:$0xf]
  %v1008 = vld [vmem:[%s3 + $0xc] sm:$0xf]
  %v1009 = vld [vmem:[%s3 + $0x10] sm:$0xf]
  %v1010 = vld [vmem:[%s3 + $0x14] sm:$0xf]
  %v1011 = vld [vmem:[%s3 + $0x18] sm:$0xf]
  %v1012 = vld [vmem:[%s3 + $0x1c] sm:$0xf]
  %v1013 = vld [vmem:[%s3 + $0x20] sm:$0xf]
  %v1014 = vld [vmem:[%s3 + $0x24] sm:$0xf]
  %v1015 = vld [vmem:[%s3 + $0x28] sm:$0xf]
  %v1016 = vld [vmem:[%s3 + $0x2c] sm:$0xf]
  %v1017 = vld [vmem:[%s3 + $0x30] sm:$0xf]
  %v1018 = vld [vmem:[%s3 + $0x34] sm:$0xf]
  %v1019 = vld [vmem:[%s3 + $0x38] sm:$0xf]
  %v1020 = vld [vmem:[%s3 + $0x3c] sm:$0xf]
  %v1021 = vld [vmem:[%s4] sm:$0xf]
  %v1022 = vld [vmem:[%s4 + $0x4] sm:$0xf]
  %v1023 = vld [vmem:[%s4 + $0x8] sm:$0xf]
  %v1024 = vld [vmem:[%s4 + $0xc] sm:$0xf]
  %v1025 = vld [vmem:[%s4 + $0x10] sm:$0xf]
  %v1026 = vld [vmem:[%s4 + $0x14] sm:$0xf]
  %v1027 = vld [vmem:[%s4 + $0x18] sm:$0xf]
  %v1028 = vld [vmem:[%s4 + $0x1c] sm:$0xf]
  %v1029 = vld [vmem:[%s4 + $0x20] sm:$0xf]
  %v1030 = vld [vmem:[%s4 + $0x24] sm:$0xf]
  %v1031 = vld [vmem:[%s4 + $0x28] sm:$0xf]
  %v1032 = vld [vmem:[%s4 + $0x2c] sm:$0xf]
  %v1033 = vld [vmem:[%s4 + $0x30] sm:$0xf]
  %v1034 = vld [vmem:[%s4 + $0x34] sm:$0xf]
  %v1035 = vld [vmem:[%s4 + $0x38] sm:$0xf]
  %v1036 = vld [vmem:[%s4 + $0x3c] sm:$0xf]
  %v1053 = vunpack.c.l.b16 %v1021
  %v1054 = vunpack.c.l.b16 %v1022
  %v1055 = vunpack.c.l.b16 %v1023
  %v1056 = vunpack.c.l.b16 %v1024
  %v1057 = vunpack.c.l.b16 %v1025
  %v1058 = vunpack.c.l.b16 %v1026
  %v1059 = vunpack.c.l.b16 %v1027
  %v1060 = vunpack.c.l.b16 %v1028
  %v1061 = vunpack.c.l.b16 %v1029
  %v1062 = vunpack.c.l.b16 %v1030
  %v1063 = vunpack.c.l.b16 %v1031
  %v1064 = vunpack.c.l.b16 %v1032
  %v1065 = vunpack.c.l.b16 %v1033
  %v1066 = vunpack.c.l.b16 %v1034
  %v1067 = vunpack.c.l.b16 %v1035
  %v1068 = vunpack.c.l.b16 %v1036
  %v1069 = vpack.c.b16 %v1054, %v1053
  %v1070 = vpack.c.b16 %v1056, %v1055
  %v1071 = vpack.c.b16 %v1058, %v1057
  %v1072 = vpack.c.b16 %v1060, %v1059
  %v1073 = vpack.c.b16 %v1062, %v1061
  %v1074 = vpack.c.b16 %v1064, %v1063
  %v1075 = vpack.c.b16 %v1066, %v1065
  %v1076 = vpack.c.b16 %v1068, %v1067
  %1085 = vmatprep.subr.bf16.mxu0 0
  %1086 = vmatpush1.bf16.msra.mxu0 %v1076
  %1087 = vmatprep.subr.bf16.mxu0 0
  %1088 = vmatpush1.bf16.msra.mxu0 %v1075
  %1089 = vmatprep.subr.bf16.mxu0 0
  %1090 = vmatpush1.bf16.msra.mxu0 %v1074
  %1091 = vmatprep.subr.bf16.mxu0 0
  %1092 = vmatpush1.bf16.msra.mxu0 %v1073
  %1093 = vmatprep.subr.bf16.mxu0 0
  %1094 = vmatpush1.bf16.msra.mxu0 %v1072
  %1095 = vmatprep.subr.bf16.mxu0 0
  %1096 = vmatpush1.bf16.msra.mxu0 %v1071
  %1097 = vmatprep.subr.bf16.mxu0 0
  %1098 = vmatpush1.bf16.msra.mxu0 %v1070
  %1099 = vmatprep.subr.bf16.mxu0 0
  %1100 = vmatpush1.bf16.msra.mxu0 %v1069
  %1101 = vmatprep.subr.bf16.mxu0 0
  %1102 = vmatpush2.bf16.msra.mxu0 0
  %1103 = vmatprep.subr.bf16.mxu0 0
  %1104 = vmatpush2.bf16.msra.mxu0 0
  %1105 = vmatprep.subr.bf16.mxu0 0
  %1106 = vmatpush2.bf16.msra.mxu0 0
  %1107 = vmatprep.subr.bf16.mxu0 0
  %1108 = vmatpush2.bf16.msra.mxu0 0
  %1109 = vmatprep.subr.bf16.mxu0 0
  %1110 = vmatpush2.bf16.msra.mxu0 0
  %1111 = vmatprep.subr.bf16.mxu0 0
  %1112 = vmatpush2.bf16.msra.mxu0 0
  %1113 = vmatprep.subr.bf16.mxu0 0
  %1114 = vmatpush2.bf16.msra.mxu0 0
  %1115 = vmatprep.subr.bf16.mxu0 0
  %1116 = vmatpush2.bf16.msra.mxu0 0
  %1117 = vmatprep.mubr.bf16.mxu0 0
  %1118 = vmatmul.mubr.bf16.gmra.mxu0 %v973
  %v1119 = vpop.f32.mrf.mxu0
  %v1120 = vadd.f32 0.0, %v1119
  %v1121 = vpop.f32.mrf.mxu0
  %v1122 = vpop.f32.mrf.mxu0
  %v1123 = vadd.f32 0.0, %v1122
  %v1124 = vpop.f32.mrf.mxu0
  %1125 = vmatprep.mubr.bf16.mxu0 0
  %1126 = vmatmul.mubr.bf16.gmra.mxu0 %v974
  %v1127 = vpop.f32.mrf.mxu0
  %v1128 = vadd.f32 0.0, %v1127
  %v1129 = vpop.f32.mrf.mxu0
  %v1130 = vpop.f32.mrf.mxu0
  %v1131 = vadd.f32 0.0, %v1130
  %v1132 = vpop.f32.mrf.mxu0
  %1133 = vmatprep.mubr.bf16.mxu0 0
  %1134 = vmatmul.mubr.bf16.gmra.mxu0 %v975
  %v1135 = vpop.f32.mrf.mxu0
  %v1136 = vadd.f32 0.0, %v1135
  %v1137 = vpop.f32.mrf.mxu0
  %v1138 = vpop.f32.mrf.mxu0
  %v1139 = vadd.f32 0.0, %v1138
  %v1140 = vpop.f32.mrf.mxu0
  %1141 = vmatprep.mubr.bf16.mxu0 0
  %1142 = vmatmul.mubr.bf16.gmra.mxu0 %v976
  %v1143 = vpop.f32.mrf.mxu0
  %v1144 = vadd.f32 0.0, %v1143
  %v1145 = vpop.f32.mrf.mxu0
  %v1146 = vpop.f32.mrf.mxu0
  %v1147 = vadd.f32 0.0, %v1146
  %v1148 = vpop.f32.mrf.mxu0
  %1149 = vmatprep.mubr.bf16.mxu0 0
  %1150 = vmatmul.mubr.bf16.gmra.mxu0 %v977
  %v1151 = vpop.f32.mrf.mxu0
  %v1152 = vadd.f32 0.0, %v1151
  %v1153 = vpop.f32.mrf.mxu0
  %v1154 = vpop.f32.mrf.mxu0
  %v1155 = vadd.f32 0.0, %v1154
  %v1156 = vpop.f32.mrf.mxu0
  %1157 = vmatprep.mubr.bf16.mxu0 0
  %1158 = vmatmul.mubr.bf16.gmra.mxu0 %v978
  %v1159 = vpop.f32.mrf.mxu0
  %v1160 = vadd.f32 0.0, %v1159
  %v1161 = vpop.f32.mrf.mxu0
  %v1162 = vpop.f32.mrf.mxu0
  %v1163 = vadd.f32 0.0, %v1162
  %v1164 = vpop.f32.mrf.mxu0
  %1165 = vmatprep.mubr.bf16.mxu0 0
  %1166 = vmatmul.mubr.bf16.gmra.mxu0 %v979
  %v1167 = vpop.f32.mrf.mxu0
  %v1168 = vadd.f32 0.0, %v1167
  %v1169 = vpop.f32.mrf.mxu0
  %v1170 = vpop.f32.mrf.mxu0
  %v1171 = vadd.f32 0.0, %v1170
  %v1172 = vpop.f32.mrf.mxu0
  %1173 = vmatprep.mubr.bf16.mxu0 0
  %1174 = vmatmul.mubr.bf16.gmra.mxu0 %v980
  %v1175 = vpop.f32.mrf.mxu0
  %v1176 = vadd.f32 0.0, %v1175
  %v1177 = vpop.f32.mrf.mxu0
  %v1178 = vpop.f32.mrf.mxu0
  %v1179 = vadd.f32 0.0, %v1178
  %v1180 = vpop.f32.mrf.mxu0
  %1181 = vmatprep.mubr.bf16.mxu0 0
  %1182 = vmatmul.mubr.bf16.gmra.mxu0 %v981
  %v1183 = vpop.f32.mrf.mxu0
  %v1184 = vadd.f32 0.0, %v1183
  %v1185 = vpop.f32.mrf.mxu0
  %v1186 = vpop.f32.mrf.mxu0
  %v1187 = vadd.f32 0.0, %v1186
  %v1188 = vpop.f32.mrf.mxu0
  %1189 = vmatprep.mubr.bf16.mxu0 0
  %1190 = vmatmul.mubr.bf16.gmra.mxu0 %v982
  %v1191 = vpop.f32.mrf.mxu0
  %v1192 = vadd.f32 0.0, %v1191
  %v1193 = vpop.f32.mrf.mxu0
  %v1194 = vpop.f32.mrf.mxu0
  %v1195 = vadd.f32 0.0, %v1194
  %v1196 = vpop.f32.mrf.mxu0
  %1197 = vmatprep.mubr.bf16.mxu0 0
  %1198 = vmatmul.mubr.bf16.gmra.mxu0 %v983
  %v1199 = vpop.f32.mrf.mxu0
  %v1200 = vadd.f32 0.0, %v1199
  %v1201 = vpop.f32.mrf.mxu0
  %v1202 = vpop.f32.mrf.mxu0
  %v1203 = vadd.f32 0.0, %v1202
  %v1204 = vpop.f32.mrf.mxu0
  %1205 = vmatprep.mubr.bf16.mxu0 0
  %1206 = vmatmul.mubr.bf16.gmra.mxu0 %v984
  %v1207 = vpop.f32.mrf.mxu0
  %v1208 = vadd.f32 0.0, %v1207
  %v1209 = vpop.f32.mrf.mxu0
  %v1210 = vpop.f32.mrf.mxu0
  %v1211 = vadd.f32 0.0, %v1210
  %v1212 = vpop.f32.mrf.mxu0
  %1213 = vmatprep.mubr.bf16.mxu0 0
  %1214 = vmatmul.mubr.bf16.gmra.mxu0 %v985
  %v1215 = vpop.f32.mrf.mxu0
  %v1216 = vadd.f32 0.0, %v1215
  %v1217 = vpop.f32.mrf.mxu0
  %v1218 = vpop.f32.mrf.mxu0
  %v1219 = vadd.f32 0.0, %v1218
  %v1220 = vpop.f32.mrf.mxu0
  %1221 = vmatprep.mubr.bf16.mxu0 0
  %1222 = vmatmul.mubr.bf16.gmra.mxu0 %v986
  %v1223 = vpop.f32.mrf.mxu0
  %v1224 = vadd.f32 0.0, %v1223
  %v1225 = vpop.f32.mrf.mxu0
  %v1226 = vpop.f32.mrf.mxu0
  %v1227 = vadd.f32 0.0, %v1226
  %v1228 = vpop.f32.mrf.mxu0
  %1229 = vmatprep.mubr.bf16.mxu0 0
  %1230 = vmatmul.mubr.bf16.gmra.mxu0 %v987
  %v1231 = vpop.f32.mrf.mxu0
  %v1232 = vadd.f32 0.0, %v1231
  %v1233 = vpop.f32.mrf.mxu0
  %v1234 = vpop.f32.mrf.mxu0
  %v1235 = vadd.f32 0.0, %v1234
  %v1236 = vpop.f32.mrf.mxu0
  %1237 = vmatprep.mubr.bf16.mxu0 0
  %1238 = vmatmul.mubr.bf16.gmra.mxu0 %v988
  %v1239 = vpop.f32.mrf.mxu0
  %v1240 = vadd.f32 0.0, %v1239
  %v1241 = vpop.f32.mrf.mxu0
  %v1242 = vpop.f32.mrf.mxu0
  %v1243 = vadd.f32 0.0, %v1242
  %v1244 = vpop.f32.mrf.mxu0
  %1245 = vmatprep.mubr.bf16.mxu0 0
  %1246 = vmatmul.mubr.bf16.gmra.mxu0 %v989
  %v1247 = vpop.f32.mrf.mxu0
  %v1248 = vadd.f32 0.0, %v1247
  %v1249 = vpop.f32.mrf.mxu0
  %v1250 = vpop.f32.mrf.mxu0
  %v1251 = vadd.f32 0.0, %v1250
  %v1252 = vpop.f32.mrf.mxu0
  %1253 = vmatprep.mubr.bf16.mxu0 0
  %1254 = vmatmul.mubr.bf16.gmra.mxu0 %v990
  %v1255 = vpop.f32.mrf.mxu0
  %v1256 = vadd.f32 0.0, %v1255
  %v1257 = vpop.f32.mrf.mxu0
  %v1258 = vpop.f32.mrf.mxu0
  %v1259 = vadd.f32 0.0, %v1258
  %v1260 = vpop.f32.mrf.mxu0
  %1261 = vmatprep.mubr.bf16.mxu0 0
  %1262 = vmatmul.mubr.bf16.gmra.mxu0 %v991
  %v1263 = vpop.f32.mrf.mxu0
  %v1264 = vadd.f32 0.0, %v1263
  %v1265 = vpop.f32.mrf.mxu0
  %v1266 = vpop.f32.mrf.mxu0
  %v1267 = vadd.f32 0.0, %v1266
  %v1268 = vpop.f32.mrf.mxu0
  %1269 = vmatprep.mubr.bf16.mxu0 0
  %1270 = vmatmul.mubr.bf16.gmra.mxu0 %v992
  %v1271 = vpop.f32.mrf.mxu0
  %v1272 = vadd.f32 0.0, %v1271
  %v1273 = vpop.f32.mrf.mxu0
  %v1274 = vpop.f32.mrf.mxu0
  %v1275 = vadd.f32 0.0, %v1274
  %v1276 = vpop.f32.mrf.mxu0
  %1277 = vmatprep.mubr.bf16.mxu0 0
  %1278 = vmatmul.mubr.bf16.gmra.mxu0 %v993
  %v1279 = vpop.f32.mrf.mxu0
  %v1280 = vadd.f32 0.0, %v1279
  %v1281 = vpop.f32.mrf.mxu0
  %v1282 = vpop.f32.mrf.mxu0
  %v1283 = vadd.f32 0.0, %v1282
  %v1284 = vpop.f32.mrf.mxu0
  %1285 = vmatprep.mubr.bf16.mxu0 0
  %1286 = vmatmul.mubr.bf16.gmra.mxu0 %v994
  %v1287 = vpop.f32.mrf.mxu0
  %v1288 = vadd.f32 0.0, %v1287
  %v1289 = vpop.f32.mrf.mxu0
  %v1290 = vpop.f32.mrf.mxu0
  %v1291 = vadd.f32 0.0, %v1290
  %v1292 = vpop.f32.mrf.mxu0
  %1293 = vmatprep.mubr.bf16.mxu0 0
  %1294 = vmatmul.mubr.bf16.gmra.mxu0 %v995
  %v1295 = vpop.f32.mrf.mxu0
  %v1296 = vadd.f32 0.0, %v1295
  %v1297 = vpop.f32.mrf.mxu0
  %v1298 = vpop.f32.mrf.mxu0
  %v1299 = vadd.f32 0.0, %v1298
  %v1300 = vpop.f32.mrf.mxu0
  %1301 = vmatprep.mubr.bf16.mxu0 0
  %1302 = vmatmul.mubr.bf16.gmra.mxu0 %v996
  %v1303 = vpop.f32.mrf.mxu0
  %v1304 = vadd.f32 0.0, %v1303
  %v1305 = vpop.f32.mrf.mxu0
  %v1306 = vpop.f32.mrf.mxu0
  %v1307 = vadd.f32 0.0, %v1306
  %v1308 = vpop.f32.mrf.mxu0
  %1309 = vmatprep.mubr.bf16.mxu0 0
  %1310 = vmatmul.mubr.bf16.gmra.mxu0 %v997
  %v1311 = vpop.f32.mrf.mxu0
  %v1312 = vadd.f32 0.0, %v1311
  %v1313 = vpop.f32.mrf.mxu0
  %v1314 = vpop.f32.mrf.mxu0
  %v1315 = vadd.f32 0.0, %v1314
  %v1316 = vpop.f32.mrf.mxu0
  %1317 = vmatprep.mubr.bf16.mxu0 0
  %1318 = vmatmul.mubr.bf16.gmra.mxu0 %v998
  %v1319 = vpop.f32.mrf.mxu0
  %v1320 = vadd.f32 0.0, %v1319
  %v1321 = vpop.f32.mrf.mxu0
  %v1322 = vpop.f32.mrf.mxu0
  %v1323 = vadd.f32 0.0, %v1322
  %v1324 = vpop.f32.mrf.mxu0
  %1325 = vmatprep.mubr.bf16.mxu0 0
  %1326 = vmatmul.mubr.bf16.gmra.mxu0 %v999
  %v1327 = vpop.f32.mrf.mxu0
  %v1328 = vadd.f32 0.0, %v1327
  %v1329 = vpop.f32.mrf.mxu0
  %v1330 = vpop.f32.mrf.mxu0
  %v1331 = vadd.f32 0.0, %v1330
  %v1332 = vpop.f32.mrf.mxu0
  %1333 = vmatprep.mubr.bf16.mxu0 0
  %1334 = vmatmul.mubr.bf16.gmra.mxu0 %v1000
  %v1335 = vpop.f32.mrf.mxu0
  %v1336 = vadd.f32 0.0, %v1335
  %v1337 = vpop.f32.mrf.mxu0
  %v1338 = vpop.f32.mrf.mxu0
  %v1339 = vadd.f32 0.0, %v1338
  %v1340 = vpop.f32.mrf.mxu0
  %1341 = vmatprep.mubr.bf16.mxu0 0
  %1342 = vmatmul.mubr.bf16.gmra.mxu0 %v1001
  %v1343 = vpop.f32.mrf.mxu0
  %v1344 = vadd.f32 0.0, %v1343
  %v1345 = vpop.f32.mrf.mxu0
  %v1346 = vpop.f32.mrf.mxu0
  %v1347 = vadd.f32 0.0, %v1346
  %v1348 = vpop.f32.mrf.mxu0
  %1349 = vmatprep.mubr.bf16.mxu0 0
  %1350 = vmatmul.mubr.bf16.gmra.mxu0 %v1002
  %v1351 = vpop.f32.mrf.mxu0
  %v1352 = vadd.f32 0.0, %v1351
  %v1353 = vpop.f32.mrf.mxu0
  %v1354 = vpop.f32.mrf.mxu0
  %v1355 = vadd.f32 0.0, %v1354
  %v1356 = vpop.f32.mrf.mxu0
  %1357 = vmatprep.mubr.bf16.mxu0 0
  %1358 = vmatmul.mubr.bf16.gmra.mxu0 %v1003
  %v1359 = vpop.f32.mrf.mxu0
  %v1360 = vadd.f32 0.0, %v1359
  %v1361 = vpop.f32.mrf.mxu0
  %v1362 = vpop.f32.mrf.mxu0
  %v1363 = vadd.f32 0.0, %v1362
  %v1364 = vpop.f32.mrf.mxu0
  %1365 = vmatprep.mubr.bf16.mxu0 0
  %1366 = vmatmul.mubr.bf16.gmra.mxu0 %v1004
  %v1367 = vpop.f32.mrf.mxu0
  %v1368 = vadd.f32 0.0, %v1367
  %v1369 = vpop.f32.mrf.mxu0
  %v1370 = vpop.f32.mrf.mxu0
  %v1371 = vadd.f32 0.0, %v1370
  %v1372 = vpop.f32.mrf.mxu0
  %1373 = vdwg.mxu0
  %v1390 = vunpack.c.l.b16 %v1005
  %v1391 = vunpack.c.l.b16 %v1006
  %v1392 = vunpack.c.l.b16 %v1007
  %v1393 = vunpack.c.l.b16 %v1008
  %v1394 = vunpack.c.l.b16 %v1009
  %v1395 = vunpack.c.l.b16 %v1010
  %v1396 = vunpack.c.l.b16 %v1011
  %v1397 = vunpack.c.l.b16 %v1012
  %v1398 = vunpack.c.l.b16 %v1013
  %v1399 = vunpack.c.l.b16 %v1014
  %v1400 = vunpack.c.l.b16 %v1015
  %v1401 = vunpack.c.l.b16 %v1016
  %v1402 = vunpack.c.l.b16 %v1017
  %v1403 = vunpack.c.l.b16 %v1018
  %v1404 = vunpack.c.l.b16 %v1019
  %v1405 = vunpack.c.l.b16 %v1020
  %v1406 = vpack.c.b16 %v1391, %v1390
  %v1407 = vpack.c.b16 %v1393, %v1392
  %v1408 = vpack.c.b16 %v1395, %v1394
  %v1409 = vpack.c.b16 %v1397, %v1396
  %v1410 = vpack.c.b16 %v1399, %v1398
  %v1411 = vpack.c.b16 %v1401, %v1400
  %v1412 = vpack.c.b16 %v1403, %v1402
  %v1413 = vpack.c.b16 %v1405, %v1404
  %1422 = vmatprep.subr.bf16.mxu0 0
  %1423 = vmatpush1.bf16.msra.mxu0 %v1413
  %1424 = vmatprep.subr.bf16.mxu0 0
  %1425 = vmatpush1.bf16.msra.mxu0 %v1412
  %1426 = vmatprep.subr.bf16.mxu0 0
  %1427 = vmatpush1.bf16.msra.mxu0 %v1411
  %1428 = vmatprep.subr.bf16.mxu0 0
  %1429 = vmatpush1.bf16.msra.mxu0 %v1410
  %1430 = vmatprep.subr.bf16.mxu0 0
  %1431 = vmatpush1.bf16.msra.mxu0 %v1409
  %1432 = vmatprep.subr.bf16.mxu0 0
  %1433 = vmatpush1.bf16.msra.mxu0 %v1408
  %1434 = vmatprep.subr.bf16.mxu0 0
  %1435 = vmatpush1.bf16.msra.mxu0 %v1407
  %1436 = vmatprep.subr.bf16.mxu0 0
  %1437 = vmatpush1.bf16.msra.mxu0 %v1406
  %1438 = vmatprep.subr.bf16.mxu0 0
  %1439 = vmatpush2.bf16.msra.mxu0 0
  %1440 = vmatprep.subr.bf16.mxu0 0
  %1441 = vmatpush2.bf16.msra.mxu0 0
  %1442 = vmatprep.subr.bf16.mxu0 0
  %1443 = vmatpush2.bf16.msra.mxu0 0
  %1444 = vmatprep.subr.bf16.mxu0 0
  %1445 = vmatpush2.bf16.msra.mxu0 0
  %1446 = vmatprep.subr.bf16.mxu0 0
  %1447 = vmatpush2.bf16.msra.mxu0 0
  %1448 = vmatprep.subr.bf16.mxu0 0
  %1449 = vmatpush2.bf16.msra.mxu0 0
  %1450 = vmatprep.subr.bf16.mxu0 0
  %1451 = vmatpush2.bf16.msra.mxu0 0
  %1452 = vmatprep.subr.bf16.mxu0 0
  %1453 = vmatpush2.bf16.msra.mxu0 0
  %1454 = vmatprep.mubr.bf16.mxu0 0
  %1455 = vmatmul.mubr.bf16.gmra.mxu0 %v557
  %v1456 = vpop.f32.mrf.mxu0
  %v1457 = vadd.f32 %v1120, %v1456
  %v1458 = vpop.f32.mrf.mxu0
  %v1459 = vpop.f32.mrf.mxu0
  %v1460 = vadd.f32 %v1123, %v1459
  %v1461 = vpop.f32.mrf.mxu0
  %1462 = vmatprep.mubr.bf16.mxu0 0
  %1463 = vmatmul.mubr.bf16.gmra.mxu0 %v558
  %v1464 = vpop.f32.mrf.mxu0
  %v1465 = vadd.f32 %v1128, %v1464
  %v1466 = vpop.f32.mrf.mxu0
  %v1467 = vpop.f32.mrf.mxu0
  %v1468 = vadd.f32 %v1131, %v1467
  %v1469 = vpop.f32.mrf.mxu0
  %1470 = vmatprep.mubr.bf16.mxu0 0
  %1471 = vmatmul.mubr.bf16.gmra.mxu0 %v559
  %v1472 = vpop.f32.mrf.mxu0
  %v1473 = vadd.f32 %v1136, %v1472
  %v1474 = vpop.f32.mrf.mxu0
  %v1475 = vpop.f32.mrf.mxu0
  %v1476 = vadd.f32 %v1139, %v1475
  %v1477 = vpop.f32.mrf.mxu0
  %1478 = vmatprep.mubr.bf16.mxu0 0
  %1479 = vmatmul.mubr.bf16.gmra.mxu0 %v560
  %v1480 = vpop.f32.mrf.mxu0
  %v1481 = vadd.f32 %v1144, %v1480
  %v1482 = vpop.f32.mrf.mxu0
  %v1483 = vpop.f32.mrf.mxu0
  %v1484 = vadd.f32 %v1147, %v1483
  %v1485 = vpop.f32.mrf.mxu0
  %1486 = vmatprep.mubr.bf16.mxu0 0
  %1487 = vmatmul.mubr.bf16.gmra.mxu0 %v561
  %v1488 = vpop.f32.mrf.mxu0
  %v1489 = vadd.f32 %v1152, %v1488
  %v1490 = vpop.f32.mrf.mxu0
  %v1491 = vpop.f32.mrf.mxu0
  %v1492 = vadd.f32 %v1155, %v1491
  %v1493 = vpop.f32.mrf.mxu0
  %1494 = vmatprep.mubr.bf16.mxu0 0
  %1495 = vmatmul.mubr.bf16.gmra.mxu0 %v562
  %v1496 = vpop.f32.mrf.mxu0
  %v1497 = vadd.f32 %v1160, %v1496
  %v1498 = vpop.f32.mrf.mxu0
  %v1499 = vpop.f32.mrf.mxu0
  %v1500 = vadd.f32 %v1163, %v1499
  %v1501 = vpop.f32.mrf.mxu0
  %1502 = vmatprep.mubr.bf16.mxu0 0
  %1503 = vmatmul.mubr.bf16.gmra.mxu0 %v563
  %v1504 = vpop.f32.mrf.mxu0
  %v1505 = vadd.f32 %v1168, %v1504
  %v1506 = vpop.f32.mrf.mxu0
  %v1507 = vpop.f32.mrf.mxu0
  %v1508 = vadd.f32 %v1171, %v1507
  %v1509 = vpop.f32.mrf.mxu0
  %1510 = vmatprep.mubr.bf16.mxu0 0
  %1511 = vmatmul.mubr.bf16.gmra.mxu0 %v564
  %v1512 = vpop.f32.mrf.mxu0
  %v1513 = vadd.f32 %v1176, %v1512
  %v1514 = vpop.f32.mrf.mxu0
  %v1515 = vpop.f32.mrf.mxu0
  %v1516 = vadd.f32 %v1179, %v1515
  %v1517 = vpop.f32.mrf.mxu0
  %1518 = vmatprep.mubr.bf16.mxu0 0
  %1519 = vmatmul.mubr.bf16.gmra.mxu0 %v565
  %v1520 = vpop.f32.mrf.mxu0
  %v1521 = vadd.f32 %v1184, %v1520
  %v1522 = vpop.f32.mrf.mxu0
  %v1523 = vpop.f32.mrf.mxu0
  %v1524 = vadd.f32 %v1187, %v1523
  %v1525 = vpop.f32.mrf.mxu0
  %1526 = vmatprep.mubr.bf16.mxu0 0
  %1527 = vmatmul.mubr.bf16.gmra.mxu0 %v566
  %v1528 = vpop.f32.mrf.mxu0
  %v1529 = vadd.f32 %v1192, %v1528
  %v1530 = vpop.f32.mrf.mxu0
  %v1531 = vpop.f32.mrf.mxu0
  %v1532 = vadd.f32 %v1195, %v1531
  %v1533 = vpop.f32.mrf.mxu0
  %1534 = vmatprep.mubr.bf16.mxu0 0
  %1535 = vmatmul.mubr.bf16.gmra.mxu0 %v567
  %v1536 = vpop.f32.mrf.mxu0
  %v1537 = vadd.f32 %v1200, %v1536
  %v1538 = vpop.f32.mrf.mxu0
  %v1539 = vpop.f32.mrf.mxu0
  %v1540 = vadd.f32 %v1203, %v1539
  %v1541 = vpop.f32.mrf.mxu0
  %1542 = vmatprep.mubr.bf16.mxu0 0
  %1543 = vmatmul.mubr.bf16.gmra.mxu0 %v568
  %v1544 = vpop.f32.mrf.mxu0
  %v1545 = vadd.f32 %v1208, %v1544
  %v1546 = vpop.f32.mrf.mxu0
  %v1547 = vpop.f32.mrf.mxu0
  %v1548 = vadd.f32 %v1211, %v1547
  %v1549 = vpop.f32.mrf.mxu0
  %1550 = vmatprep.mubr.bf16.mxu0 0
  %1551 = vmatmul.mubr.bf16.gmra.mxu0 %v569
  %v1552 = vpop.f32.mrf.mxu0
  %v1553 = vadd.f32 %v1216, %v1552
  %v1554 = vpop.f32.mrf.mxu0
  %v1555 = vpop.f32.mrf.mxu0
  %v1556 = vadd.f32 %v1219, %v1555
  %v1557 = vpop.f32.mrf.mxu0
  %1558 = vmatprep.mubr.bf16.mxu0 0
  %1559 = vmatmul.mubr.bf16.gmra.mxu0 %v570
  %v1560 = vpop.f32.mrf.mxu0
  %v1561 = vadd.f32 %v1224, %v1560
  %v1562 = vpop.f32.mrf.mxu0
  %v1563 = vpop.f32.mrf.mxu0
  %v1564 = vadd.f32 %v1227, %v1563
  %v1565 = vpop.f32.mrf.mxu0
  %1566 = vmatprep.mubr.bf16.mxu0 0
  %1567 = vmatmul.mubr.bf16.gmra.mxu0 %v571
  %v1568 = vpop.f32.mrf.mxu0
  %v1569 = vadd.f32 %v1232, %v1568
  %v1570 = vpop.f32.mrf.mxu0
  %v1571 = vpop.f32.mrf.mxu0
  %v1572 = vadd.f32 %v1235, %v1571
  %v1573 = vpop.f32.mrf.mxu0
  %1574 = vmatprep.mubr.bf16.mxu0 0
  %1575 = vmatmul.mubr.bf16.gmra.mxu0 %v572
  %v1576 = vpop.f32.mrf.mxu0
  %v1577 = vadd.f32 %v1240, %v1576
  %v1578 = vpop.f32.mrf.mxu0
  %v1579 = vpop.f32.mrf.mxu0
  %v1580 = vadd.f32 %v1243, %v1579
  %v1581 = vpop.f32.mrf.mxu0
  %1582 = vmatprep.mubr.bf16.mxu0 0
  %1583 = vmatmul.mubr.bf16.gmra.mxu0 %v573
  %v1584 = vpop.f32.mrf.mxu0
  %v1585 = vadd.f32 %v1248, %v1584
  %v1586 = vpop.f32.mrf.mxu0
  %v1587 = vpop.f32.mrf.mxu0
  %v1588 = vadd.f32 %v1251, %v1587
  %v1589 = vpop.f32.mrf.mxu0
  %1590 = vmatprep.mubr.bf16.mxu0 0
  %1591 = vmatmul.mubr.bf16.gmra.mxu0 %v574
  %v1592 = vpop.f32.mrf.mxu0
  %v1593 = vadd.f32 %v1256, %v1592
  %v1594 = vpop.f32.mrf.mxu0
  %v1595 = vpop.f32.mrf.mxu0
  %v1596 = vadd.f32 %v1259, %v1595
  %v1597 = vpop.f32.mrf.mxu0
  %1598 = vmatprep.mubr.bf16.mxu0 0
  %1599 = vmatmul.mubr.bf16.gmra.mxu0 %v575
  %v1600 = vpop.f32.mrf.mxu0
  %v1601 = vadd.f32 %v1264, %v1600
  %v1602 = vpop.f32.mrf.mxu0
  %v1603 = vpop.f32.mrf.mxu0
  %v1604 = vadd.f32 %v1267, %v1603
  %v1605 = vpop.f32.mrf.mxu0
  %1606 = vmatprep.mubr.bf16.mxu0 0
  %1607 = vmatmul.mubr.bf16.gmra.mxu0 %v576
  %v1608 = vpop.f32.mrf.mxu0
  %v1609 = vadd.f32 %v1272, %v1608
  %v1610 = vpop.f32.mrf.mxu0
  %v1611 = vpop.f32.mrf.mxu0
  %v1612 = vadd.f32 %v1275, %v1611
  %v1613 = vpop.f32.mrf.mxu0
  %1614 = vmatprep.mubr.bf16.mxu0 0
  %1615 = vmatmul.mubr.bf16.gmra.mxu0 %v577
  %v1616 = vpop.f32.mrf.mxu0
  %v1617 = vadd.f32 %v1280, %v1616
  %v1618 = vpop.f32.mrf.mxu0
  %v1619 = vpop.f32.mrf.mxu0
  %v1620 = vadd.f32 %v1283, %v1619
  %v1621 = vpop.f32.mrf.mxu0
  %1622 = vmatprep.mubr.bf16.mxu0 0
  %1623 = vmatmul.mubr.bf16.gmra.mxu0 %v578
  %v1624 = vpop.f32.mrf.mxu0
  %v1625 = vadd.f32 %v1288, %v1624
  %v1626 = vpop.f32.mrf.mxu0
  %v1627 = vpop.f32.mrf.mxu0
  %v1628 = vadd.f32 %v1291, %v1627
  %v1629 = vpop.f32.mrf.mxu0
  %1630 = vmatprep.mubr.bf16.mxu0 0
  %1631 = vmatmul.mubr.bf16.gmra.mxu0 %v579
  %v1632 = vpop.f32.mrf.mxu0
  %v1633 = vadd.f32 %v1296, %v1632
  %v1634 = vpop.f32.mrf.mxu0
  %v1635 = vpop.f32.mrf.mxu0
  %v1636 = vadd.f32 %v1299, %v1635
  %v1637 = vpop.f32.mrf.mxu0
  %1638 = vmatprep.mubr.bf16.mxu0 0
  %1639 = vmatmul.mubr.bf16.gmra.mxu0 %v580
  %v1640 = vpop.f32.mrf.mxu0
  %v1641 = vadd.f32 %v1304, %v1640
  %v1642 = vpop.f32.mrf.mxu0
  %v1643 = vpop.f32.mrf.mxu0
  %v1644 = vadd.f32 %v1307, %v1643
  %v1645 = vpop.f32.mrf.mxu0
  %1646 = vmatprep.mubr.bf16.mxu0 0
  %1647 = vmatmul.mubr.bf16.gmra.mxu0 %v581
  %v1648 = vpop.f32.mrf.mxu0
  %v1649 = vadd.f32 %v1312, %v1648
  %v1650 = vpop.f32.mrf.mxu0
  %v1651 = vpop.f32.mrf.mxu0
  %v1652 = vadd.f32 %v1315, %v1651
  %v1653 = vpop.f32.mrf.mxu0
  %1654 = vmatprep.mubr.bf16.mxu0 0
  %1655 = vmatmul.mubr.bf16.gmra.mxu0 %v582
  %v1656 = vpop.f32.mrf.mxu0
  %v1657 = vadd.f32 %v1320, %v1656
  %v1658 = vpop.f32.mrf.mxu0
  %v1659 = vpop.f32.mrf.mxu0
  %v1660 = vadd.f32 %v1323, %v1659
  %v1661 = vpop.f32.mrf.mxu0
  %1662 = vmatprep.mubr.bf16.mxu0 0
  %1663 = vmatmul.mubr.bf16.gmra.mxu0 %v583
  %v1664 = vpop.f32.mrf.mxu0
  %v1665 = vadd.f32 %v1328, %v1664
  %v1666 = vpop.f32.mrf.mxu0
  %v1667 = vpop.f32.mrf.mxu0
  %v1668 = vadd.f32 %v1331, %v1667
  %v1669 = vpop.f32.mrf.mxu0
  %1670 = vmatprep.mubr.bf16.mxu0 0
  %1671 = vmatmul.mubr.bf16.gmra.mxu0 %v584
  %v1672 = vpop.f32.mrf.mxu0
  %v1673 = vadd.f32 %v1336, %v1672
  %v1674 = vpop.f32.mrf.mxu0
  %v1675 = vpop.f32.mrf.mxu0
  %v1676 = vadd.f32 %v1339, %v1675
  %v1677 = vpop.f32.mrf.mxu0
  %1678 = vmatprep.mubr.bf16.mxu0 0
  %1679 = vmatmul.mubr.bf16.gmra.mxu0 %v585
  %v1680 = vpop.f32.mrf.mxu0
  %v1681 = vadd.f32 %v1344, %v1680
  %v1682 = vpop.f32.mrf.mxu0
  %v1683 = vpop.f32.mrf.mxu0
  %v1684 = vadd.f32 %v1347, %v1683
  %v1685 = vpop.f32.mrf.mxu0
  %1686 = vmatprep.mubr.bf16.mxu0 0
  %1687 = vmatmul.mubr.bf16.gmra.mxu0 %v586
  %v1688 = vpop.f32.mrf.mxu0
  %v1689 = vadd.f32 %v1352, %v1688
  %v1690 = vpop.f32.mrf.mxu0
  %v1691 = vpop.f32.mrf.mxu0
  %v1692 = vadd.f32 %v1355, %v1691
  %v1693 = vpop.f32.mrf.mxu0
  %1694 = vmatprep.mubr.bf16.mxu0 0
  %1695 = vmatmul.mubr.bf16.gmra.mxu0 %v587
  %v1696 = vpop.f32.mrf.mxu0
  %v1697 = vadd.f32 %v1360, %v1696
  %v1698 = vpop.f32.mrf.mxu0
  %v1699 = vpop.f32.mrf.mxu0
  %v1700 = vadd.f32 %v1363, %v1699
  %v1701 = vpop.f32.mrf.mxu0
  %1702 = vmatprep.mubr.bf16.mxu0 0
  %1703 = vmatmul.mubr.bf16.gmra.mxu0 %v588
  %v1704 = vpop.f32.mrf.mxu0
  %v1705 = vadd.f32 %v1368, %v1704
  %v1706 = vpop.f32.mrf.mxu0
  %v1707 = vpop.f32.mrf.mxu0
  %v1708 = vadd.f32 %v1371, %v1707
  %v1709 = vpop.f32.mrf.mxu0
  %1710 = vdwg.mxu0
  %v1711 = vld [vmem:[%s2] sm:$0xff]
  %v1712 = vld [vmem:[%s2 + $0x8] sm:$0xff]
  %v1713 = vld [vmem:[%s2 + $0x10] sm:$0xff]
  %v1714 = vld [vmem:[%s2 + $0x18] sm:$0xff]
  %v1715 = vld [vmem:[%s2 + $0x20] sm:$0xff]
  %v1716 = vld [vmem:[%s2 + $0x28] sm:$0xff]
  %v1717 = vld [vmem:[%s2 + $0x30] sm:$0xff]
  %v1718 = vld [vmem:[%s2 + $0x38] sm:$0xff]
  %v1719 = vld [vmem:[%s2 + $0x40] sm:$0xff]
  %v1720 = vld [vmem:[%s2 + $0x48] sm:$0xff]
  %v1721 = vld [vmem:[%s2 + $0x50] sm:$0xff]
  %v1722 = vld [vmem:[%s2 + $0x58] sm:$0xff]
  %v1723 = vld [vmem:[%s2 + $0x60] sm:$0xff]
  %v1724 = vld [vmem:[%s2 + $0x68] sm:$0xff]
  %v1725 = vld [vmem:[%s2 + $0x70] sm:$0xff]
  %v1726 = vld [vmem:[%s2 + $0x78] sm:$0xff]
  %v1727 = vld [vmem:[%s2 + $0x80] sm:$0xff]
  %v1728 = vld [vmem:[%s2 + $0x88] sm:$0xff]
  %v1729 = vld [vmem:[%s2 + $0x90] sm:$0xff]
  %v1730 = vld [vmem:[%s2 + $0x98] sm:$0xff]
  %v1731 = vld [vmem:[%s2 + $0xa0] sm:$0xff]
  %v1732 = vld [vmem:[%s2 + $0xa8] sm:$0xff]
  %v1733 = vld [vmem:[%s2 + $0xb0] sm:$0xff]
  %v1734 = vld [vmem:[%s2 + $0xb8] sm:$0xff]
  %v1735 = vld [vmem:[%s2 + $0xc0] sm:$0xff]
  %v1736 = vld [vmem:[%s2 + $0xc8] sm:$0xff]
  %v1737 = vld [vmem:[%s2 + $0xd0] sm:$0xff]
  %v1738 = vld [vmem:[%s2 + $0xd8] sm:$0xff]
  %v1739 = vld [vmem:[%s2 + $0xe0] sm:$0xff]
  %v1740 = vld [vmem:[%s2 + $0xe8] sm:$0xff]
  %v1741 = vld [vmem:[%s2 + $0xf0] sm:$0xff]
  %v1742 = vld [vmem:[%s2 + $0xf8] sm:$0xff]
  %v1743 = vld [vmem:[%s2 + $0x100] sm:$0xff]
  %v1744 = vld [vmem:[%s2 + $0x108] sm:$0xff]
  %v1745 = vld [vmem:[%s2 + $0x110] sm:$0xff]
  %v1746 = vld [vmem:[%s2 + $0x118] sm:$0xff]
  %v1747 = vld [vmem:[%s2 + $0x120] sm:$0xff]
  %v1748 = vld [vmem:[%s2 + $0x128] sm:$0xff]
  %v1749 = vld [vmem:[%s2 + $0x130] sm:$0xff]
  %v1750 = vld [vmem:[%s2 + $0x138] sm:$0xff]
  %v1751 = vld [vmem:[%s2 + $0x140] sm:$0xff]
  %v1752 = vld [vmem:[%s2 + $0x148] sm:$0xff]
  %v1753 = vld [vmem:[%s2 + $0x150] sm:$0xff]
  %v1754 = vld [vmem:[%s2 + $0x158] sm:$0xff]
  %v1755 = vld [vmem:[%s2 + $0x160] sm:$0xff]
  %v1756 = vld [vmem:[%s2 + $0x168] sm:$0xff]
  %v1757 = vld [vmem:[%s2 + $0x170] sm:$0xff]
  %v1758 = vld [vmem:[%s2 + $0x178] sm:$0xff]
  %v1759 = vld [vmem:[%s2 + $0x180] sm:$0xff]
  %v1760 = vld [vmem:[%s2 + $0x188] sm:$0xff]
  %v1761 = vld [vmem:[%s2 + $0x190] sm:$0xff]
  %v1762 = vld [vmem:[%s2 + $0x198] sm:$0xff]
  %v1763 = vld [vmem:[%s2 + $0x1a0] sm:$0xff]
  %v1764 = vld [vmem:[%s2 + $0x1a8] sm:$0xff]
  %v1765 = vld [vmem:[%s2 + $0x1b0] sm:$0xff]
  %v1766 = vld [vmem:[%s2 + $0x1b8] sm:$0xff]
  %v1767 = vld [vmem:[%s2 + $0x1c0] sm:$0xff]
  %v1768 = vld [vmem:[%s2 + $0x1c8] sm:$0xff]
  %v1769 = vld [vmem:[%s2 + $0x1d0] sm:$0xff]
  %v1770 = vld [vmem:[%s2 + $0x1d8] sm:$0xff]
  %v1771 = vld [vmem:[%s2 + $0x1e0] sm:$0xff]
  %v1772 = vld [vmem:[%s2 + $0x1e8] sm:$0xff]
  %v1773 = vld [vmem:[%s2 + $0x1f0] sm:$0xff]
  %v1774 = vld [vmem:[%s2 + $0x1f8] sm:$0xff]
  %v1775 = vld [vmem:[%s5] sm:$0x1]
  %1777 = vset.pattern.permute.xlu0 0
  %1778 = vperm.xlu0 %1777, %v1711
  %v1779 = vpop.permute.xlu0 %1778
  %1782 = vset.pattern.permute.xlu0 0
  %1783 = vperm.xlu0 %1782, %v1712
  %v1784 = vpop.permute.xlu0 %1783
  %1787 = vset.pattern.permute.xlu0 0
  %1788 = vperm.xlu0 %1787, %v1713
  %v1789 = vpop.permute.xlu0 %1788
  %1792 = vset.pattern.permute.xlu0 0
  %1793 = vperm.xlu0 %1792, %v1714
  %v1794 = vpop.permute.xlu0 %1793
  %1797 = vset.pattern.permute.xlu0 0
  %1798 = vperm.xlu0 %1797, %v1715
  %v1799 = vpop.permute.xlu0 %1798
  %1802 = vset.pattern.permute.xlu0 0
  %1803 = vperm.xlu0 %1802, %v1716
  %v1804 = vpop.permute.xlu0 %1803
  %1807 = vset.pattern.permute.xlu0 0
  %1808 = vperm.xlu0 %1807, %v1717
  %v1809 = vpop.permute.xlu0 %1808
  %1812 = vset.pattern.permute.xlu0 0
  %1813 = vperm.xlu0 %1812, %v1718
  %v1814 = vpop.permute.xlu0 %1813
  %1817 = vset.pattern.permute.xlu0 0
  %1818 = vperm.xlu0 %1817, %v1719
  %v1819 = vpop.permute.xlu0 %1818
  %1822 = vset.pattern.permute.xlu0 0
  %1823 = vperm.xlu0 %1822, %v1720
  %v1824 = vpop.permute.xlu0 %1823
  %1827 = vset.pattern.permute.xlu0 0
  %1828 = vperm.xlu0 %1827, %v1721
  %v1829 = vpop.permute.xlu0 %1828
  %1832 = vset.pattern.permute.xlu0 0
  %1833 = vperm.xlu0 %1832, %v1722
  %v1834 = vpop.permute.xlu0 %1833
  %1837 = vset.pattern.permute.xlu0 0
  %1838 = vperm.xlu0 %1837, %v1723
  %v1839 = vpop.permute.xlu0 %1838
  %1842 = vset.pattern.permute.xlu0 0
  %1843 = vperm.xlu0 %1842, %v1724
  %v1844 = vpop.permute.xlu0 %1843
  %1847 = vset.pattern.permute.xlu0 0
  %1848 = vperm.xlu0 %1847, %v1725
  %v1849 = vpop.permute.xlu0 %1848
  %1852 = vset.pattern.permute.xlu0 0
  %1853 = vperm.xlu0 %1852, %v1726
  %v1854 = vpop.permute.xlu0 %1853
  %1857 = vset.pattern.permute.xlu0 0
  %1858 = vperm.xlu0 %1857, %v1727
  %v1859 = vpop.permute.xlu0 %1858
  %1862 = vset.pattern.permute.xlu0 0
  %1863 = vperm.xlu0 %1862, %v1728
  %v1864 = vpop.permute.xlu0 %1863
  %1867 = vset.pattern.permute.xlu0 0
  %1868 = vperm.xlu0 %1867, %v1729
  %v1869 = vpop.permute.xlu0 %1868
  %1872 = vset.pattern.permute.xlu0 0
  %1873 = vperm.xlu0 %1872, %v1730
  %v1874 = vpop.permute.xlu0 %1873
  %1877 = vset.pattern.permute.xlu0 0
  %1878 = vperm.xlu0 %1877, %v1731
  %v1879 = vpop.permute.xlu0 %1878
  %1882 = vset.pattern.permute.xlu0 0
  %1883 = vperm.xlu0 %1882, %v1732
  %v1884 = vpop.permute.xlu0 %1883
  %1887 = vset.pattern.permute.xlu0 0
  %1888 = vperm.xlu0 %1887, %v1733
  %v1889 = vpop.permute.xlu0 %1888
  %1892 = vset.pattern.permute.xlu0 0
  %1893 = vperm.xlu0 %1892, %v1734
  %v1894 = vpop.permute.xlu0 %1893
  %1897 = vset.pattern.permute.xlu0 0
  %1898 = vperm.xlu0 %1897, %v1735
  %v1899 = vpop.permute.xlu0 %1898
  %1902 = vset.pattern.permute.xlu0 0
  %1903 = vperm.xlu0 %1902, %v1736
  %v1904 = vpop.permute.xlu0 %1903
  %1907 = vset.pattern.permute.xlu0 0
  %1908 = vperm.xlu0 %1907, %v1737
  %v1909 = vpop.permute.xlu0 %1908
  %1912 = vset.pattern.permute.xlu0 0
  %1913 = vperm.xlu0 %1912, %v1738
  %v1914 = vpop.permute.xlu0 %1913
  %1917 = vset.pattern.permute.xlu0 0
  %1918 = vperm.xlu0 %1917, %v1739
  %v1919 = vpop.permute.xlu0 %1918
  %1922 = vset.pattern.permute.xlu0 0
  %1923 = vperm.xlu0 %1922, %v1740
  %v1924 = vpop.permute.xlu0 %1923
  %1927 = vset.pattern.permute.xlu0 0
  %1928 = vperm.xlu0 %1927, %v1741
  %v1929 = vpop.permute.xlu0 %1928
  %1932 = vset.pattern.permute.xlu0 0
  %1933 = vperm.xlu0 %1932, %v1742
  %v1934 = vpop.permute.xlu0 %1933
  %1937 = vset.pattern.permute.xlu0 0
  %1938 = vperm.xlu0 %1937, %v1743
  %v1939 = vpop.permute.xlu0 %1938
  %1942 = vset.pattern.permute.xlu0 0
  %1943 = vperm.xlu0 %1942, %v1744
  %v1944 = vpop.permute.xlu0 %1943
  %1947 = vset.pattern.permute.xlu0 0
  %1948 = vperm.xlu0 %1947, %v1745
  %v1949 = vpop.permute.xlu0 %1948
  %1952 = vset.pattern.permute.xlu0 0
  %1953 = vperm.xlu0 %1952, %v1746
  %v1954 = vpop.permute.xlu0 %1953
  %1957 = vset.pattern.permute.xlu0 0
  %1958 = vperm.xlu0 %1957, %v1747
  %v1959 = vpop.permute.xlu0 %1958
  %1962 = vset.pattern.permute.xlu0 0
  %1963 = vperm.xlu0 %1962, %v1748
  %v1964 = vpop.permute.xlu0 %1963
  %1967 = vset.pattern.permute.xlu0 0
  %1968 = vperm.xlu0 %1967, %v1749
  %v1969 = vpop.permute.xlu0 %1968
  %1972 = vset.pattern.permute.xlu0 0
  %1973 = vperm.xlu0 %1972, %v1750
  %v1974 = vpop.permute.xlu0 %1973
  %1977 = vset.pattern.permute.xlu0 0
  %1978 = vperm.xlu0 %1977, %v1751
  %v1979 = vpop.permute.xlu0 %1978
  %1982 = vset.pattern.permute.xlu0 0
  %1983 = vperm.xlu0 %1982, %v1752
  %v1984 = vpop.permute.xlu0 %1983
  %1987 = vset.pattern.permute.xlu0 0
  %1988 = vperm.xlu0 %1987, %v1753
  %v1989 = vpop.permute.xlu0 %1988
  %1992 = vset.pattern.permute.xlu0 0
  %1993 = vperm.xlu0 %1992, %v1754
  %v1994 = vpop.permute.xlu0 %1993
  %1997 = vset.pattern.permute.xlu0 0
  %1998 = vperm.xlu0 %1997, %v1755
  %v1999 = vpop.permute.xlu0 %1998
  %2002 = vset.pattern.permute.xlu0 0
  %2003 = vperm.xlu0 %2002, %v1756
  %v2004 = vpop.permute.xlu0 %2003
  %2007 = vset.pattern.permute.xlu0 0
  %2008 = vperm.xlu0 %2007, %v1757
  %v2009 = vpop.permute.xlu0 %2008
  %2012 = vset.pattern.permute.xlu0 0
  %2013 = vperm.xlu0 %2012, %v1758
  %v2014 = vpop.permute.xlu0 %2013
  %2017 = vset.pattern.permute.xlu0 0
  %2018 = vperm.xlu0 %2017, %v1759
  %v2019 = vpop.permute.xlu0 %2018
  %2022 = vset.pattern.permute.xlu0 0
  %2023 = vperm.xlu0 %2022, %v1760
  %v2024 = vpop.permute.xlu0 %2023
  %2027 = vset.pattern.permute.xlu0 0
  %2028 = vperm.xlu0 %2027, %v1761
  %v2029 = vpop.permute.xlu0 %2028
  %2032 = vset.pattern.permute.xlu0 0
  %2033 = vperm.xlu0 %2032, %v1762
  %v2034 = vpop.permute.xlu0 %2033
  %2037 = vset.pattern.permute.xlu0 0
  %2038 = vperm.xlu0 %2037, %v1763
  %v2039 = vpop.permute.xlu0 %2038
  %2042 = vset.pattern.permute.xlu0 0
  %2043 = vperm.xlu0 %2042, %v1764
  %v2044 = vpop.permute.xlu0 %2043
  %2047 = vset.pattern.permute.xlu0 0
  %2048 = vperm.xlu0 %2047, %v1765
  %v2049 = vpop.permute.xlu0 %2048
  %2052 = vset.pattern.permute.xlu0 0
  %2053 = vperm.xlu0 %2052, %v1766
  %v2054 = vpop.permute.xlu0 %2053
  %2057 = vset.pattern.permute.xlu0 0
  %2058 = vperm.xlu0 %2057, %v1767
  %v2059 = vpop.permute.xlu0 %2058
  %2062 = vset.pattern.permute.xlu0 0
  %2063 = vperm.xlu0 %2062, %v1768
  %v2064 = vpop.permute.xlu0 %2063
  %2067 = vset.pattern.permute.xlu0 0
  %2068 = vperm.xlu0 %2067, %v1769
  %v2069 = vpop.permute.xlu0 %2068
  %2072 = vset.pattern.permute.xlu0 0
  %2073 = vperm.xlu0 %2072, %v1770
  %v2074 = vpop.permute.xlu0 %2073
  %2077 = vset.pattern.permute.xlu0 0
  %2078 = vperm.xlu0 %2077, %v1771
  %v2079 = vpop.permute.xlu0 %2078
  %2082 = vset.pattern.permute.xlu0 0
  %2083 = vperm.xlu0 %2082, %v1772
  %v2084 = vpop.permute.xlu0 %2083
  %2087 = vset.pattern.permute.xlu0 0
  %2088 = vperm.xlu0 %2087, %v1773
  %v2089 = vpop.permute.xlu0 %2088
  %2092 = vset.pattern.permute.xlu0 0
  %2093 = vperm.xlu0 %2092, %v1774
  %v2094 = vpop.permute.xlu0 %2093
  %v2097 = vlaneseq
  %v2098 = vshrl.u32 %v2097, 7
  %v2099 = vsub.s32 0, %v2098
  %v2100 = vrot.slane %v1775, %v2099
  %v2102 = vmul.f32 %v1779, %v2100
  %v2103 = vmul.f32 %v1784, %v2100
  %v2104 = vmul.f32 %v1789, %v2100
  %v2105 = vmul.f32 %v1794, %v2100
  %v2106 = vmul.f32 %v1799, %v2100
  %v2107 = vmul.f32 %v1804, %v2100
  %v2108 = vmul.f32 %v1809, %v2100
  %v2109 = vmul.f32 %v1814, %v2100
  %v2110 = vmul.f32 %v1819, %v2100
  %v2111 = vmul.f32 %v1824, %v2100
  %v2112 = vmul.f32 %v1829, %v2100
  %v2113 = vmul.f32 %v1834, %v2100
  %v2114 = vmul.f32 %v1839, %v2100
  %v2115 = vmul.f32 %v1844, %v2100
  %v2116 = vmul.f32 %v1849, %v2100
  %v2117 = vmul.f32 %v1854, %v2100
  %v2118 = vmul.f32 %v1859, %v2100
  %v2119 = vmul.f32 %v1864, %v2100
  %v2120 = vmul.f32 %v1869, %v2100
  %v2121 = vmul.f32 %v1874, %v2100
  %v2122 = vmul.f32 %v1879, %v2100
  %v2123 = vmul.f32 %v1884, %v2100
  %v2124 = vmul.f32 %v1889, %v2100
  %v2125 = vmul.f32 %v1894, %v2100
  %v2126 = vmul.f32 %v1899, %v2100
  %v2127 = vmul.f32 %v1904, %v2100
  %v2128 = vmul.f32 %v1909, %v2100
  %v2129 = vmul.f32 %v1914, %v2100
  %v2130 = vmul.f32 %v1919, %v2100
  %v2131 = vmul.f32 %v1924, %v2100
  %v2132 = vmul.f32 %v1929, %v2100
  %v2133 = vmul.f32 %v1934, %v2100
  %v2134 = vmul.f32 %v1939, %v2100
  %v2135 = vmul.f32 %v1944, %v2100
  %v2136 = vmul.f32 %v1949, %v2100
  %v2137 = vmul.f32 %v1954, %v2100
  %v2138 = vmul.f32 %v1959, %v2100
  %v2139 = vmul.f32 %v1964, %v2100
  %v2140 = vmul.f32 %v1969, %v2100
  %v2141 = vmul.f32 %v1974, %v2100
  %v2142 = vmul.f32 %v1979, %v2100
  %v2143 = vmul.f32 %v1984, %v2100
  %v2144 = vmul.f32 %v1989, %v2100
  %v2145 = vmul.f32 %v1994, %v2100
  %v2146 = vmul.f32 %v1999, %v2100
  %v2147 = vmul.f32 %v2004, %v2100
  %v2148 = vmul.f32 %v2009, %v2100
  %v2149 = vmul.f32 %v2014, %v2100
  %v2150 = vmul.f32 %v2019, %v2100
  %v2151 = vmul.f32 %v2024, %v2100
  %v2152 = vmul.f32 %v2029, %v2100
  %v2153 = vmul.f32 %v2034, %v2100
  %v2154 = vmul.f32 %v2039, %v2100
  %v2155 = vmul.f32 %v2044, %v2100
  %v2156 = vmul.f32 %v2049, %v2100
  %v2157 = vmul.f32 %v2054, %v2100
  %v2158 = vmul.f32 %v2059, %v2100
  %v2159 = vmul.f32 %v2064, %v2100
  %v2160 = vmul.f32 %v2069, %v2100
  %v2161 = vmul.f32 %v2074, %v2100
  %v2162 = vmul.f32 %v2079, %v2100
  %v2163 = vmul.f32 %v2084, %v2100
  %v2164 = vmul.f32 %v2089, %v2100
  %v2165 = vmul.f32 %v2094, %v2100
  %v2166 = vadd.f32 %v1457, %v2102
  %v2167 = vadd.f32 %v1460, %v2103
  %v2168 = vadd.f32 %v1465, %v2104
  %v2169 = vadd.f32 %v1468, %v2105
  %v2170 = vadd.f32 %v1473, %v2106
  %v2171 = vadd.f32 %v1476, %v2107
  %v2172 = vadd.f32 %v1481, %v2108
  %v2173 = vadd.f32 %v1484, %v2109
  %v2174 = vadd.f32 %v1489, %v2110
  %v2175 = vadd.f32 %v1492, %v2111
  %v2176 = vadd.f32 %v1497, %v2112
  %v2177 = vadd.f32 %v1500, %v2113
  %v2178 = vadd.f32 %v1505, %v2114
  %v2179 = vadd.f32 %v1508, %v2115
  %v2180 = vadd.f32 %v1513, %v2116
  %v2181 = vadd.f32 %v1516, %v2117
  %v2182 = vadd.f32 %v1521, %v2118
  %v2183 = vadd.f32 %v1524, %v2119
  %v2184 = vadd.f32 %v1529, %v2120
  %v2185 = vadd.f32 %v1532, %v2121
  %v2186 = vadd.f32 %v1537, %v2122
  %v2187 = vadd.f32 %v1540, %v2123
  %v2188 = vadd.f32 %v1545, %v2124
  %v2189 = vadd.f32 %v1548, %v2125
  %v2190 = vadd.f32 %v1553, %v2126
  %v2191 = vadd.f32 %v1556, %v2127
  %v2192 = vadd.f32 %v1561, %v2128
  %v2193 = vadd.f32 %v1564, %v2129
  %v2194 = vadd.f32 %v1569, %v2130
  %v2195 = vadd.f32 %v1572, %v2131
  %v2196 = vadd.f32 %v1577, %v2132
  %v2197 = vadd.f32 %v1580, %v2133
  %v2198 = vadd.f32 %v1585, %v2134
  %v2199 = vadd.f32 %v1588, %v2135
  %v2200 = vadd.f32 %v1593, %v2136
  %v2201 = vadd.f32 %v1596, %v2137
  %v2202 = vadd.f32 %v1601, %v2138
  %v2203 = vadd.f32 %v1604, %v2139
  %v2204 = vadd.f32 %v1609, %v2140
  %v2205 = vadd.f32 %v1612, %v2141
  %v2206 = vadd.f32 %v1617, %v2142
  %v2207 = vadd.f32 %v1620, %v2143
  %v2208 = vadd.f32 %v1625, %v2144
  %v2209 = vadd.f32 %v1628, %v2145
  %v2210 = vadd.f32 %v1633, %v2146
  %v2211 = vadd.f32 %v1636, %v2147
  %v2212 = vadd.f32 %v1641, %v2148
  %v2213 = vadd.f32 %v1644, %v2149
  %v2214 = vadd.f32 %v1649, %v2150
  %v2215 = vadd.f32 %v1652, %v2151
  %v2216 = vadd.f32 %v1657, %v2152
  %v2217 = vadd.f32 %v1660, %v2153
  %v2218 = vadd.f32 %v1665, %v2154
  %v2219 = vadd.f32 %v1668, %v2155
  %v2220 = vadd.f32 %v1673, %v2156
  %v2221 = vadd.f32 %v1676, %v2157
  %v2222 = vadd.f32 %v1681, %v2158
  %v2223 = vadd.f32 %v1684, %v2159
  %v2224 = vadd.f32 %v1689, %v2160
  %v2225 = vadd.f32 %v1692, %v2161
  %v2226 = vadd.f32 %v1697, %v2162
  %v2227 = vadd.f32 %v1700, %v2163
  %v2228 = vadd.f32 %v1705, %v2164
  %v2229 = vadd.f32 %v1708, %v2165
  %v2230 = vld [vmem:[%s6] sm:$0x1]
  %v2232 = vlaneseq
  %v2233 = vshrl.u32 %v2232, 7
  %v2234 = vsub.s32 0, %v2233
  %v2235 = vrot.slane %v2230, %v2234
  %v2237 = vadd.f32 %v2166, %v2235
  %v2238 = vadd.f32 %v2167, %v2235
  %v2239 = vadd.f32 %v2168, %v2235
  %v2240 = vadd.f32 %v2169, %v2235
  %v2241 = vadd.f32 %v2170, %v2235
  %v2242 = vadd.f32 %v2171, %v2235
  %v2243 = vadd.f32 %v2172, %v2235
  %v2244 = vadd.f32 %v2173, %v2235
  %v2245 = vadd.f32 %v2174, %v2235
  %v2246 = vadd.f32 %v2175, %v2235
  %v2247 = vadd.f32 %v2176, %v2235
  %v2248 = vadd.f32 %v2177, %v2235
  %v2249 = vadd.f32 %v2178, %v2235
  %v2250 = vadd.f32 %v2179, %v2235
  %v2251 = vadd.f32 %v2180, %v2235
  %v2252 = vadd.f32 %v2181, %v2235
  %v2253 = vadd.f32 %v2182, %v2235
  %v2254 = vadd.f32 %v2183, %v2235
  %v2255 = vadd.f32 %v2184, %v2235
  %v2256 = vadd.f32 %v2185, %v2235
  %v2257 = vadd.f32 %v2186, %v2235
  %v2258 = vadd.f32 %v2187, %v2235
  %v2259 = vadd.f32 %v2188, %v2235
  %v2260 = vadd.f32 %v2189, %v2235
  %v2261 = vadd.f32 %v2190, %v2235
  %v2262 = vadd.f32 %v2191, %v2235
  %v2263 = vadd.f32 %v2192, %v2235
  %v2264 = vadd.f32 %v2193, %v2235
  %v2265 = vadd.f32 %v2194, %v2235
  %v2266 = vadd.f32 %v2195, %v2235
  %v2267 = vadd.f32 %v2196, %v2235
  %v2268 = vadd.f32 %v2197, %v2235
  %v2269 = vadd.f32 %v2198, %v2235
  %v2270 = vadd.f32 %v2199, %v2235
  %v2271 = vadd.f32 %v2200, %v2235
  %v2272 = vadd.f32 %v2201, %v2235
  %v2273 = vadd.f32 %v2202, %v2235
  %v2274 = vadd.f32 %v2203, %v2235
  %v2275 = vadd.f32 %v2204, %v2235
  %v2276 = vadd.f32 %v2205, %v2235
  %v2277 = vadd.f32 %v2206, %v2235
  %v2278 = vadd.f32 %v2207, %v2235
  %v2279 = vadd.f32 %v2208, %v2235
  %v2280 = vadd.f32 %v2209, %v2235
  %v2281 = vadd.f32 %v2210, %v2235
  %v2282 = vadd.f32 %v2211, %v2235
  %v2283 = vadd.f32 %v2212, %v2235
  %v2284 = vadd.f32 %v2213, %v2235
  %v2285 = vadd.f32 %v2214, %v2235
  %v2286 = vadd.f32 %v2215, %v2235
  %v2287 = vadd.f32 %v2216, %v2235
  %v2288 = vadd.f32 %v2217, %v2235
  %v2289 = vadd.f32 %v2218, %v2235
  %v2290 = vadd.f32 %v2219, %v2235
  %v2291 = vadd.f32 %v2220, %v2235
  %v2292 = vadd.f32 %v2221, %v2235
  %v2293 = vadd.f32 %v2222, %v2235
  %v2294 = vadd.f32 %v2223, %v2235
  %v2295 = vadd.f32 %v2224, %v2235
  %v2296 = vadd.f32 %v2225, %v2235
  %v2297 = vadd.f32 %v2226, %v2235
  %v2298 = vadd.f32 %v2227, %v2235
  %v2299 = vadd.f32 %v2228, %v2235
  %v2300 = vadd.f32 %v2229, %v2235
  %v2301 = vmax.f32 %v2237, 0.0
  %v2302 = vmax.f32 %v2238, 0.0
  %v2303 = vmax.f32 %v2239, 0.0
  %v2304 = vmax.f32 %v2240, 0.0
  %v2305 = vmax.f32 %v2241, 0.0
  %v2306 = vmax.f32 %v2242, 0.0
  %v2307 = vmax.f32 %v2243, 0.0
  %v2308 = vmax.f32 %v2244, 0.0
  %v2309 = vmax.f32 %v2245, 0.0
  %v2310 = vmax.f32 %v2246, 0.0
  %v2311 = vmax.f32 %v2247, 0.0
  %v2312 = vmax.f32 %v2248, 0.0
  %v2313 = vmax.f32 %v2249, 0.0
  %v2314 = vmax.f32 %v2250, 0.0
  %v2315 = vmax.f32 %v2251, 0.0
  %v2316 = vmax.f32 %v2252, 0.0
  %v2317 = vmax.f32 %v2253, 0.0
  %v2318 = vmax.f32 %v2254, 0.0
  %v2319 = vmax.f32 %v2255, 0.0
  %v2320 = vmax.f32 %v2256, 0.0
  %v2321 = vmax.f32 %v2257, 0.0
  %v2322 = vmax.f32 %v2258, 0.0
  %v2323 = vmax.f32 %v2259, 0.0
  %v2324 = vmax.f32 %v2260, 0.0
  %v2325 = vmax.f32 %v2261, 0.0
  %v2326 = vmax.f32 %v2262, 0.0
  %v2327 = vmax.f32 %v2263, 0.0
  %v2328 = vmax.f32 %v2264, 0.0
  %v2329 = vmax.f32 %v2265, 0.0
  %v2330 = vmax.f32 %v2266, 0.0
  %v2331 = vmax.f32 %v2267, 0.0
  %v2332 = vmax.f32 %v2268, 0.0
  %v2333 = vmax.f32 %v2269, 0.0
  %v2334 = vmax.f32 %v2270, 0.0
  %v2335 = vmax.f32 %v2271, 0.0
  %v2336 = vmax.f32 %v2272, 0.0
  %v2337 = vmax.f32 %v2273, 0.0
  %v2338 = vmax.f32 %v2274, 0.0
  %v2339 = vmax.f32 %v2275, 0.0
  %v2340 = vmax.f32 %v2276, 0.0
  %v2341 = vmax.f32 %v2277, 0.0
  %v2342 = vmax.f32 %v2278, 0.0
  %v2343 = vmax.f32 %v2279, 0.0
  %v2344 = vmax.f32 %v2280, 0.0
  %v2345 = vmax.f32 %v2281, 0.0
  %v2346 = vmax.f32 %v2282, 0.0
  %v2347 = vmax.f32 %v2283, 0.0
  %v2348 = vmax.f32 %v2284, 0.0
  %v2349 = vmax.f32 %v2285, 0.0
  %v2350 = vmax.f32 %v2286, 0.0
  %v2351 = vmax.f32 %v2287, 0.0
  %v2352 = vmax.f32 %v2288, 0.0
  %v2353 = vmax.f32 %v2289, 0.0
  %v2354 = vmax.f32 %v2290, 0.0
  %v2355 = vmax.f32 %v2291, 0.0
  %v2356 = vmax.f32 %v2292, 0.0
  %v2357 = vmax.f32 %v2293, 0.0
  %v2358 = vmax.f32 %v2294, 0.0
  %v2359 = vmax.f32 %v2295, 0.0
  %v2360 = vmax.f32 %v2296, 0.0
  %v2361 = vmax.f32 %v2297, 0.0
  %v2362 = vmax.f32 %v2298, 0.0
  %v2363 = vmax.f32 %v2299, 0.0
  %v2364 = vmax.f32 %v2300, 0.0
  %v2365 = vpack.c.bf16 %v2302, %v2301
  %v2366 = vpack.c.bf16 %v2304, %v2303
  %v2367 = vpack.c.bf16 %v2306, %v2305
  %v2368 = vpack.c.bf16 %v2308, %v2307
  %v2369 = vpack.c.bf16 %v2310, %v2309
  %v2370 = vpack.c.bf16 %v2312, %v2311
  %v2371 = vpack.c.bf16 %v2314, %v2313
  %v2372 = vpack.c.bf16 %v2316, %v2315
  %v2373 = vpack.c.bf16 %v2318, %v2317
  %v2374 = vpack.c.bf16 %v2320, %v2319
  %v2375 = vpack.c.bf16 %v2322, %v2321
  %v2376 = vpack.c.bf16 %v2324, %v2323
  %v2377 = vpack.c.bf16 %v2326, %v2325
  %v2378 = vpack.c.bf16 %v2328, %v2327
  %v2379 = vpack.c.bf16 %v2330, %v2329
  %v2380 = vpack.c.bf16 %v2332, %v2331
  %v2381 = vpack.c.bf16 %v2334, %v2333
  %v2382 = vpack.c.bf16 %v2336, %v2335
  %v2383 = vpack.c.bf16 %v2338, %v2337
  %v2384 = vpack.c.bf16 %v2340, %v2339
  %v2385 = vpack.c.bf16 %v2342, %v2341
  %v2386 = vpack.c.bf16 %v2344, %v2343
  %v2387 = vpack.c.bf16 %v2346, %v2345
  %v2388 = vpack.c.bf16 %v2348, %v2347
  %v2389 = vpack.c.bf16 %v2350, %v2349
  %v2390 = vpack.c.bf16 %v2352, %v2351
  %v2391 = vpack.c.bf16 %v2354, %v2353
  %v2392 = vpack.c.bf16 %v2356, %v2355
  %v2393 = vpack.c.bf16 %v2358, %v2357
  %v2394 = vpack.c.bf16 %v2360, %v2359
  %v2395 = vpack.c.bf16 %v2362, %v2361
  %v2396 = vpack.c.bf16 %v2364, %v2363
  %v2397 = vld [vmem:[%s7] sm:$0xf]
  %v2398 = vld [vmem:[%s7 + $0x4] sm:$0xf]
  %v2399 = vld [vmem:[%s7 + $0x8] sm:$0xf]
  %v2400 = vld [vmem:[%s7 + $0xc] sm:$0xf]
  %v2401 = vld [vmem:[%s8] sm:$0x1]
  %v2403 = vlaneseq
  %v2404 = vshrl.u32 %v2403, 7
  %v2405 = vsub.s32 0, %v2404
  %v2406 = vrot.slane %v2401, %v2405
  %v2412 = vunpack.c.l.b16 %v2397
  %v2413 = vunpack.c.l.b16 %v2398
  %v2414 = vunpack.c.l.b16 %v2399
  %v2415 = vunpack.c.l.b16 %v2400
  %v2416 = vpack.c.b16 %v2413, %v2412
  %v2417 = vpack.c.b16 %v2415, %v2414
  %vm2420 = vcmask 261120
  %v2422 = vsel %vm2420, %v2365, 0
  %v2425 = vsel %vm2420, %v2366, 0
  %v2428 = vsel %vm2420, %v2367, 0
  %v2431 = vsel %vm2420, %v2368, 0
  %v2434 = vsel %vm2420, %v2369, 0
  %v2437 = vsel %vm2420, %v2370, 0
  %v2440 = vsel %vm2420, %v2371, 0
  %v2443 = vsel %vm2420, %v2372, 0
  %v2446 = vsel %vm2420, %v2373, 0
  %v2449 = vsel %vm2420, %v2374, 0
  %v2452 = vsel %vm2420, %v2375, 0
  %v2455 = vsel %vm2420, %v2376, 0
  %v2458 = vsel %vm2420, %v2377, 0
  %v2461 = vsel %vm2420, %v2378, 0
  %v2464 = vsel %vm2420, %v2379, 0
  %v2467 = vsel %vm2420, %v2380, 0
  %v2470 = vsel %vm2420, %v2381, 0
  %v2473 = vsel %vm2420, %v2382, 0
  %v2476 = vsel %vm2420, %v2383, 0
  %v2479 = vsel %vm2420, %v2384, 0
  %v2482 = vsel %vm2420, %v2385, 0
  %v2485 = vsel %vm2420, %v2386, 0
  %v2488 = vsel %vm2420, %v2387, 0
  %v2491 = vsel %vm2420, %v2388, 0
  %v2494 = vsel %vm2420, %v2389, 0
  %v2497 = vsel %vm2420, %v2390, 0
  %v2500 = vsel %vm2420, %v2391, 0
  %v2503 = vsel %vm2420, %v2392, 0
  %v2506 = vsel %vm2420, %v2393, 0
  %v2509 = vsel %vm2420, %v2394, 0
  %v2512 = vsel %vm2420, %v2395, 0
  %v2515 = vsel %vm2420, %v2396, 0
  %2517 = vmatprep.subr.bf16.mxu0 0
  %2518 = vmatpush1.bf16.msra.mxu0 0
  %2519 = vmatprep.subr.bf16.mxu0 0
  %2520 = vmatpush1.bf16.msra.mxu0 0
  %2521 = vmatprep.subr.bf16.mxu0 0
  %2522 = vmatpush1.bf16.msra.mxu0 0
  %2523 = vmatprep.subr.bf16.mxu0 0
  %2524 = vmatpush1.bf16.msra.mxu0 0
  %2525 = vmatprep.subr.bf16.mxu0 0
  %2526 = vmatpush1.bf16.msra.mxu0 0
  %2527 = vmatprep.subr.bf16.mxu0 0
  %2528 = vmatpush1.bf16.msra.mxu0 0
  %2529 = vmatprep.subr.bf16.mxu0 0
  %2530 = vmatpush1.bf16.msra.mxu0 %v2417
  %2531 = vmatprep.subr.bf16.mxu0 0
  %2532 = vmatpush1.bf16.msra.mxu0 %v2416
  %2533 = vmatprep.subr.bf16.mxu0 0
  %2534 = vmatpush2.bf16.msra.mxu0 0
  %2535 = vmatprep.subr.bf16.mxu0 0
  %2536 = vmatpush2.bf16.msra.mxu0 0
  %2537 = vmatprep.subr.bf16.mxu0 0
  %2538 = vmatpush2.bf16.msra.mxu0 0
  %2539 = vmatprep.subr.bf16.mxu0 0
  %2540 = vmatpush2.bf16.msra.mxu0 0
  %2541 = vmatprep.subr.bf16.mxu0 0
  %2542 = vmatpush2.bf16.msra.mxu0 0
  %2543 = vmatprep.subr.bf16.mxu0 0
  %2544 = vmatpush2.bf16.msra.mxu0 0
  %2545 = vmatprep.subr.bf16.mxu0 0
  %2546 = vmatpush2.bf16.msra.mxu0 0
  %2547 = vmatprep.subr.bf16.mxu0 0
  %2548 = vmatpush2.bf16.msra.mxu0 0
  %2549 = vmatprep.mubr.bf16.mxu0 0
  %2550 = vmatmul.mubr.bf16.gmra.mxu0 %v2422
  %v2551 = vpop.f32.mrf.mxu0
  %v2552 = vadd.f32 %v2406, %v2551
  %v2553 = vpop.f32.mrf.mxu0
  %v2554 = vpop.f32.mrf.mxu0
  %v2555 = vadd.f32 %v2406, %v2554
  %v2556 = vpop.f32.mrf.mxu0
  %2557 = vmatprep.mubr.bf16.mxu0 0
  %2558 = vmatmul.mubr.bf16.gmra.mxu0 %v2425
  %v2559 = vpop.f32.mrf.mxu0
  %v2560 = vadd.f32 %v2406, %v2559
  %v2561 = vpop.f32.mrf.mxu0
  %v2562 = vpop.f32.mrf.mxu0
  %v2563 = vadd.f32 %v2406, %v2562
  %v2564 = vpop.f32.mrf.mxu0
  %2565 = vmatprep.mubr.bf16.mxu0 0
  %2566 = vmatmul.mubr.bf16.gmra.mxu0 %v2428
  %v2567 = vpop.f32.mrf.mxu0
  %v2568 = vadd.f32 %v2406, %v2567
  %v2569 = vpop.f32.mrf.mxu0
  %v2570 = vpop.f32.mrf.mxu0
  %v2571 = vadd.f32 %v2406, %v2570
  %v2572 = vpop.f32.mrf.mxu0
  %2573 = vmatprep.mubr.bf16.mxu0 0
  %2574 = vmatmul.mubr.bf16.gmra.mxu0 %v2431
  %v2575 = vpop.f32.mrf.mxu0
  %v2576 = vadd.f32 %v2406, %v2575
  %v2577 = vpop.f32.mrf.mxu0
  %v2578 = vpop.f32.mrf.mxu0
  %v2579 = vadd.f32 %v2406, %v2578
  %v2580 = vpop.f32.mrf.mxu0
  %2581 = vmatprep.mubr.bf16.mxu0 0
  %2582 = vmatmul.mubr.bf16.gmra.mxu0 %v2434
  %v2583 = vpop.f32.mrf.mxu0
  %v2584 = vadd.f32 %v2406, %v2583
  %v2585 = vpop.f32.mrf.mxu0
  %v2586 = vpop.f32.mrf.mxu0
  %v2587 = vadd.f32 %v2406, %v2586
  %v2588 = vpop.f32.mrf.mxu0
  %2589 = vmatprep.mubr.bf16.mxu0 0
  %2590 = vmatmul.mubr.bf16.gmra.mxu0 %v2437
  %v2591 = vpop.f32.mrf.mxu0
  %v2592 = vadd.f32 %v2406, %v2591
  %v2593 = vpop.f32.mrf.mxu0
  %v2594 = vpop.f32.mrf.mxu0
  %v2595 = vadd.f32 %v2406, %v2594
  %v2596 = vpop.f32.mrf.mxu0
  %2597 = vmatprep.mubr.bf16.mxu0 0
  %2598 = vmatmul.mubr.bf16.gmra.mxu0 %v2440
  %v2599 = vpop.f32.mrf.mxu0
  %v2600 = vadd.f32 %v2406, %v2599
  %v2601 = vpop.f32.mrf.mxu0
  %v2602 = vpop.f32.mrf.mxu0
  %v2603 = vadd.f32 %v2406, %v2602
  %v2604 = vpop.f32.mrf.mxu0
  %2605 = vmatprep.mubr.bf16.mxu0 0
  %2606 = vmatmul.mubr.bf16.gmra.mxu0 %v2443
  %v2607 = vpop.f32.mrf.mxu0
  %v2608 = vadd.f32 %v2406, %v2607
  %v2609 = vpop.f32.mrf.mxu0
  %v2610 = vpop.f32.mrf.mxu0
  %v2611 = vadd.f32 %v2406, %v2610
  %v2612 = vpop.f32.mrf.mxu0
  %2613 = vmatprep.mubr.bf16.mxu0 0
  %2614 = vmatmul.mubr.bf16.gmra.mxu0 %v2446
  %v2615 = vpop.f32.mrf.mxu0
  %v2616 = vadd.f32 %v2406, %v2615
  %v2617 = vpop.f32.mrf.mxu0
  %v2618 = vpop.f32.mrf.mxu0
  %v2619 = vadd.f32 %v2406, %v2618
  %v2620 = vpop.f32.mrf.mxu0
  %2621 = vmatprep.mubr.bf16.mxu0 0
  %2622 = vmatmul.mubr.bf16.gmra.mxu0 %v2449
  %v2623 = vpop.f32.mrf.mxu0
  %v2624 = vadd.f32 %v2406, %v2623
  %v2625 = vpop.f32.mrf.mxu0
  %v2626 = vpop.f32.mrf.mxu0
  %v2627 = vadd.f32 %v2406, %v2626
  %v2628 = vpop.f32.mrf.mxu0
  %2629 = vmatprep.mubr.bf16.mxu0 0
  %2630 = vmatmul.mubr.bf16.gmra.mxu0 %v2452
  %v2631 = vpop.f32.mrf.mxu0
  %v2632 = vadd.f32 %v2406, %v2631
  %v2633 = vpop.f32.mrf.mxu0
  %v2634 = vpop.f32.mrf.mxu0
  %v2635 = vadd.f32 %v2406, %v2634
  %v2636 = vpop.f32.mrf.mxu0
  %2637 = vmatprep.mubr.bf16.mxu0 0
  %2638 = vmatmul.mubr.bf16.gmra.mxu0 %v2455
  %v2639 = vpop.f32.mrf.mxu0
  %v2640 = vadd.f32 %v2406, %v2639
  %v2641 = vpop.f32.mrf.mxu0
  %v2642 = vpop.f32.mrf.mxu0
  %v2643 = vadd.f32 %v2406, %v2642
  %v2644 = vpop.f32.mrf.mxu0
  %2645 = vmatprep.mubr.bf16.mxu0 0
  %2646 = vmatmul.mubr.bf16.gmra.mxu0 %v2458
  %v2647 = vpop.f32.mrf.mxu0
  %v2648 = vadd.f32 %v2406, %v2647
  %v2649 = vpop.f32.mrf.mxu0
  %v2650 = vpop.f32.mrf.mxu0
  %v2651 = vadd.f32 %v2406, %v2650
  %v2652 = vpop.f32.mrf.mxu0
  %2653 = vmatprep.mubr.bf16.mxu0 0
  %2654 = vmatmul.mubr.bf16.gmra.mxu0 %v2461
  %v2655 = vpop.f32.mrf.mxu0
  %v2656 = vadd.f32 %v2406, %v2655
  %v2657 = vpop.f32.mrf.mxu0
  %v2658 = vpop.f32.mrf.mxu0
  %v2659 = vadd.f32 %v2406, %v2658
  %v2660 = vpop.f32.mrf.mxu0
  %2661 = vmatprep.mubr.bf16.mxu0 0
  %2662 = vmatmul.mubr.bf16.gmra.mxu0 %v2464
  %v2663 = vpop.f32.mrf.mxu0
  %v2664 = vadd.f32 %v2406, %v2663
  %v2665 = vpop.f32.mrf.mxu0
  %v2666 = vpop.f32.mrf.mxu0
  %v2667 = vadd.f32 %v2406, %v2666
  %v2668 = vpop.f32.mrf.mxu0
  %2669 = vmatprep.mubr.bf16.mxu0 0
  %2670 = vmatmul.mubr.bf16.gmra.mxu0 %v2467
  %v2671 = vpop.f32.mrf.mxu0
  %v2672 = vadd.f32 %v2406, %v2671
  %v2673 = vpop.f32.mrf.mxu0
  %v2674 = vpop.f32.mrf.mxu0
  %v2675 = vadd.f32 %v2406, %v2674
  %v2676 = vpop.f32.mrf.mxu0
  %2677 = vmatprep.mubr.bf16.mxu0 0
  %2678 = vmatmul.mubr.bf16.gmra.mxu0 %v2470
  %v2679 = vpop.f32.mrf.mxu0
  %v2680 = vadd.f32 %v2406, %v2679
  %v2681 = vpop.f32.mrf.mxu0
  %v2682 = vpop.f32.mrf.mxu0
  %v2683 = vadd.f32 %v2406, %v2682
  %v2684 = vpop.f32.mrf.mxu0
  %2685 = vmatprep.mubr.bf16.mxu0 0
  %2686 = vmatmul.mubr.bf16.gmra.mxu0 %v2473
  %v2687 = vpop.f32.mrf.mxu0
  %v2688 = vadd.f32 %v2406, %v2687
  %v2689 = vpop.f32.mrf.mxu0
  %v2690 = vpop.f32.mrf.mxu0
  %v2691 = vadd.f32 %v2406, %v2690
  %v2692 = vpop.f32.mrf.mxu0
  %2693 = vmatprep.mubr.bf16.mxu0 0
  %2694 = vmatmul.mubr.bf16.gmra.mxu0 %v2476
  %v2695 = vpop.f32.mrf.mxu0
  %v2696 = vadd.f32 %v2406, %v2695
  %v2697 = vpop.f32.mrf.mxu0
  %v2698 = vpop.f32.mrf.mxu0
  %v2699 = vadd.f32 %v2406, %v2698
  %v2700 = vpop.f32.mrf.mxu0
  %2701 = vmatprep.mubr.bf16.mxu0 0
  %2702 = vmatmul.mubr.bf16.gmra.mxu0 %v2479
  %v2703 = vpop.f32.mrf.mxu0
  %v2704 = vadd.f32 %v2406, %v2703
  %v2705 = vpop.f32.mrf.mxu0
  %v2706 = vpop.f32.mrf.mxu0
  %v2707 = vadd.f32 %v2406, %v2706
  %v2708 = vpop.f32.mrf.mxu0
  %2709 = vmatprep.mubr.bf16.mxu0 0
  %2710 = vmatmul.mubr.bf16.gmra.mxu0 %v2482
  %v2711 = vpop.f32.mrf.mxu0
  %v2712 = vadd.f32 %v2406, %v2711
  %v2713 = vpop.f32.mrf.mxu0
  %v2714 = vpop.f32.mrf.mxu0
  %v2715 = vadd.f32 %v2406, %v2714
  %v2716 = vpop.f32.mrf.mxu0
  %2717 = vmatprep.mubr.bf16.mxu0 0
  %2718 = vmatmul.mubr.bf16.gmra.mxu0 %v2485
  %v2719 = vpop.f32.mrf.mxu0
  %v2720 = vadd.f32 %v2406, %v2719
  %v2721 = vpop.f32.mrf.mxu0
  %v2722 = vpop.f32.mrf.mxu0
  %v2723 = vadd.f32 %v2406, %v2722
  %v2724 = vpop.f32.mrf.mxu0
  %2725 = vmatprep.mubr.bf16.mxu0 0
  %2726 = vmatmul.mubr.bf16.gmra.mxu0 %v2488
  %v2727 = vpop.f32.mrf.mxu0
  %v2728 = vadd.f32 %v2406, %v2727
  %v2729 = vpop.f32.mrf.mxu0
  %v2730 = vpop.f32.mrf.mxu0
  %v2731 = vadd.f32 %v2406, %v2730
  %v2732 = vpop.f32.mrf.mxu0
  %2733 = vmatprep.mubr.bf16.mxu0 0
  %2734 = vmatmul.mubr.bf16.gmra.mxu0 %v2491
  %v2735 = vpop.f32.mrf.mxu0
  %v2736 = vadd.f32 %v2406, %v2735
  %v2737 = vpop.f32.mrf.mxu0
  %v2738 = vpop.f32.mrf.mxu0
  %v2739 = vadd.f32 %v2406, %v2738
  %v2740 = vpop.f32.mrf.mxu0
  %2741 = vmatprep.mubr.bf16.mxu0 0
  %2742 = vmatmul.mubr.bf16.gmra.mxu0 %v2494
  %v2743 = vpop.f32.mrf.mxu0
  %v2744 = vadd.f32 %v2406, %v2743
  %v2745 = vpop.f32.mrf.mxu0
  %v2746 = vpop.f32.mrf.mxu0
  %v2747 = vadd.f32 %v2406, %v2746
  %v2748 = vpop.f32.mrf.mxu0
  %2749 = vmatprep.mubr.bf16.mxu0 0
  %2750 = vmatmul.mubr.bf16.gmra.mxu0 %v2497
  %v2751 = vpop.f32.mrf.mxu0
  %v2752 = vadd.f32 %v2406, %v2751
  %v2753 = vpop.f32.mrf.mxu0
  %v2754 = vpop.f32.mrf.mxu0
  %v2755 = vadd.f32 %v2406, %v2754
  %v2756 = vpop.f32.mrf.mxu0
  %2757 = vmatprep.mubr.bf16.mxu0 0
  %2758 = vmatmul.mubr.bf16.gmra.mxu0 %v2500
  %v2759 = vpop.f32.mrf.mxu0
  %v2760 = vadd.f32 %v2406, %v2759
  %v2761 = vpop.f32.mrf.mxu0
  %v2762 = vpop.f32.mrf.mxu0
  %v2763 = vadd.f32 %v2406, %v2762
  %v2764 = vpop.f32.mrf.mxu0
  %2765 = vmatprep.mubr.bf16.mxu0 0
  %2766 = vmatmul.mubr.bf16.gmra.mxu0 %v2503
  %v2767 = vpop.f32.mrf.mxu0
  %v2768 = vadd.f32 %v2406, %v2767
  %v2769 = vpop.f32.mrf.mxu0
  %v2770 = vpop.f32.mrf.mxu0
  %v2771 = vadd.f32 %v2406, %v2770
  %v2772 = vpop.f32.mrf.mxu0
  %2773 = vmatprep.mubr.bf16.mxu0 0
  %2774 = vmatmul.mubr.bf16.gmra.mxu0 %v2506
  %v2775 = vpop.f32.mrf.mxu0
  %v2776 = vadd.f32 %v2406, %v2775
  %v2777 = vpop.f32.mrf.mxu0
  %v2778 = vpop.f32.mrf.mxu0
  %v2779 = vadd.f32 %v2406, %v2778
  %v2780 = vpop.f32.mrf.mxu0
  %2781 = vmatprep.mubr.bf16.mxu0 0
  %2782 = vmatmul.mubr.bf16.gmra.mxu0 %v2509
  %v2783 = vpop.f32.mrf.mxu0
  %v2784 = vadd.f32 %v2406, %v2783
  %v2785 = vpop.f32.mrf.mxu0
  %v2786 = vpop.f32.mrf.mxu0
  %v2787 = vadd.f32 %v2406, %v2786
  %v2788 = vpop.f32.mrf.mxu0
  %2789 = vmatprep.mubr.bf16.mxu0 0
  %2790 = vmatmul.mubr.bf16.gmra.mxu0 %v2512
  %v2791 = vpop.f32.mrf.mxu0
  %v2792 = vadd.f32 %v2406, %v2791
  %v2793 = vpop.f32.mrf.mxu0
  %v2794 = vpop.f32.mrf.mxu0
  %v2795 = vadd.f32 %v2406, %v2794
  %v2796 = vpop.f32.mrf.mxu0
  %2797 = vmatprep.mubr.bf16.mxu0 0
  %2798 = vmatmul.mubr.bf16.gmra.mxu0 %v2515
  %v2799 = vpop.f32.mrf.mxu0
  %v2800 = vadd.f32 %v2406, %v2799
  %v2801 = vpop.f32.mrf.mxu0
  %v2802 = vpop.f32.mrf.mxu0
  %v2803 = vadd.f32 %v2406, %v2802
  %v2804 = vpop.f32.mrf.mxu0
  %2805 = vdwg.mxu0
  %v2806 = vmax.f32 %v2552, 0.0
  %v2807 = vmax.f32 %v2555, 0.0
  %v2808 = vmax.f32 %v2560, 0.0
  %v2809 = vmax.f32 %v2563, 0.0
  %v2810 = vmax.f32 %v2568, 0.0
  %v2811 = vmax.f32 %v2571, 0.0
  %v2812 = vmax.f32 %v2576, 0.0
  %v2813 = vmax.f32 %v2579, 0.0
  %v2814 = vmax.f32 %v2584, 0.0
  %v2815 = vmax.f32 %v2587, 0.0
  %v2816 = vmax.f32 %v2592, 0.0
  %v2817 = vmax.f32 %v2595, 0.0
  %v2818 = vmax.f32 %v2600, 0.0
  %v2819 = vmax.f32 %v2603, 0.0
  %v2820 = vmax.f32 %v2608, 0.0
  %v2821 = vmax.f32 %v2611, 0.0
  %v2822 = vmax.f32 %v2616, 0.0
  %v2823 = vmax.f32 %v2619, 0.0
  %v2824 = vmax.f32 %v2624, 0.0
  %v2825 = vmax.f32 %v2627, 0.0
  %v2826 = vmax.f32 %v2632, 0.0
  %v2827 = vmax.f32 %v2635, 0.0
  %v2828 = vmax.f32 %v2640, 0.0
  %v2829 = vmax.f32 %v2643, 0.0
  %v2830 = vmax.f32 %v2648, 0.0
  %v2831 = vmax.f32 %v2651, 0.0
  %v2832 = vmax.f32 %v2656, 0.0
  %v2833 = vmax.f32 %v2659, 0.0
  %v2834 = vmax.f32 %v2664, 0.0
  %v2835 = vmax.f32 %v2667, 0.0
  %v2836 = vmax.f32 %v2672, 0.0
  %v2837 = vmax.f32 %v2675, 0.0
  %v2838 = vmax.f32 %v2680, 0.0
  %v2839 = vmax.f32 %v2683, 0.0
  %v2840 = vmax.f32 %v2688, 0.0
  %v2841 = vmax.f32 %v2691, 0.0
  %v2842 = vmax.f32 %v2696, 0.0
  %v2843 = vmax.f32 %v2699, 0.0
  %v2844 = vmax.f32 %v2704, 0.0
  %v2845 = vmax.f32 %v2707, 0.0
  %v2846 = vmax.f32 %v2712, 0.0
  %v2847 = vmax.f32 %v2715, 0.0
  %v2848 = vmax.f32 %v2720, 0.0
  %v2849 = vmax.f32 %v2723, 0.0
  %v2850 = vmax.f32 %v2728, 0.0
  %v2851 = vmax.f32 %v2731, 0.0
  %v2852 = vmax.f32 %v2736, 0.0
  %v2853 = vmax.f32 %v2739, 0.0
  %v2854 = vmax.f32 %v2744, 0.0
  %v2855 = vmax.f32 %v2747, 0.0
  %v2856 = vmax.f32 %v2752, 0.0
  %v2857 = vmax.f32 %v2755, 0.0
  %v2858 = vmax.f32 %v2760, 0.0
  %v2859 = vmax.f32 %v2763, 0.0
  %v2860 = vmax.f32 %v2768, 0.0
  %v2861 = vmax.f32 %v2771, 0.0
  %v2862 = vmax.f32 %v2776, 0.0
  %v2863 = vmax.f32 %v2779, 0.0
  %v2864 = vmax.f32 %v2784, 0.0
  %v2865 = vmax.f32 %v2787, 0.0
  %v2866 = vmax.f32 %v2792, 0.0
  %v2867 = vmax.f32 %v2795, 0.0
  %v2868 = vmax.f32 %v2800, 0.0
  %v2869 = vmax.f32 %v2803, 0.0
  %v2870 = vld [vmem:[%s9] sm:$0x1]
  %v2872 = vlaneseq
  %v2873 = vshrl.u32 %v2872, 7
  %v2874 = vsub.s32 0, %v2873
  %v2875 = vrot.slane %v2870, %v2874
  %v2877 = vmul.f32 %v2806, %v2875
  %v2878 = vmul.f32 %v2807, %v2875
  %v2879 = vmul.f32 %v2808, %v2875
  %v2880 = vmul.f32 %v2809, %v2875
  %v2881 = vmul.f32 %v2810, %v2875
  %v2882 = vmul.f32 %v2811, %v2875
  %v2883 = vmul.f32 %v2812, %v2875
  %v2884 = vmul.f32 %v2813, %v2875
  %v2885 = vmul.f32 %v2814, %v2875
  %v2886 = vmul.f32 %v2815, %v2875
  %v2887 = vmul.f32 %v2816, %v2875
  %v2888 = vmul.f32 %v2817, %v2875
  %v2889 = vmul.f32 %v2818, %v2875
  %v2890 = vmul.f32 %v2819, %v2875
  %v2891 = vmul.f32 %v2820, %v2875
  %v2892 = vmul.f32 %v2821, %v2875
  %v2893 = vmul.f32 %v2822, %v2875
  %v2894 = vmul.f32 %v2823, %v2875
  %v2895 = vmul.f32 %v2824, %v2875
  %v2896 = vmul.f32 %v2825, %v2875
  %v2897 = vmul.f32 %v2826, %v2875
  %v2898 = vmul.f32 %v2827, %v2875
  %v2899 = vmul.f32 %v2828, %v2875
  %v2900 = vmul.f32 %v2829, %v2875
  %v2901 = vmul.f32 %v2830, %v2875
  %v2902 = vmul.f32 %v2831, %v2875
  %v2903 = vmul.f32 %v2832, %v2875
  %v2904 = vmul.f32 %v2833, %v2875
  %v2905 = vmul.f32 %v2834, %v2875
  %v2906 = vmul.f32 %v2835, %v2875
  %v2907 = vmul.f32 %v2836, %v2875
  %v2908 = vmul.f32 %v2837, %v2875
  %v2909 = vmul.f32 %v2838, %v2875
  %v2910 = vmul.f32 %v2839, %v2875
  %v2911 = vmul.f32 %v2840, %v2875
  %v2912 = vmul.f32 %v2841, %v2875
  %v2913 = vmul.f32 %v2842, %v2875
  %v2914 = vmul.f32 %v2843, %v2875
  %v2915 = vmul.f32 %v2844, %v2875
  %v2916 = vmul.f32 %v2845, %v2875
  %v2917 = vmul.f32 %v2846, %v2875
  %v2918 = vmul.f32 %v2847, %v2875
  %v2919 = vmul.f32 %v2848, %v2875
  %v2920 = vmul.f32 %v2849, %v2875
  %v2921 = vmul.f32 %v2850, %v2875
  %v2922 = vmul.f32 %v2851, %v2875
  %v2923 = vmul.f32 %v2852, %v2875
  %v2924 = vmul.f32 %v2853, %v2875
  %v2925 = vmul.f32 %v2854, %v2875
  %v2926 = vmul.f32 %v2855, %v2875
  %v2927 = vmul.f32 %v2856, %v2875
  %v2928 = vmul.f32 %v2857, %v2875
  %v2929 = vmul.f32 %v2858, %v2875
  %v2930 = vmul.f32 %v2859, %v2875
  %v2931 = vmul.f32 %v2860, %v2875
  %v2932 = vmul.f32 %v2861, %v2875
  %v2933 = vmul.f32 %v2862, %v2875
  %v2934 = vmul.f32 %v2863, %v2875
  %v2935 = vmul.f32 %v2864, %v2875
  %v2936 = vmul.f32 %v2865, %v2875
  %v2937 = vmul.f32 %v2866, %v2875
  %v2938 = vmul.f32 %v2867, %v2875
  %v2939 = vmul.f32 %v2868, %v2875
  %v2940 = vmul.f32 %v2869, %v2875
  %v2941 = vsel %vm2420, %v2877, 0.0
  %2942 = vadd.xlane.f32.xlu0 %v2941
  %v2943 = vpop.xlane.xlu0 %2942
  %v2944 = vsel %vm2420, %v2878, 0.0
  %2945 = vadd.xlane.f32.xlu0 %v2944
  %v2946 = vpop.xlane.xlu0 %2945
  %v2947 = vsel %vm2420, %v2879, 0.0
  %2948 = vadd.xlane.f32.xlu0 %v2947
  %v2949 = vpop.xlane.xlu0 %2948
  %v2950 = vsel %vm2420, %v2880, 0.0
  %2951 = vadd.xlane.f32.xlu0 %v2950
  %v2952 = vpop.xlane.xlu0 %2951
  %v2953 = vsel %vm2420, %v2881, 0.0
  %2954 = vadd.xlane.f32.xlu0 %v2953
  %v2955 = vpop.xlane.xlu0 %2954
  %v2956 = vsel %vm2420, %v2882, 0.0
  %2957 = vadd.xlane.f32.xlu0 %v2956
  %v2958 = vpop.xlane.xlu0 %2957
  %v2959 = vsel %vm2420, %v2883, 0.0
  %2960 = vadd.xlane.f32.xlu0 %v2959
  %v2961 = vpop.xlane.xlu0 %2960
  %v2962 = vsel %vm2420, %v2884, 0.0
  %2963 = vadd.xlane.f32.xlu0 %v2962
  %v2964 = vpop.xlane.xlu0 %2963
  %v2965 = vsel %vm2420, %v2885, 0.0
  %2966 = vadd.xlane.f32.xlu0 %v2965
  %v2967 = vpop.xlane.xlu0 %2966
  %v2968 = vsel %vm2420, %v2886, 0.0
  %2969 = vadd.xlane.f32.xlu0 %v2968
  %v2970 = vpop.xlane.xlu0 %2969
  %v2971 = vsel %vm2420, %v2887, 0.0
  %2972 = vadd.xlane.f32.xlu0 %v2971
  %v2973 = vpop.xlane.xlu0 %2972
  %v2974 = vsel %vm2420, %v2888, 0.0
  %2975 = vadd.xlane.f32.xlu0 %v2974
  %v2976 = vpop.xlane.xlu0 %2975
  %v2977 = vsel %vm2420, %v2889, 0.0
  %2978 = vadd.xlane.f32.xlu0 %v2977
  %v2979 = vpop.xlane.xlu0 %2978
  %v2980 = vsel %vm2420, %v2890, 0.0
  %2981 = vadd.xlane.f32.xlu0 %v2980
  %v2982 = vpop.xlane.xlu0 %2981
  %v2983 = vsel %vm2420, %v2891, 0.0
  %2984 = vadd.xlane.f32.xlu0 %v2983
  %v2985 = vpop.xlane.xlu0 %2984
  %v2986 = vsel %vm2420, %v2892, 0.0
  %2987 = vadd.xlane.f32.xlu0 %v2986
  %v2988 = vpop.xlane.xlu0 %2987
  %v2989 = vsel %vm2420, %v2893, 0.0
  %2990 = vadd.xlane.f32.xlu0 %v2989
  %v2991 = vpop.xlane.xlu0 %2990
  %v2992 = vsel %vm2420, %v2894, 0.0
  %2993 = vadd.xlane.f32.xlu0 %v2992
  %v2994 = vpop.xlane.xlu0 %2993
  %v2995 = vsel %vm2420, %v2895, 0.0
  %2996 = vadd.xlane.f32.xlu0 %v2995
  %v2997 = vpop.xlane.xlu0 %2996
  %v2998 = vsel %vm2420, %v2896, 0.0
  %2999 = vadd.xlane.f32.xlu0 %v2998
  %v3000 = vpop.xlane.xlu0 %2999
  %v3001 = vsel %vm2420, %v2897, 0.0
  %3002 = vadd.xlane.f32.xlu0 %v3001
  %v3003 = vpop.xlane.xlu0 %3002
  %v3004 = vsel %vm2420, %v2898, 0.0
  %3005 = vadd.xlane.f32.xlu0 %v3004
  %v3006 = vpop.xlane.xlu0 %3005
  %v3007 = vsel %vm2420, %v2899, 0.0
  %3008 = vadd.xlane.f32.xlu0 %v3007
  %v3009 = vpop.xlane.xlu0 %3008
  %v3010 = vsel %vm2420, %v2900, 0.0
  %3011 = vadd.xlane.f32.xlu0 %v3010
  %v3012 = vpop.xlane.xlu0 %3011
  %v3013 = vsel %vm2420, %v2901, 0.0
  %3014 = vadd.xlane.f32.xlu0 %v3013
  %v3015 = vpop.xlane.xlu0 %3014
  %v3016 = vsel %vm2420, %v2902, 0.0
  %3017 = vadd.xlane.f32.xlu0 %v3016
  %v3018 = vpop.xlane.xlu0 %3017
  %v3019 = vsel %vm2420, %v2903, 0.0
  %3020 = vadd.xlane.f32.xlu0 %v3019
  %v3021 = vpop.xlane.xlu0 %3020
  %v3022 = vsel %vm2420, %v2904, 0.0
  %3023 = vadd.xlane.f32.xlu0 %v3022
  %v3024 = vpop.xlane.xlu0 %3023
  %v3025 = vsel %vm2420, %v2905, 0.0
  %3026 = vadd.xlane.f32.xlu0 %v3025
  %v3027 = vpop.xlane.xlu0 %3026
  %v3028 = vsel %vm2420, %v2906, 0.0
  %3029 = vadd.xlane.f32.xlu0 %v3028
  %v3030 = vpop.xlane.xlu0 %3029
  %v3031 = vsel %vm2420, %v2907, 0.0
  %3032 = vadd.xlane.f32.xlu0 %v3031
  %v3033 = vpop.xlane.xlu0 %3032
  %v3034 = vsel %vm2420, %v2908, 0.0
  %3035 = vadd.xlane.f32.xlu0 %v3034
  %v3036 = vpop.xlane.xlu0 %3035
  %v3037 = vsel %vm2420, %v2909, 0.0
  %3038 = vadd.xlane.f32.xlu0 %v3037
  %v3039 = vpop.xlane.xlu0 %3038
  %v3040 = vsel %vm2420, %v2910, 0.0
  %3041 = vadd.xlane.f32.xlu0 %v3040
  %v3042 = vpop.xlane.xlu0 %3041
  %v3043 = vsel %vm2420, %v2911, 0.0
  %3044 = vadd.xlane.f32.xlu0 %v3043
  %v3045 = vpop.xlane.xlu0 %3044
  %v3046 = vsel %vm2420, %v2912, 0.0
  %3047 = vadd.xlane.f32.xlu0 %v3046
  %v3048 = vpop.xlane.xlu0 %3047
  %v3049 = vsel %vm2420, %v2913, 0.0
  %3050 = vadd.xlane.f32.xlu0 %v3049
  %v3051 = vpop.xlane.xlu0 %3050
  %v3052 = vsel %vm2420, %v2914, 0.0
  %3053 = vadd.xlane.f32.xlu0 %v3052
  %v3054 = vpop.xlane.xlu0 %3053
  %v3055 = vsel %vm2420, %v2915, 0.0
  %3056 = vadd.xlane.f32.xlu0 %v3055
  %v3057 = vpop.xlane.xlu0 %3056
  %v3058 = vsel %vm2420, %v2916, 0.0
  %3059 = vadd.xlane.f32.xlu0 %v3058
  %v3060 = vpop.xlane.xlu0 %3059
  %v3061 = vsel %vm2420, %v2917, 0.0
  %3062 = vadd.xlane.f32.xlu0 %v3061
  %v3063 = vpop.xlane.xlu0 %3062
  %v3064 = vsel %vm2420, %v2918, 0.0
  %3065 = vadd.xlane.f32.xlu0 %v3064
  %v3066 = vpop.xlane.xlu0 %3065
  %v3067 = vsel %vm2420, %v2919, 0.0
  %3068 = vadd.xlane.f32.xlu0 %v3067
  %v3069 = vpop.xlane.xlu0 %3068
  %v3070 = vsel %vm2420, %v2920, 0.0
  %3071 = vadd.xlane.f32.xlu0 %v3070
  %v3072 = vpop.xlane.xlu0 %3071
  %v3073 = vsel %vm2420, %v2921, 0.0
  %3074 = vadd.xlane.f32.xlu0 %v3073
  %v3075 = vpop.xlane.xlu0 %3074
  %v3076 = vsel %vm2420, %v2922, 0.0
  %3077 = vadd.xlane.f32.xlu0 %v3076
  %v3078 = vpop.xlane.xlu0 %3077
  %v3079 = vsel %vm2420, %v2923, 0.0
  %3080 = vadd.xlane.f32.xlu0 %v3079
  %v3081 = vpop.xlane.xlu0 %3080
  %v3082 = vsel %vm2420, %v2924, 0.0
  %3083 = vadd.xlane.f32.xlu0 %v3082
  %v3084 = vpop.xlane.xlu0 %3083
  %v3085 = vsel %vm2420, %v2925, 0.0
  %3086 = vadd.xlane.f32.xlu0 %v3085
  %v3087 = vpop.xlane.xlu0 %3086
  %v3088 = vsel %vm2420, %v2926, 0.0
  %3089 = vadd.xlane.f32.xlu0 %v3088
  %v3090 = vpop.xlane.xlu0 %3089
  %v3091 = vsel %vm2420, %v2927, 0.0
  %3092 = vadd.xlane.f32.xlu0 %v3091
  %v3093 = vpop.xlane.xlu0 %3092
  %v3094 = vsel %vm2420, %v2928, 0.0
  %3095 = vadd.xlane.f32.xlu0 %v3094
  %v3096 = vpop.xlane.xlu0 %3095
  %v3097 = vsel %vm2420, %v2929, 0.0
  %3098 = vadd.xlane.f32.xlu0 %v3097
  %v3099 = vpop.xlane.xlu0 %3098
  %v3100 = vsel %vm2420, %v2930, 0.0
  %3101 = vadd.xlane.f32.xlu0 %v3100
  %v3102 = vpop.xlane.xlu0 %3101
  %v3103 = vsel %vm2420, %v2931, 0.0
  %3104 = vadd.xlane.f32.xlu0 %v3103
  %v3105 = vpop.xlane.xlu0 %3104
  %v3106 = vsel %vm2420, %v2932, 0.0
  %3107 = vadd.xlane.f32.xlu0 %v3106
  %v3108 = vpop.xlane.xlu0 %3107
  %v3109 = vsel %vm2420, %v2933, 0.0
  %3110 = vadd.xlane.f32.xlu0 %v3109
  %v3111 = vpop.xlane.xlu0 %3110
  %v3112 = vsel %vm2420, %v2934, 0.0
  %3113 = vadd.xlane.f32.xlu0 %v3112
  %v3114 = vpop.xlane.xlu0 %3113
  %v3115 = vsel %vm2420, %v2935, 0.0
  %3116 = vadd.xlane.f32.xlu0 %v3115
  %v3117 = vpop.xlane.xlu0 %3116
  %v3118 = vsel %vm2420, %v2936, 0.0
  %3119 = vadd.xlane.f32.xlu0 %v3118
  %v3120 = vpop.xlane.xlu0 %3119
  %v3121 = vsel %vm2420, %v2937, 0.0
  %3122 = vadd.xlane.f32.xlu0 %v3121
  %v3123 = vpop.xlane.xlu0 %3122
  %v3124 = vsel %vm2420, %v2938, 0.0
  %3125 = vadd.xlane.f32.xlu0 %v3124
  %v3126 = vpop.xlane.xlu0 %3125
  %v3127 = vsel %vm2420, %v2939, 0.0
  %3128 = vadd.xlane.f32.xlu0 %v3127
  %v3129 = vpop.xlane.xlu0 %3128
  %v3130 = vsel %vm2420, %v2940, 0.0
  %3131 = vadd.xlane.f32.xlu0 %v3130
  %v3132 = vpop.xlane.xlu0 %3131
  %v3133 = vld [vmem:[#allocation2] sm:$0x1]
  %v3135 = vlaneseq
  %v3136 = vshrl.u32 %v3135, 7
  %v3137 = vsub.s32 0, %v3136
  %v3138 = vrot.slane %v3133, %v3137
  %v3140 = vadd.f32 %v2943, %v3138
  %v3141 = vadd.f32 %v2946, %v3138
  %v3142 = vadd.f32 %v2949, %v3138
  %v3143 = vadd.f32 %v2952, %v3138
  %v3144 = vadd.f32 %v2955, %v3138
  %v3145 = vadd.f32 %v2958, %v3138
  %v3146 = vadd.f32 %v2961, %v3138
  %v3147 = vadd.f32 %v2964, %v3138
  %v3148 = vadd.f32 %v2967, %v3138
  %v3149 = vadd.f32 %v2970, %v3138
  %v3150 = vadd.f32 %v2973, %v3138
  %v3151 = vadd.f32 %v2976, %v3138
  %v3152 = vadd.f32 %v2979, %v3138
  %v3153 = vadd.f32 %v2982, %v3138
  %v3154 = vadd.f32 %v2985, %v3138
  %v3155 = vadd.f32 %v2988, %v3138
  %v3156 = vadd.f32 %v2991, %v3138
  %v3157 = vadd.f32 %v2994, %v3138
  %v3158 = vadd.f32 %v2997, %v3138
  %v3159 = vadd.f32 %v3000, %v3138
  %v3160 = vadd.f32 %v3003, %v3138
  %v3161 = vadd.f32 %v3006, %v3138
  %v3162 = vadd.f32 %v3009, %v3138
  %v3163 = vadd.f32 %v3012, %v3138
  %v3164 = vadd.f32 %v3015, %v3138
  %v3165 = vadd.f32 %v3018, %v3138
  %v3166 = vadd.f32 %v3021, %v3138
  %v3167 = vadd.f32 %v3024, %v3138
  %v3168 = vadd.f32 %v3027, %v3138
  %v3169 = vadd.f32 %v3030, %v3138
  %v3170 = vadd.f32 %v3033, %v3138
  %v3171 = vadd.f32 %v3036, %v3138
  %v3172 = vadd.f32 %v3039, %v3138
  %v3173 = vadd.f32 %v3042, %v3138
  %v3174 = vadd.f32 %v3045, %v3138
  %v3175 = vadd.f32 %v3048, %v3138
  %v3176 = vadd.f32 %v3051, %v3138
  %v3177 = vadd.f32 %v3054, %v3138
  %v3178 = vadd.f32 %v3057, %v3138
  %v3179 = vadd.f32 %v3060, %v3138
  %v3180 = vadd.f32 %v3063, %v3138
  %v3181 = vadd.f32 %v3066, %v3138
  %v3182 = vadd.f32 %v3069, %v3138
  %v3183 = vadd.f32 %v3072, %v3138
  %v3184 = vadd.f32 %v3075, %v3138
  %v3185 = vadd.f32 %v3078, %v3138
  %v3186 = vadd.f32 %v3081, %v3138
  %v3187 = vadd.f32 %v3084, %v3138
  %v3188 = vadd.f32 %v3087, %v3138
  %v3189 = vadd.f32 %v3090, %v3138
  %v3190 = vadd.f32 %v3093, %v3138
  %v3191 = vadd.f32 %v3096, %v3138
  %v3192 = vadd.f32 %v3099, %v3138
  %v3193 = vadd.f32 %v3102, %v3138
  %v3194 = vadd.f32 %v3105, %v3138
  %v3195 = vadd.f32 %v3108, %v3138
  %v3196 = vadd.f32 %v3111, %v3138
  %v3197 = vadd.f32 %v3114, %v3138
  %v3198 = vadd.f32 %v3117, %v3138
  %v3199 = vadd.f32 %v3120, %v3138
  %v3200 = vadd.f32 %v3123, %v3138
  %v3201 = vadd.f32 %v3126, %v3138
  %v3202 = vadd.f32 %v3129, %v3138
  %v3203 = vadd.f32 %v3132, %v3138
  %vm3204 = vcmask 7168
  %3205 = vst.msk [vmem:[%s11] sm:$0xff] %vm3204, %v3140
  %3206 = vst.msk [vmem:[%s11 + $0x8] sm:$0xff] %vm3204, %v3141
  %3207 = vst.msk [vmem:[%s11 + $0x10] sm:$0xff] %vm3204, %v3142
  %3208 = vst.msk [vmem:[%s11 + $0x18] sm:$0xff] %vm3204, %v3143
  %3209 = vst.msk [vmem:[%s11 + $0x20] sm:$0xff] %vm3204, %v3144
  %3210 = vst.msk [vmem:[%s11 + $0x28] sm:$0xff] %vm3204, %v3145
  %3211 = vst.msk [vmem:[%s11 + $0x30] sm:$0xff] %vm3204, %v3146
  %3212 = vst.msk [vmem:[%s11 + $0x38] sm:$0xff] %vm3204, %v3147
  %3213 = vst.msk [vmem:[%s11 + $0x40] sm:$0xff] %vm3204, %v3148
  %3214 = vst.msk [vmem:[%s11 + $0x48] sm:$0xff] %vm3204, %v3149
  %3215 = vst.msk [vmem:[%s11 + $0x50] sm:$0xff] %vm3204, %v3150
  %3216 = vst.msk [vmem:[%s11 + $0x58] sm:$0xff] %vm3204, %v3151
  %3217 = vst.msk [vmem:[%s11 + $0x60] sm:$0xff] %vm3204, %v3152
  %3218 = vst.msk [vmem:[%s11 + $0x68] sm:$0xff] %vm3204, %v3153
  %3219 = vst.msk [vmem:[%s11 + $0x70] sm:$0xff] %vm3204, %v3154
  %3220 = vst.msk [vmem:[%s11 + $0x78] sm:$0xff] %vm3204, %v3155
  %3221 = vst.msk [vmem:[%s11 + $0x80] sm:$0xff] %vm3204, %v3156
  %3222 = vst.msk [vmem:[%s11 + $0x88] sm:$0xff] %vm3204, %v3157
  %3223 = vst.msk [vmem:[%s11 + $0x90] sm:$0xff] %vm3204, %v3158
  %3224 = vst.msk [vmem:[%s11 + $0x98] sm:$0xff] %vm3204, %v3159
  %3225 = vst.msk [vmem:[%s11 + $0xa0] sm:$0xff] %vm3204, %v3160
  %3226 = vst.msk [vmem:[%s11 + $0xa8] sm:$0xff] %vm3204, %v3161
  %3227 = vst.msk [vmem:[%s11 + $0xb0] sm:$0xff] %vm3204, %v3162
  %3228 = vst.msk [vmem:[%s11 + $0xb8] sm:$0xff] %vm3204, %v3163
  %3229 = vst.msk [vmem:[%s11 + $0xc0] sm:$0xff] %vm3204, %v3164
  %3230 = vst.msk [vmem:[%s11 + $0xc8] sm:$0xff] %vm3204, %v3165
  %3231 = vst.msk [vmem:[%s11 + $0xd0] sm:$0xff] %vm3204, %v3166
  %3232 = vst.msk [vmem:[%s11 + $0xd8] sm:$0xff] %vm3204, %v3167
  %3233 = vst.msk [vmem:[%s11 + $0xe0] sm:$0xff] %vm3204, %v3168
  %3234 = vst.msk [vmem:[%s11 + $0xe8] sm:$0xff] %vm3204, %v3169
  %3235 = vst.msk [vmem:[%s11 + $0xf0] sm:$0xff] %vm3204, %v3170
  %3236 = vst.msk [vmem:[%s11 + $0xf8] sm:$0xff] %vm3204, %v3171
  %3237 = vst.msk [vmem:[%s11 + $0x100] sm:$0xff] %vm3204, %v3172
  %3238 = vst.msk [vmem:[%s11 + $0x108] sm:$0xff] %vm3204, %v3173
  %3239 = vst.msk [vmem:[%s11 + $0x110] sm:$0xff] %vm3204, %v3174
  %3240 = vst.msk [vmem:[%s11 + $0x118] sm:$0xff] %vm3204, %v3175
  %3241 = vst.msk [vmem:[%s11 + $0x120] sm:$0xff] %vm3204, %v3176
  %3242 = vst.msk [vmem:[%s11 + $0x128] sm:$0xff] %vm3204, %v3177
  %3243 = vst.msk [vmem:[%s11 + $0x130] sm:$0xff] %vm3204, %v3178
  %3244 = vst.msk [vmem:[%s11 + $0x138] sm:$0xff] %vm3204, %v3179
  %3245 = vst.msk [vmem:[%s11 + $0x140] sm:$0xff] %vm3204, %v3180
  %3246 = vst.msk [vmem:[%s11 + $0x148] sm:$0xff] %vm3204, %v3181
  %3247 = vst.msk [vmem:[%s11 + $0x150] sm:$0xff] %vm3204, %v3182
  %3248 = vst.msk [vmem:[%s11 + $0x158] sm:$0xff] %vm3204, %v3183
  %3249 = vst.msk [vmem:[%s11 + $0x160] sm:$0xff] %vm3204, %v3184
  %3250 = vst.msk [vmem:[%s11 + $0x168] sm:$0xff] %vm3204, %v3185
  %3251 = vst.msk [vmem:[%s11 + $0x170] sm:$0xff] %vm3204, %v3186
  %3252 = vst.msk [vmem:[%s11 + $0x178] sm:$0xff] %vm3204, %v3187
  %3253 = vst.msk [vmem:[%s11 + $0x180] sm:$0xff] %vm3204, %v3188
  %3254 = vst.msk [vmem:[%s11 + $0x188] sm:$0xff] %vm3204, %v3189
  %3255 = vst.msk [vmem:[%s11 + $0x190] sm:$0xff] %vm3204, %v3190
  %3256 = vst.msk [vmem:[%s11 + $0x198] sm:$0xff] %vm3204, %v3191
  %3257 = vst.msk [vmem:[%s11 + $0x1a0] sm:$0xff] %vm3204, %v3192
  %3258 = vst.msk [vmem:[%s11 + $0x1a8] sm:$0xff] %vm3204, %v3193
  %3259 = vst.msk [vmem:[%s11 + $0x1b0] sm:$0xff] %vm3204, %v3194
  %3260 = vst.msk [vmem:[%s11 + $0x1b8] sm:$0xff] %vm3204, %v3195
  %3261 = vst.msk [vmem:[%s11 + $0x1c0] sm:$0xff] %vm3204, %v3196
  %3262 = vst.msk [vmem:[%s11 + $0x1c8] sm:$0xff] %vm3204, %v3197
  %3263 = vst.msk [vmem:[%s11 + $0x1d0] sm:$0xff] %vm3204, %v3198
  %3264 = vst.msk [vmem:[%s11 + $0x1d8] sm:$0xff] %vm3204, %v3199
  %3265 = vst.msk [vmem:[%s11 + $0x1e0] sm:$0xff] %vm3204, %v3200
  %3266 = vst.msk [vmem:[%s11 + $0x1e8] sm:$0xff] %vm3204, %v3201
  %3267 = vst.msk [vmem:[%s11 + $0x1f0] sm:$0xff] %vm3204, %v3202
  %3268 = vst.msk [vmem:[%s11 + $0x1f8] sm:$0xff] %vm3204, %v3203
  // Predicated region
  $region46: #{_splearner_core.2} parent=0 // pred_check
    _
  $region47: #{_splearner_core.2} parent=0 // pred_check_branch
    %3270 = sbr.rel (0) target = $region49
  $region48: #{_splearner_core.2} parent=0 // pred_region
    _
  $region49: #{_splearner_core.2} parent=0 // pred_fallthru
    _
  // Predicated region
  $region50: #{_splearner_core.2} parent=0 // pred_check
    _
  $region51: #{_splearner_core.2} parent=0 // pred_check_branch
    %3272 = sbr.rel (0) target = $region53
  $region52: #{_splearner_core.2} parent=0 // pred_region
    _
  $region53: #{_splearner_core.2} parent=0 // pred_fallthru
    _

</llo_original>
